<compile_context>
chip_gen: v7x
topology: tpu7x:2x2x1
jax: 0.10.0
libtpu: 0.0.40
codegen_flags: <defaults>
</compile_context>

<pallas_src>
import functools

import jax
import jax.numpy as jnp
from jax.experimental import pallas as pl
from jax.experimental.pallas import tpu as pltpu

C = 64          # channel count fixed by the module definition
EPS = 1e-5      # nn.InstanceNorm2d default eps


def _resblock_kernel(x_ref, w1_ref, w2_ref, o_ref, xs3_ref, *, H, W, bt):
    # x_ref  : (bt, H*W, C)      raw input (conv1 source AND residual)
    # w*_ref : (3, 3*C, C)       conv weights, w[dy][dx*C + cin, cout]
    # o_ref  : (bt, H*W, C)
    # xs3_ref: ((H+2)*W, 3*C)    three dx-shifted, row-flattened, zero-padded
    #                            copies of the current conv input
    HW = H * W
    PW = (H + 2) * W
    inv_hw = 1.0 / HW

    # Pixel x-coordinate of every row of the (HW, C) layout (hoisted: reused by
    # every build below; JAX does not CSE broadcast_in_dim).
    col = jax.lax.broadcasted_iota(jnp.int32, (HW, 1), 0) % W
    is_first_col = col == 0
    is_last_col = col == (W - 1)

    # Zero the halo rows of the scratch once per grid step.  The interior
    # stores in build_shifted never touch:
    #   cols [0:C]   rows [0, W+1) and [W+1+HW, PW)
    #   cols [C:2C]  rows [0, W)   and [W+HW,   PW)
    #   cols [2C:3C] rows [0, W-1) and [W-1+HW, PW)
    # and every row inside [W-1, W+1) / [W+HW-1, W+HW+1) that a block DOES
    # write gets a correct (masked-to-zero where needed) value each build, so
    # zeroing the union once is sufficient and stays valid across convs/images.
    xs3_ref[0:W + 1, :] = jnp.zeros((W + 1, 3 * C), jnp.float32)
    xs3_ref[W + HW - 1:PW, :] = jnp.zeros((W + 1, 3 * C), jnp.float32)

    def build_shifted(h):
        # h: (HW, C) current conv input (unpadded, row-major over (y, x)).
        # Column block dx of xs3 holds, at row r*W + c, the padded-input value
        # x[r-1, c+dx-1, :] (zero outside the image).  The +/-1 pixel shift in
        # x is a +/-1 row shift of the flattened array, realised via the store
        # offset; the pixel that would wrap across an image row is masked to 0.
        # dx = 0 (left neighbour): shift down by one row, mask x == W-1 wrap.
        xs3_ref[W + 1:W + 1 + HW, 0:C] = jnp.where(is_last_col, 0.0, h)
        # dx = 1 (centre): straight aligned copy.
        xs3_ref[W:W + HW, C:2 * C] = h
        # dx = 2 (right neighbour): shift up by one row, mask x == 0 wrap.
        xs3_ref[W - 1:W - 1 + HW, 2 * C:3 * C] = jnp.where(is_first_col, 0.0, h)

    def conv_in_relu(w_ref):
        # 3 accumulated K=192 matmuls; each LHS is a contiguous, sublane-
        # aligned slice of xs3 (dy*W is a multiple of 8).  Conv bias omitted:
        # exactly cancelled by the instance-norm mean subtraction.
        acc = jnp.dot(xs3_ref[0:HW, :], w_ref[0],
                      preferred_element_type=jnp.float32)
        acc = acc + jnp.dot(xs3_ref[W:W + HW, :], w_ref[1],
                            preferred_element_type=jnp.float32)
        acc = acc + jnp.dot(xs3_ref[2 * W:2 * W + HW, :], w_ref[2],
                            preferred_element_type=jnp.float32)
        # One-pass per-channel stats over the spatial dim (biased variance,
        # matching PyTorch InstanceNorm), clamped at 0 for numerical safety.
        s = jnp.sum(acc, axis=0, keepdims=True)
        ss = jnp.sum(acc * acc, axis=0, keepdims=True)
        mean = s * inv_hw
        var = jnp.maximum(ss * inv_hw - mean * mean, 0.0)
        return jnp.maximum((acc - mean) * jax.lax.rsqrt(var + EPS), 0.0)

    for b in range(bt):                      # static unrolled loop over images
        x0 = x_ref[b]                        # (HW, C)
        build_shifted(x0)
        h1 = conv_in_relu(w1_ref)
        build_shifted(h1)
        h2 = conv_in_relu(w2_ref)
        o_ref[b] = x0 + h2                   # residual add


def _pick_bt(n):
    """Images per grid step: amortize per-step overhead for N > 2 while keeping
    >= 2 grid steps so both v7x TensorCores get work."""
    if n <= 2:
        return 1
    bt = min(8, n // 2)
    while n % bt:
        bt -= 1
    return max(bt, 1)


def residual_block_instance(x_nhwc, w1, b1, w2, b2, *, block_batch=None):
    """x_nhwc: (N, H, W, 64) float32.  Returns (N, H, W, 64).

    w1, w2: (3, 3, Cin, Cout) conv weights (dy, dx, cin, cout); b1, b2: (C,)
    conv biases.  The biases are accepted for module parity but are
    mathematically cancelled by InstanceNorm(affine=False), so they are not
    passed into the kernel.
    """
    N, H, W, Cc = x_nhwc.shape
    assert Cc == C
    assert W % 8 == 0, "width must be a multiple of 8 for aligned tap slices"
    del b1, b2  # exactly cancelled by the per-channel spatial mean subtraction

    bt = block_batch or _pick_bt(N)
    assert N % bt == 0
    HW = H * W
    PW = (H + 2) * W

    x_flat = x_nhwc.reshape(N, HW, C)
    w1k = w1.reshape(3, 3 * C, C)
    w2k = w2.reshape(3, 3 * C, C)

    kernel = functools.partial(_resblock_kernel, H=H, W=W, bt=bt)

    # VMEM per step: xs3 scratch = 12*(H+2)*W*C bytes (~216 KiB at 16x16) plus
    # double-buffered x/out blocks and weights -> a few MiB even at bt=8, well
    # inside v7x's 64 MiB.  For much larger spatial sizes a row-tiled build
    # with two-pass instance norm would be needed.
    out = pl.pallas_call(
        kernel,
        out_shape=jax.ShapeDtypeStruct((N, HW, C), jnp.float32),
        grid_spec=pltpu.PrefetchScalarGridSpec(
            num_scalar_prefetch=0,
            grid=(N // bt,),
            in_specs=[
                pl.BlockSpec((bt, HW, C), lambda n: (n, 0, 0)),
                pl.BlockSpec((3, 3 * C, C), lambda n: (0, 0, 0)),
                pl.BlockSpec((3, 3 * C, C), lambda n: (0, 0, 0)),
            ],
            out_specs=pl.BlockSpec((bt, HW, C), lambda n: (n, 0, 0)),
            scratch_shapes=[pltpu.VMEM((PW, 3 * C), jnp.float32)],
        ),
        compiler_params=pltpu.CompilerParams(
            dimension_semantics=("parallel",),   # shard batch steps on v7x TCs
            vmem_limit_bytes=32 * 1024 * 1024,
        ),
    )(x_flat, w1k, w2k)
    return out.reshape(N, H, W, C)


def _reference(x_nhwc, w1, b1, w2, b2):
    """Pure-JAX reference (NHWC), WITH conv biases, for correctness checking."""
    def conv(h, w, b):
        y = jax.lax.conv_general_dilated(
            h, w, window_strides=(1, 1), padding="SAME",
            dimension_numbers=("NHWC", "HWIO", "NHWC"))
        return y + b

    def in_relu(h):
        m = jnp.mean(h, axis=(1, 2), keepdims=True)
        v = jnp.mean((h - m) ** 2, axis=(1, 2), keepdims=True)
        return jnp.maximum((h - m) * jax.lax.rsqrt(v + EPS), 0.0)

    h = in_relu(conv(x_nhwc, w1, b1))
    h = in_relu(conv(h, w2, b2))
    return x_nhwc + h


if __name__ == "__main__":
    key = jax.random.PRNGKey(0)
    k_x, k_w1, k_b1, k_w2, k_b2, k_x2 = jax.random.split(key, 6)

    N, H, W = 2, 16, 16
    # Input in PyTorch NCHW convention, converted to the kernel's NHWC layout.
    x_nchw = jax.random.normal(k_x, (N, C, H, W), dtype=jnp.float32)
    x_nhwc = jnp.transpose(x_nchw, (0, 2, 3, 1))

    # Deterministic synthetic Conv2d(64, 64, 3) parameters as
    # (kH, kW, Cin, Cout) = (dy, dx, cin, cout).
    fan_in = C * 3 * 3
    scale = 1.0 / jnp.sqrt(fan_in)
    w1 = jax.random.uniform(k_w1, (3, 3, C, C), jnp.float32, -scale, scale)
    b1 = jax.random.uniform(k_b1, (C,), jnp.float32, -scale, scale)
    w2 = jax.random.uniform(k_w2, (3, 3, C, C), jnp.float32, -scale, scale)
    b2 = jax.random.uniform(k_b2, (C,), jnp.float32, -scale, scale)

    out = jax.block_until_ready(residual_block_instance(x_nhwc, w1, b1, w2, b2))
    ref = _reference(x_nhwc, w1, b1, w2, b2)
    assert out.shape == (N, H, W, C)
    assert jnp.allclose(out, ref, rtol=1e-4, atol=1e-4), "mismatch vs reference"

    # Exercise the batched (bt > 1) per-step path as well (N=4 -> bt=2).
    x_big = jax.random.normal(k_x2, (4, H, W, C), dtype=jnp.float32)
    out_big = jax.block_until_ready(residual_block_instance(x_big, w1, b1, w2, b2))
    ref_big = _reference(x_big, w1, b1, w2, b2)
    assert jnp.allclose(out_big, ref_big, rtol=1e-4, atol=1e-4), \
        "mismatch vs reference (batched path)"

    # Back to PyTorch NCHW convention for the module-level output.
    out_nchw = jnp.transpose(out, (0, 3, 1, 2))
    jax.block_until_ready(out_nchw)
    print("KERNEL_OK")
</pallas_src>

<mosaic_0001>
module attributes {stable_mosaic.version = 11 : i64} {
  func.func @_resblock_kernel(%arg0: i32, %arg1: memref<1x256x64xf32, #tpu.memory_space<vmem>>, %arg2: memref<3x192x64xf32, #tpu.memory_space<vmem>>, %arg3: memref<3x192x64xf32, #tpu.memory_space<vmem>>, %arg4: memref<1x256x64xf32, #tpu.memory_space<vmem>>, %arg5: memref<288x192xf32, #tpu.memory_space<vmem>>) attributes {dimension_semantics = [#tpu.dimension_semantics<parallel>], iteration_bounds = array<i64: 2>, scalar_prefetch = 0 : i64, scratch_operands = 1 : i64, tpu.core_type = #tpu.core_type<tc>, window_params = [{transform_indices = @transform_0, window_bounds = array<i64: 1, 256, 64>}, {pipeline_mode = #tpu.pipeline_mode<synchronous>, transform_indices = @transform_1, window_bounds = array<i64: 3, 192, 64>}, {pipeline_mode = #tpu.pipeline_mode<synchronous>, transform_indices = @transform_2, window_bounds = array<i64: 3, 192, 64>}, {transform_indices = @transform_3, window_bounds = array<i64: 1, 256, 64>}]} {
    %0 = tpu.iota {dimensions = array<i32: 0>} : vector<256x1xi32>
    %c16_i32 = arith.constant 16 : i32
    %c0_i32 = arith.constant 0 : i32
    %1 = arith.cmpi eq, %c16_i32, %c0_i32 : i32
    %c1_i32 = arith.constant 1 : i32
    %2 = arith.select %1, %c1_i32, %c16_i32 : i32
    %3 = vector.broadcast %2 : i32 to vector<256x1xi32>
    %4 = arith.remsi %0, %3 : vector<256x1xi32>
    %c0_i32_0 = arith.constant 0 : i32
    %5 = vector.broadcast %c0_i32_0 : i32 to vector<256x1xi32>
    %6 = arith.cmpi ne, %4, %5 : vector<256x1xi32>
    %c0_i32_1 = arith.constant 0 : i32
    %7 = vector.broadcast %c0_i32_1 : i32 to vector<256x1xi32>
    %8 = arith.cmpi slt, %4, %7 : vector<256x1xi32>
    %c0_i32_2 = arith.constant 0 : i32
    %9 = arith.cmpi slt, %2, %c0_i32_2 : i32
    %10 = vector.broadcast %9 : i1 to vector<256x1xi1>
    %11 = vector.broadcast %10 : vector<256x1xi1> to vector<256x1xi1>
    %12 = arith.xori %8, %11 : vector<256x1xi1>
    %13 = arith.andi %12, %6 : vector<256x1xi1>
    %14 = vector.broadcast %2 : i32 to vector<256x1xi32>
    %15 = arith.addi %4, %14 : vector<256x1xi32>
    %16 = arith.select %13, %15, %4 : vector<256x1xi1>, vector<256x1xi32>
    %c0_i32_3 = arith.constant 0 : i32
    %17 = vector.broadcast %c0_i32_3 : i32 to vector<256x1xi32>
    %18 = arith.cmpi eq, %16, %17 : vector<256x1xi32>
    %c15_i32 = arith.constant 15 : i32
    %19 = vector.broadcast %c15_i32 : i32 to vector<256x1xi32>
    %20 = arith.cmpi eq, %16, %19 : vector<256x1xi32>
    %cst = arith.constant 0.000000e+00 : f32
    %21 = vector.broadcast %cst : f32 to vector<17x192xf32>
    %c0 = arith.constant 0 : index
    %c0_4 = arith.constant 0 : index
    %22 = vector.load %arg5[%c0, %c0_4] : memref<288x192xf32, #tpu.memory_space<vmem>>, vector<17x192xf32>
    tpu.vector_store %arg5[%c0, %c0_4], %21 {strides = array<i32>} : memref<288x192xf32, #tpu.memory_space<vmem>>, vector<17x192xf32>,
    %cst_5 = arith.constant 0.000000e+00 : f32
    %23 = vector.broadcast %cst_5 : f32 to vector<17x192xf32>
    %c271 = arith.constant 271 : index
    %c0_6 = arith.constant 0 : index
    %24 = vector.load %arg5[%c271, %c0_6] : memref<288x192xf32, #tpu.memory_space<vmem>>, vector<17x192xf32>
    tpu.vector_store %arg5[%c271, %c0_6], %23 {strides = array<i32>} : memref<288x192xf32, #tpu.memory_space<vmem>>, vector<17x192xf32>,
    %c0_7 = arith.constant 0 : index
    %c0_8 = arith.constant 0 : index
    %c0_9 = arith.constant 0 : index
    %25 = vector.load %arg1[%c0_7, %c0_8, %c0_9] : memref<1x256x64xf32, #tpu.memory_space<vmem>>, vector<1x256x64xf32>
    %26 = vector.shape_cast %25 : vector<1x256x64xf32> to vector<256x64xf32>
    %cst_10 = arith.constant 0.000000e+00 : f32
    %27 = vector.shape_cast %20 : vector<256x1xi1> to vector<256x1xi1>
    %28 = vector.broadcast %27 : vector<256x1xi1> to vector<256x64xi1>
    %29 = vector.broadcast %cst_10 : f32 to vector<256x64xf32>
    %30 = arith.select %28, %29, %26 : vector<256x64xi1>, vector<256x64xf32>
    %c17 = arith.constant 17 : index
    %c0_11 = arith.constant 0 : index
    %31 = vector.load %arg5[%c17, %c0_11] : memref<288x192xf32, #tpu.memory_space<vmem>>, vector<256x64xf32>
    tpu.vector_store %arg5[%c17, %c0_11], %30 {strides = array<i32>} : memref<288x192xf32, #tpu.memory_space<vmem>>, vector<256x64xf32>,
    %c16 = arith.constant 16 : index
    %c64 = arith.constant 64 : index
    %32 = vector.load %arg5[%c16, %c64] : memref<288x192xf32, #tpu.memory_space<vmem>>, vector<256x64xf32>
    tpu.vector_store %arg5[%c16, %c64], %26 {strides = array<i32>} : memref<288x192xf32, #tpu.memory_space<vmem>>, vector<256x64xf32>,
    %cst_12 = arith.constant 0.000000e+00 : f32
    %33 = vector.shape_cast %18 : vector<256x1xi1> to vector<256x1xi1>
    %34 = vector.broadcast %33 : vector<256x1xi1> to vector<256x64xi1>
    %35 = vector.broadcast %cst_12 : f32 to vector<256x64xf32>
    %36 = arith.select %34, %35, %26 : vector<256x64xi1>, vector<256x64xf32>
    %c15 = arith.constant 15 : index
    %c128 = arith.constant 128 : index
    %37 = vector.load %arg5[%c15, %c128] : memref<288x192xf32, #tpu.memory_space<vmem>>, vector<256x64xf32>
    tpu.vector_store %arg5[%c15, %c128], %36 {strides = array<i32>} : memref<288x192xf32, #tpu.memory_space<vmem>>, vector<256x64xf32>,
    %c0_13 = arith.constant 0 : index
    %c0_14 = arith.constant 0 : index
    %38 = vector.load %arg5[%c0_13, %c0_14] : memref<288x192xf32, #tpu.memory_space<vmem>>, vector<256x192xf32>
    %c0_15 = arith.constant 0 : index
    %c0_16 = arith.constant 0 : index
    %c0_17 = arith.constant 0 : index
    %39 = vector.load %arg2[%c0_15, %c0_16, %c0_17] : memref<3x192x64xf32, #tpu.memory_space<vmem>>, vector<1x192x64xf32>
    %40 = vector.shape_cast %39 : vector<1x192x64xf32> to vector<192x64xf32>
    %cst_18 = arith.constant dense<0.000000e+00> : vector<256x64xf32>
    %41 = tpu.matmul %38, %40, %cst_18 {dimension_numbers = #tpu.dot_dimension_numbers<[1], [0], [0], [1], [0, 0, 1, 1], [], []>} : vector<256x192xf32>, vector<192x64xf32>, vector<256x64xf32> -> vector<256x64xf32>
    %c16_19 = arith.constant 16 : index
    %c0_20 = arith.constant 0 : index
    %42 = vector.load %arg5[%c16_19, %c0_20] : memref<288x192xf32, #tpu.memory_space<vmem>>, vector<256x192xf32>
    %c1 = arith.constant 1 : index
    %c0_21 = arith.constant 0 : index
    %c0_22 = arith.constant 0 : index
    %43 = vector.load %arg2[%c1, %c0_21, %c0_22] : memref<3x192x64xf32, #tpu.memory_space<vmem>>, vector<1x192x64xf32>
    %44 = vector.shape_cast %43 : vector<1x192x64xf32> to vector<192x64xf32>
    %cst_23 = arith.constant dense<0.000000e+00> : vector<256x64xf32>
    %45 = tpu.matmul %42, %44, %cst_23 {dimension_numbers = #tpu.dot_dimension_numbers<[1], [0], [0], [1], [0, 0, 1, 1], [], []>} : vector<256x192xf32>, vector<192x64xf32>, vector<256x64xf32> -> vector<256x64xf32>
    %46 = arith.addf %41, %45 : vector<256x64xf32>
    %c32 = arith.constant 32 : index
    %c0_24 = arith.constant 0 : index
    %47 = vector.load %arg5[%c32, %c0_24] : memref<288x192xf32, #tpu.memory_space<vmem>>, vector<256x192xf32>
    %c2 = arith.constant 2 : index
    %c0_25 = arith.constant 0 : index
    %c0_26 = arith.constant 0 : index
    %48 = vector.load %arg2[%c2, %c0_25, %c0_26] : memref<3x192x64xf32, #tpu.memory_space<vmem>>, vector<1x192x64xf32>
    %49 = vector.shape_cast %48 : vector<1x192x64xf32> to vector<192x64xf32>
    %cst_27 = arith.constant dense<0.000000e+00> : vector<256x64xf32>
    %50 = tpu.matmul %47, %49, %cst_27 {dimension_numbers = #tpu.dot_dimension_numbers<[1], [0], [0], [1], [0, 0, 1, 1], [], []>} : vector<256x192xf32>, vector<192x64xf32>, vector<256x64xf32> -> vector<256x64xf32>
    %51 = arith.addf %46, %50 : vector<256x64xf32>
    %cst_28 = arith.constant dense<0.000000e+00> : vector<64xf32>
    %52 = vector.multi_reduction <add>, %51, %cst_28 [0] : vector<256x64xf32> to vector<64xf32>
    %53 = vector.shape_cast %52 : vector<64xf32> to vector<1x64xf32>
    %54 = arith.mulf %51, %51 : vector<256x64xf32>
    %cst_29 = arith.constant dense<0.000000e+00> : vector<64xf32>
    %55 = vector.multi_reduction <add>, %54, %cst_29 [0] : vector<256x64xf32> to vector<64xf32>
    %56 = vector.shape_cast %55 : vector<64xf32> to vector<1x64xf32>
    %cst_30 = arith.constant 3.906250e-03 : f32
    %57 = vector.broadcast %cst_30 : f32 to vector<1x64xf32>
    %58 = arith.mulf %53, %57 : vector<1x64xf32>
    %cst_31 = arith.constant 3.906250e-03 : f32
    %59 = vector.broadcast %cst_31 : f32 to vector<1x64xf32>
    %60 = arith.mulf %56, %59 : vector<1x64xf32>
    %61 = arith.mulf %58, %58 : vector<1x64xf32>
    %62 = arith.subf %60, %61 : vector<1x64xf32>
    %cst_32 = arith.constant 0.000000e+00 : f32
    %63 = vector.broadcast %cst_32 : f32 to vector<1x64xf32>
    %64 = arith.maximumf %62, %63 : vector<1x64xf32>
    %65 = vector.broadcast %58 : vector<1x64xf32> to vector<256x64xf32>
    %66 = arith.subf %51, %65 : vector<256x64xf32>
    %cst_33 = arith.constant 9.99999974E-6 : f32
    %67 = vector.broadcast %cst_33 : f32 to vector<1x64xf32>
    %68 = arith.addf %64, %67 : vector<1x64xf32>
    %69 = math.rsqrt %68 : vector<1x64xf32>
    %70 = vector.broadcast %69 : vector<1x64xf32> to vector<256x64xf32>
    %71 = arith.mulf %66, %70 : vector<256x64xf32>
    %cst_34 = arith.constant 0.000000e+00 : f32
    %72 = vector.broadcast %cst_34 : f32 to vector<256x64xf32>
    %73 = arith.maximumf %71, %72 : vector<256x64xf32>
    %cst_35 = arith.constant 0.000000e+00 : f32
    %74 = vector.shape_cast %20 : vector<256x1xi1> to vector<256x1xi1>
    %75 = vector.broadcast %74 : vector<256x1xi1> to vector<256x64xi1>
    %76 = vector.broadcast %cst_35 : f32 to vector<256x64xf32>
    %77 = arith.select %75, %76, %73 : vector<256x64xi1>, vector<256x64xf32>
    %c17_36 = arith.constant 17 : index
    %c0_37 = arith.constant 0 : index
    %78 = vector.load %arg5[%c17_36, %c0_37] : memref<288x192xf32, #tpu.memory_space<vmem>>, vector<256x64xf32>
    tpu.vector_store %arg5[%c17_36, %c0_37], %77 {strides = array<i32>} : memref<288x192xf32, #tpu.memory_space<vmem>>, vector<256x64xf32>,
    %c16_38 = arith.constant 16 : index
    %c64_39 = arith.constant 64 : index
    %79 = vector.load %arg5[%c16_38, %c64_39] : memref<288x192xf32, #tpu.memory_space<vmem>>, vector<256x64xf32>
    tpu.vector_store %arg5[%c16_38, %c64_39], %73 {strides = array<i32>} : memref<288x192xf32, #tpu.memory_space<vmem>>, vector<256x64xf32>,
    %cst_40 = arith.constant 0.000000e+00 : f32
    %80 = vector.shape_cast %18 : vector<256x1xi1> to vector<256x1xi1>
    %81 = vector.broadcast %80 : vector<256x1xi1> to vector<256x64xi1>
    %82 = vector.broadcast %cst_40 : f32 to vector<256x64xf32>
    %83 = arith.select %81, %82, %73 : vector<256x64xi1>, vector<256x64xf32>
    %c15_41 = arith.constant 15 : index
    %c128_42 = arith.constant 128 : index
    %84 = vector.load %arg5[%c15_41, %c128_42] : memref<288x192xf32, #tpu.memory_space<vmem>>, vector<256x64xf32>
    tpu.vector_store %arg5[%c15_41, %c128_42], %83 {strides = array<i32>} : memref<288x192xf32, #tpu.memory_space<vmem>>, vector<256x64xf32>,
    %c0_43 = arith.constant 0 : index
    %c0_44 = arith.constant 0 : index
    %85 = vector.load %arg5[%c0_43, %c0_44] : memref<288x192xf32, #tpu.memory_space<vmem>>, vector<256x192xf32>
    %c0_45 = arith.constant 0 : index
    %c0_46 = arith.constant 0 : index
    %c0_47 = arith.constant 0 : index
    %86 = vector.load %arg3[%c0_45, %c0_46, %c0_47] : memref<3x192x64xf32, #tpu.memory_space<vmem>>, vector<1x192x64xf32>
    %87 = vector.shape_cast %86 : vector<1x192x64xf32> to vector<192x64xf32>
    %cst_48 = arith.constant dense<0.000000e+00> : vector<256x64xf32>
    %88 = tpu.matmul %85, %87, %cst_48 {dimension_numbers = #tpu.dot_dimension_numbers<[1], [0], [0], [1], [0, 0, 1, 1], [], []>} : vector<256x192xf32>, vector<192x64xf32>, vector<256x64xf32> -> vector<256x64xf32>
    %c16_49 = arith.constant 16 : index
    %c0_50 = arith.constant 0 : index
    %89 = vector.load %arg5[%c16_49, %c0_50] : memref<288x192xf32, #tpu.memory_space<vmem>>, vector<256x192xf32>
    %c1_51 = arith.constant 1 : index
    %c0_52 = arith.constant 0 : index
    %c0_53 = arith.constant 0 : index
    %90 = vector.load %arg3[%c1_51, %c0_52, %c0_53] : memref<3x192x64xf32, #tpu.memory_space<vmem>>, vector<1x192x64xf32>
    %91 = vector.shape_cast %90 : vector<1x192x64xf32> to vector<192x64xf32>
    %cst_54 = arith.constant dense<0.000000e+00> : vector<256x64xf32>
    %92 = tpu.matmul %89, %91, %cst_54 {dimension_numbers = #tpu.dot_dimension_numbers<[1], [0], [0], [1], [0, 0, 1, 1], [], []>} : vector<256x192xf32>, vector<192x64xf32>, vector<256x64xf32> -> vector<256x64xf32>
    %93 = arith.addf %88, %92 : vector<256x64xf32>
    %c32_55 = arith.constant 32 : index
    %c0_56 = arith.constant 0 : index
    %94 = vector.load %arg5[%c32_55, %c0_56] : memref<288x192xf32, #tpu.memory_space<vmem>>, vector<256x192xf32>
    %c2_57 = arith.constant 2 : index
    %c0_58 = arith.constant 0 : index
    %c0_59 = arith.constant 0 : index
    %95 = vector.load %arg3[%c2_57, %c0_58, %c0_59] : memref<3x192x64xf32, #tpu.memory_space<vmem>>, vector<1x192x64xf32>
    %96 = vector.shape_cast %95 : vector<1x192x64xf32> to vector<192x64xf32>
    %cst_60 = arith.constant dense<0.000000e+00> : vector<256x64xf32>
    %97 = tpu.matmul %94, %96, %cst_60 {dimension_numbers = #tpu.dot_dimension_numbers<[1], [0], [0], [1], [0, 0, 1, 1], [], []>} : vector<256x192xf32>, vector<192x64xf32>, vector<256x64xf32> -> vector<256x64xf32>
    %98 = arith.addf %93, %97 : vector<256x64xf32>
    %cst_61 = arith.constant dense<0.000000e+00> : vector<64xf32>
    %99 = vector.multi_reduction <add>, %98, %cst_61 [0] : vector<256x64xf32> to vector<64xf32>
    %100 = vector.shape_cast %99 : vector<64xf32> to vector<1x64xf32>
    %101 = arith.mulf %98, %98 : vector<256x64xf32>
    %cst_62 = arith.constant dense<0.000000e+00> : vector<64xf32>
    %102 = vector.multi_reduction <add>, %101, %cst_62 [0] : vector<256x64xf32> to vector<64xf32>
    %103 = vector.shape_cast %102 : vector<64xf32> to vector<1x64xf32>
    %cst_63 = arith.constant 3.906250e-03 : f32
    %104 = vector.broadcast %cst_63 : f32 to vector<1x64xf32>
    %105 = arith.mulf %100, %104 : vector<1x64xf32>
    %cst_64 = arith.constant 3.906250e-03 : f32
    %106 = vector.broadcast %cst_64 : f32 to vector<1x64xf32>
    %107 = arith.mulf %103, %106 : vector<1x64xf32>
    %108 = arith.mulf %105, %105 : vector<1x64xf32>
    %109 = arith.subf %107, %108 : vector<1x64xf32>
    %cst_65 = arith.constant 0.000000e+00 : f32
    %110 = vector.broadcast %cst_65 : f32 to vector<1x64xf32>
    %111 = arith.maximumf %109, %110 : vector<1x64xf32>
    %112 = vector.broadcast %105 : vector<1x64xf32> to vector<256x64xf32>
    %113 = arith.subf %98, %112 : vector<256x64xf32>
    %cst_66 = arith.constant 9.99999974E-6 : f32
    %114 = vector.broadcast %cst_66 : f32 to vector<1x64xf32>
    %115 = arith.addf %111, %114 : vector<1x64xf32>
    %116 = math.rsqrt %115 : vector<1x64xf32>
    %117 = vector.broadcast %116 : vector<1x64xf32> to vector<256x64xf32>
    %118 = arith.mulf %113, %117 : vector<256x64xf32>
    %cst_67 = arith.constant 0.000000e+00 : f32
    %119 = vector.broadcast %cst_67 : f32 to vector<256x64xf32>
    %120 = arith.maximumf %118, %119 : vector<256x64xf32>
    %121 = arith.addf %26, %120 : vector<256x64xf32>
    %c0_68 = arith.constant 0 : index
    %c0_69 = arith.constant 0 : index
    %c0_70 = arith.constant 0 : index
    %122 = vector.load %arg4[%c0_68, %c0_69, %c0_70] : memref<1x256x64xf32, #tpu.memory_space<vmem>>, vector<1x256x64xf32>
    %123 = vector.shape_cast %122 : vector<1x256x64xf32> to vector<256x64xf32>
    %124 = vector.shape_cast %121 : vector<256x64xf32> to vector<1x256x64xf32>
    tpu.vector_store %arg4[%c0_68, %c0_69, %c0_70], %124 {strides = array<i32>} : memref<1x256x64xf32, #tpu.memory_space<vmem>>, vector<1x256x64xf32>,
    return
  }
  func.func @transform_0(%arg0: i32) -> (i32, i32, i32) {
    %c0_i32 = arith.constant 0 : i32
    %c0_i32_0 = arith.constant 0 : i32
    %c0_i32_1 = arith.constant 0 : i32
    return %arg0, %c0_i32, %c0_i32_0 : i32, i32, i32
  }
  func.func @transform_1(%arg0: i32) -> (i32, i32, i32) {
    %c0_i32 = arith.constant 0 : i32
    %c0_i32_0 = arith.constant 0 : i32
    %c0_i32_1 = arith.constant 0 : i32
    %c0_i32_2 = arith.constant 0 : i32
    return %c0_i32, %c0_i32_0, %c0_i32_1 : i32, i32, i32
  }
  func.func @transform_2(%arg0: i32) -> (i32, i32, i32) {
    %c0_i32 = arith.constant 0 : i32
    %c0_i32_0 = arith.constant 0 : i32
    %c0_i32_1 = arith.constant 0 : i32
    %c0_i32_2 = arith.constant 0 : i32
    return %c0_i32, %c0_i32_0, %c0_i32_1 : i32, i32, i32
  }
  func.func @transform_3(%arg0: i32) -> (i32, i32, i32) {
    %c0_i32 = arith.constant 0 : i32
    %c0_i32_0 = arith.constant 0 : i32
    %c0_i32_1 = arith.constant 0 : i32
    return %arg0, %c0_i32, %c0_i32_0 : i32, i32, i32
  }
}

</mosaic_0001>

<llo_original>
// kernel: tpu_custom_call.1
$region0: #{tpu_custom_call.1}
  #allocation0 [shape = 'u32[]', space=smem, size = 0x4, offset = 0x4, fixed_abs, tag = 'smem constant byte address 0x4 - core index']
  #allocation1 [shape = 'u32[144,128]{1,0:T(1,128)}', space=vmem, size = 0x12000, scoped, tag = 'internal scratch']
  #allocation2 [shape = 'f32[288,192]{1,0:T(8,128)}', space=vmem, size = 0x48000, scoped, tag = 'scratch operand']
  %s0 = inlined_call_operand.vmem [shape: f32[2,256,64], index: 0, kind: input, shape index: {}]
  %s1 = inlined_call_operand.vmem [shape: f32[3,192,64], index: 1, kind: input, shape index: {}]
  %s2 = inlined_call_operand.vmem [shape: f32[3,192,64], index: 2, kind: input, shape index: {}]
  %s3 = inlined_call_operand.vmem [shape: f32[2,256,64], index: 3, kind: output, shape index: {}]
  %s4 = sld [smem:[#allocation0]]
  $region45: #{tpu_custom_call.1} parent=0
    _
  %s6 = ssub.s32 1, %s4
  %s7 = scalar_select 0, %s6, %s4
  loop: start=0, step=1, limit=4
  $region2: #{tpu_custom_call.1} parent=0 // loop_pre_header
    _
  $region3: #{tpu_custom_call.1} parent=0 // loop_header
    %s9 = sphi 0, %s13
    %p10 = scmp.ge.s32.totalorder %s9, 4
    %s19 = sphi 0, %s21
    %s22 = sphi 0, %s19
    %s23 = sphi 0, %s22
    %s39 = sphi 0, %s23
    %s43 = sphi 0, %s43
    %s45 = sphi 0, %s43
    %s46 = sphi 0, %s45
    %s60 = sphi 0, %s46
    %s64 = sphi 0, %s64
    %s66 = sphi 0, %s64
    %s67 = sphi 0, %s66
    %s81 = sphi 0, %s67
    %s87 = sphi 0, %s89
    %s90 = sphi 0, %s87
    %s91 = sphi 0, %s90
    %s107 = sphi 0, %s91
  $region4: #{tpu_custom_call.1} parent=0 // loop_header_branch
    %12 = sbr.rel (%p10) target = $region8
  $region5: #{tpu_custom_call.1} parent=0 // loop_body
    %s14 = ssub.s32 %s9, 1
    %s15 = ssub.s32 %s9, 2
    %s16 = sadd.s32 %s9, 1
    %s17 = ssub.s32 %s9, %s16
    %p18 = scmp.eq.s32.totalorder %s17, 0
    %s20 = sadd.s32 %s19, 1
    %s21 = scalar_select %p18, %s19, %s20
    %p24 = pneg %p18
    %p25 = scmp.eq.s32.totalorder %s9, 1
    %p26 = por %p24, %p25
    %p27 = scmp.ne.s32.totalorder %s19, %s22
    %p28 = scmp.eq.s32.totalorder %s9, 0
    %p29 = por %p27, %p28
    %p30 = scmp.ne.s32.totalorder %s19, %s22
    %p31 = scmp.eq.s32.totalorder %s14, 1
    %p32 = por %p30, %p31
    %p33 = scmp.ne.s32.totalorder %s22, %s23
    %p34 = scmp.eq.s32.totalorder %s14, 0
    %p35 = por %p33, %p34
    %p36 = scmp.ne.s32.totalorder %s22, %s23
    %p37 = scmp.eq.s32.totalorder %s15, 1
    %p38 = por %p36, %p37
    %p40 = scmp.ne.s32.totalorder %s23, %s39
    %p41 = scmp.eq.s32.totalorder %s15, 0
    %p42 = por %p40, %p41
    %s44 = sadd.s32 %s43, 1
    %p47 = scmp.eq.s32.totalorder %s9, 1
    %p48 = scmp.ne.s32.totalorder %s43, %s45
    %p49 = scmp.eq.s32.totalorder %s9, 0
    %p50 = por %p48, %p49
    %p51 = scmp.ne.s32.totalorder %s43, %s45
    %p52 = scmp.eq.s32.totalorder %s14, 1
    %p53 = por %p51, %p52
    %p54 = scmp.ne.s32.totalorder %s45, %s46
    %p55 = scmp.eq.s32.totalorder %s14, 0
    %p56 = por %p54, %p55
    %p57 = scmp.ne.s32.totalorder %s45, %s46
    %p58 = scmp.eq.s32.totalorder %s15, 1
    %p59 = por %p57, %p58
    %p61 = scmp.ne.s32.totalorder %s46, %s60
    %p62 = scmp.eq.s32.totalorder %s15, 0
    %p63 = por %p61, %p62
    %s65 = sadd.s32 %s64, 1
    %p68 = scmp.eq.s32.totalorder %s9, 1
    %p69 = scmp.ne.s32.totalorder %s64, %s66
    %p70 = scmp.eq.s32.totalorder %s9, 0
    %p71 = por %p69, %p70
    %p72 = scmp.ne.s32.totalorder %s64, %s66
    %p73 = scmp.eq.s32.totalorder %s14, 1
    %p74 = por %p72, %p73
    %p75 = scmp.ne.s32.totalorder %s66, %s67
    %p76 = scmp.eq.s32.totalorder %s14, 0
    %p77 = por %p75, %p76
    %p78 = scmp.ne.s32.totalorder %s66, %s67
    %p79 = scmp.eq.s32.totalorder %s15, 1
    %p80 = por %p78, %p79
    %p82 = scmp.ne.s32.totalorder %s67, %s81
    %p83 = scmp.eq.s32.totalorder %s15, 0
    %p84 = por %p82, %p83
    %s85 = ssub.s32 %s9, %s16
    %p86 = scmp.eq.s32.totalorder %s85, 0
    %s88 = sadd.s32 %s87, 1
    %s89 = scalar_select %p86, %s87, %s88
    %p92 = pneg %p86
    %p93 = scmp.eq.s32.totalorder %s9, 1
    %p94 = por %p92, %p93
    %p95 = scmp.ne.s32.totalorder %s87, %s90
    %p96 = scmp.eq.s32.totalorder %s9, 0
    %p97 = por %p95, %p96
    %p98 = scmp.ne.s32.totalorder %s87, %s90
    %p99 = scmp.eq.s32.totalorder %s14, 1
    %p100 = por %p98, %p99
    %p101 = scmp.ne.s32.totalorder %s90, %s91
    %p102 = scmp.eq.s32.totalorder %s14, 0
    %p103 = por %p101, %p102
    %p104 = scmp.ne.s32.totalorder %s90, %s91
    %p105 = scmp.eq.s32.totalorder %s15, 1
    %p106 = por %p104, %p105
    %p108 = scmp.ne.s32.totalorder %s91, %s107
    %p109 = scmp.eq.s32.totalorder %s15, 0
    %p110 = por %p108, %p109
    %p111 = scmp.le.s32.totalorder 1, %s9
    %p112 = scmp.lt.s32.totalorder %s9, 3
    %p113 = pnand %p111, %p112
    %p114 = pneg %p113
    // Predicated region
    $region9: #{tpu_custom_call.1} parent=5 // pred_check
      _
    $region10: #{tpu_custom_call.1} parent=5 // pred_check_branch
      %116 = sbr.rel (%p113) target = $region12
    $region11: #{tpu_custom_call.1} parent=5 // pred_region
      %s117 = ssub.s32 %s9, 1
      // Predicated region
      $region13: #{tpu_custom_call.1} parent=11 // pred_check
        %p118 = pneg %p56
      $region14: #{tpu_custom_call.1} parent=11 // pred_check_branch
        %120 = sbr.rel (%p118) target = $region16
      $region15: #{tpu_custom_call.1} parent=11 // pred_region
        _
      $region16: #{tpu_custom_call.1} parent=11 // pred_fallthru
        _
      // Predicated region
      $region17: #{tpu_custom_call.1} parent=11 // pred_check
        %p121 = pneg %p77
      $region18: #{tpu_custom_call.1} parent=11 // pred_check_branch
        %123 = sbr.rel (%p121) target = $region20
      $region19: #{tpu_custom_call.1} parent=11 // pred_region
        _
      $region20: #{tpu_custom_call.1} parent=11 // pred_fallthru
        _
    $region12: #{tpu_custom_call.1} parent=5 // pred_fallthru
      _
    %p124 = scmp.lt.s32.totalorder %s9, 2
    // Predicated region
    $region21: #{tpu_custom_call.1} parent=5 // pred_check
      %p125 = pneg %p124
    $region22: #{tpu_custom_call.1} parent=5 // pred_check_branch
      %127 = sbr.rel (%p125) target = $region24
    $region23: #{tpu_custom_call.1} parent=5 // pred_region
      // Predicated region
      $region25: #{tpu_custom_call.1} parent=23 // pred_check
        %p128 = pneg %p29
      $region26: #{tpu_custom_call.1} parent=23 // pred_check_branch
        %130 = sbr.rel (%p128) target = $region28
      $region27: #{tpu_custom_call.1} parent=23 // pred_region
        %p131 = scmp.lt.s32.totalorder %s9, 1
        %s132 = scalar_select %p131, %s9, 1
        %s133 = smul.addr %s132, 32
        %s134 = smul.addr %s133, 8
        %s135 = scalar_lea.vmem %s0, %s134
      $region28: #{tpu_custom_call.1} parent=23 // pred_fallthru
        _
    $region24: #{tpu_custom_call.1} parent=5 // pred_fallthru
      _
    %p136 = scmp.le.s32.totalorder 1, %s9
    %p137 = scmp.lt.s32.totalorder %s9, 3
    %p138 = pnand %p136, %p137
    %p139 = pneg %p138
    // Predicated region
    $region29: #{tpu_custom_call.1} parent=5 // pred_check
      _
    $region30: #{tpu_custom_call.1} parent=5 // pred_check_branch
      %141 = sbr.rel (%p138) target = $region32
    $region31: #{tpu_custom_call.1} parent=5 // pred_region
      %s142 = ssub.s32 %s9, 1
      %p143 = scmp.lt.s32.totalorder %s14, 1
      %s144 = scalar_select %p143, %s14, 1
      %s145 = smul.addr %s144, 32
      %s146 = smul.addr %s145, 8
      %s147 = scalar_lea.vmem %s0, %s146
      %p148 = pneg %p35
      %p149 = pneg %p32
      %p150 = pneg %p56
      %p151 = pneg %p53
      %p152 = pneg %p77
      %p153 = pneg %p74
      %p154 = pneg %p103
      %p155 = pneg %p100
      %p156 = scmp.lt.s32.totalorder %s14, 1
      %s157 = scalar_select %p156, %s14, 1
      %s158 = smul.addr %s157, 32
      %s159 = smul.addr %s158, 8
      %s160 = scalar_lea.vmem %s3, %s159
      %p161 = scmp.lt.s32.totalorder %s14, 1
      %s162 = scalar_select %p161, %s14, 1
      %s163 = smul.addr %s162, 32
      %s164 = smul.addr %s163, 8
      %s165 = scalar_lea.vmem %s0, %s164
      %p166 = scmp.lt.s32.totalorder %s14, 1
      %s167 = scalar_select %p166, %s14, 1
      %s168 = smul.addr %s167, 32
      %s169 = smul.addr %s168, 8
      %s170 = scalar_lea.vmem %s3, %s169
      %v171 = vlaneseq
      %v172 = vshrl.u32 %v171, 7
      %v173 = vadd.s32 %v172, 8
      %v174 = vadd.s32 %v172, 16
      %v175 = vadd.s32 %v172, 24
      %v176 = vadd.s32 %v172, 32
      %v177 = vadd.s32 %v172, 40
      %v178 = vadd.s32 %v172, 48
      %v179 = vadd.s32 %v172, 56
      %v180 = vadd.s32 %v172, 64
      %v181 = vadd.s32 %v172, 72
      %v182 = vadd.s32 %v172, 80
      %v183 = vadd.s32 %v172, 88
      %v184 = vadd.s32 %v172, 96
      %v185 = vadd.s32 %v172, 104
      %v186 = vadd.s32 %v172, 112
      %v187 = vadd.s32 %v172, 120
      %v188 = vadd.s32 %v172, 128
      %v189 = vadd.s32 %v172, 136
      %v190 = vadd.s32 %v172, 144
      %v191 = vadd.s32 %v172, 152
      %v192 = vadd.s32 %v172, 160
      %v193 = vadd.s32 %v172, 168
      %v194 = vadd.s32 %v172, 176
      %v195 = vadd.s32 %v172, 184
      %v196 = vadd.s32 %v172, 192
      %v197 = vadd.s32 %v172, 200
      %v198 = vadd.s32 %v172, 208
      %v199 = vadd.s32 %v172, 216
      %v200 = vadd.s32 %v172, 224
      %v201 = vadd.s32 %v172, 232
      %v202 = vadd.s32 %v172, 240
      %v203 = vadd.s32 %v172, 248
      %vm204 = vcmp.lt.s32.totalorder %v172, 0
      %v205 = vsub.s32 0, %v172
      %v206 = vsel %vm204, %v205, %v172
      %v207 = vshrl.u32 %v206, 4
      %v208 = vand.u32 %v206, 15
      %v209 = vsub.s32 0, %v208
      %v210 = vsel %vm204, %v209, %v208
      %vm211 = vcmp.lt.s32.totalorder %v173, 0
      %v212 = vsub.s32 0, %v173
      %v213 = vsel %vm211, %v212, %v173
      %v214 = vshrl.u32 %v213, 4
      %v215 = vand.u32 %v213, 15
      %v216 = vsub.s32 0, %v215
      %v217 = vsel %vm211, %v216, %v215
      %vm218 = vcmp.lt.s32.totalorder %v174, 0
      %v219 = vsub.s32 0, %v174
      %v220 = vsel %vm218, %v219, %v174
      %v221 = vshrl.u32 %v220, 4
      %v222 = vand.u32 %v220, 15
      %v223 = vsub.s32 0, %v222
      %v224 = vsel %vm218, %v223, %v222
      %vm225 = vcmp.lt.s32.totalorder %v175, 0
      %v226 = vsub.s32 0, %v175
      %v227 = vsel %vm225, %v226, %v175
      %v228 = vshrl.u32 %v227, 4
      %v229 = vand.u32 %v227, 15
      %v230 = vsub.s32 0, %v229
      %v231 = vsel %vm225, %v230, %v229
      %vm232 = vcmp.lt.s32.totalorder %v176, 0
      %v233 = vsub.s32 0, %v176
      %v234 = vsel %vm232, %v233, %v176
      %v235 = vshrl.u32 %v234, 4
      %v236 = vand.u32 %v234, 15
      %v237 = vsub.s32 0, %v236
      %v238 = vsel %vm232, %v237, %v236
      %vm239 = vcmp.lt.s32.totalorder %v177, 0
      %v240 = vsub.s32 0, %v177
      %v241 = vsel %vm239, %v240, %v177
      %v242 = vshrl.u32 %v241, 4
      %v243 = vand.u32 %v241, 15
      %v244 = vsub.s32 0, %v243
      %v245 = vsel %vm239, %v244, %v243
      %vm246 = vcmp.lt.s32.totalorder %v178, 0
      %v247 = vsub.s32 0, %v178
      %v248 = vsel %vm246, %v247, %v178
      %v249 = vshrl.u32 %v248, 4
      %v250 = vand.u32 %v248, 15
      %v251 = vsub.s32 0, %v250
      %v252 = vsel %vm246, %v251, %v250
      %vm253 = vcmp.lt.s32.totalorder %v179, 0
      %v254 = vsub.s32 0, %v179
      %v255 = vsel %vm253, %v254, %v179
      %v256 = vshrl.u32 %v255, 4
      %v257 = vand.u32 %v255, 15
      %v258 = vsub.s32 0, %v257
      %v259 = vsel %vm253, %v258, %v257
      %vm260 = vcmp.lt.s32.totalorder %v180, 0
      %v261 = vsub.s32 0, %v180
      %v262 = vsel %vm260, %v261, %v180
      %v263 = vshrl.u32 %v262, 4
      %v264 = vand.u32 %v262, 15
      %v265 = vsub.s32 0, %v264
      %v266 = vsel %vm260, %v265, %v264
      %vm267 = vcmp.lt.s32.totalorder %v181, 0
      %v268 = vsub.s32 0, %v181
      %v269 = vsel %vm267, %v268, %v181
      %v270 = vshrl.u32 %v269, 4
      %v271 = vand.u32 %v269, 15
      %v272 = vsub.s32 0, %v271
      %v273 = vsel %vm267, %v272, %v271
      %vm274 = vcmp.lt.s32.totalorder %v182, 0
      %v275 = vsub.s32 0, %v182
      %v276 = vsel %vm274, %v275, %v182
      %v277 = vshrl.u32 %v276, 4
      %v278 = vand.u32 %v276, 15
      %v279 = vsub.s32 0, %v278
      %v280 = vsel %vm274, %v279, %v278
      %vm281 = vcmp.lt.s32.totalorder %v183, 0
      %v282 = vsub.s32 0, %v183
      %v283 = vsel %vm281, %v282, %v183
      %v284 = vshrl.u32 %v283, 4
      %v285 = vand.u32 %v283, 15
      %v286 = vsub.s32 0, %v285
      %v287 = vsel %vm281, %v286, %v285
      %vm288 = vcmp.lt.s32.totalorder %v184, 0
      %v289 = vsub.s32 0, %v184
      %v290 = vsel %vm288, %v289, %v184
      %v291 = vshrl.u32 %v290, 4
      %v292 = vand.u32 %v290, 15
      %v293 = vsub.s32 0, %v292
      %v294 = vsel %vm288, %v293, %v292
      %vm295 = vcmp.lt.s32.totalorder %v185, 0
      %v296 = vsub.s32 0, %v185
      %v297 = vsel %vm295, %v296, %v185
      %v298 = vshrl.u32 %v297, 4
      %v299 = vand.u32 %v297, 15
      %v300 = vsub.s32 0, %v299
      %v301 = vsel %vm295, %v300, %v299
      %vm302 = vcmp.lt.s32.totalorder %v186, 0
      %v303 = vsub.s32 0, %v186
      %v304 = vsel %vm302, %v303, %v186
      %v305 = vshrl.u32 %v304, 4
      %v306 = vand.u32 %v304, 15
      %v307 = vsub.s32 0, %v306
      %v308 = vsel %vm302, %v307, %v306
      %vm309 = vcmp.lt.s32.totalorder %v187, 0
      %v310 = vsub.s32 0, %v187
      %v311 = vsel %vm309, %v310, %v187
      %v312 = vshrl.u32 %v311, 4
      %v313 = vand.u32 %v311, 15
      %v314 = vsub.s32 0, %v313
      %v315 = vsel %vm309, %v314, %v313
      %vm316 = vcmp.lt.s32.totalorder %v188, 0
      %v317 = vsub.s32 0, %v188
      %v318 = vsel %vm316, %v317, %v188
      %v319 = vshrl.u32 %v318, 4
      %v320 = vand.u32 %v318, 15
      %v321 = vsub.s32 0, %v320
      %v322 = vsel %vm316, %v321, %v320
      %vm323 = vcmp.lt.s32.totalorder %v189, 0
      %v324 = vsub.s32 0, %v189
      %v325 = vsel %vm323, %v324, %v189
      %v326 = vshrl.u32 %v325, 4
      %v327 = vand.u32 %v325, 15
      %v328 = vsub.s32 0, %v327
      %v329 = vsel %vm323, %v328, %v327
      %vm330 = vcmp.lt.s32.totalorder %v190, 0
      %v331 = vsub.s32 0, %v190
      %v332 = vsel %vm330, %v331, %v190
      %v333 = vshrl.u32 %v332, 4
      %v334 = vand.u32 %v332, 15
      %v335 = vsub.s32 0, %v334
      %v336 = vsel %vm330, %v335, %v334
      %vm337 = vcmp.lt.s32.totalorder %v191, 0
      %v338 = vsub.s32 0, %v191
      %v339 = vsel %vm337, %v338, %v191
      %v340 = vshrl.u32 %v339, 4
      %v341 = vand.u32 %v339, 15
      %v342 = vsub.s32 0, %v341
      %v343 = vsel %vm337, %v342, %v341
      %vm344 = vcmp.lt.s32.totalorder %v192, 0
      %v345 = vsub.s32 0, %v192
      %v346 = vsel %vm344, %v345, %v192
      %v347 = vshrl.u32 %v346, 4
      %v348 = vand.u32 %v346, 15
      %v349 = vsub.s32 0, %v348
      %v350 = vsel %vm344, %v349, %v348
      %vm351 = vcmp.lt.s32.totalorder %v193, 0
      %v352 = vsub.s32 0, %v193
      %v353 = vsel %vm351, %v352, %v193
      %v354 = vshrl.u32 %v353, 4
      %v355 = vand.u32 %v353, 15
      %v356 = vsub.s32 0, %v355
      %v357 = vsel %vm351, %v356, %v355
      %vm358 = vcmp.lt.s32.totalorder %v194, 0
      %v359 = vsub.s32 0, %v194
      %v360 = vsel %vm358, %v359, %v194
      %v361 = vshrl.u32 %v360, 4
      %v362 = vand.u32 %v360, 15
      %v363 = vsub.s32 0, %v362
      %v364 = vsel %vm358, %v363, %v362
      %vm365 = vcmp.lt.s32.totalorder %v195, 0
      %v366 = vsub.s32 0, %v195
      %v367 = vsel %vm365, %v366, %v195
      %v368 = vshrl.u32 %v367, 4
      %v369 = vand.u32 %v367, 15
      %v370 = vsub.s32 0, %v369
      %v371 = vsel %vm365, %v370, %v369
      %vm372 = vcmp.lt.s32.totalorder %v196, 0
      %v373 = vsub.s32 0, %v196
      %v374 = vsel %vm372, %v373, %v196
      %v375 = vshrl.u32 %v374, 4
      %v376 = vand.u32 %v374, 15
      %v377 = vsub.s32 0, %v376
      %v378 = vsel %vm372, %v377, %v376
      %vm379 = vcmp.lt.s32.totalorder %v197, 0
      %v380 = vsub.s32 0, %v197
      %v381 = vsel %vm379, %v380, %v197
      %v382 = vshrl.u32 %v381, 4
      %v383 = vand.u32 %v381, 15
      %v384 = vsub.s32 0, %v383
      %v385 = vsel %vm379, %v384, %v383
      %vm386 = vcmp.lt.s32.totalorder %v198, 0
      %v387 = vsub.s32 0, %v198
      %v388 = vsel %vm386, %v387, %v198
      %v389 = vshrl.u32 %v388, 4
      %v390 = vand.u32 %v388, 15
      %v391 = vsub.s32 0, %v390
      %v392 = vsel %vm386, %v391, %v390
      %vm393 = vcmp.lt.s32.totalorder %v199, 0
      %v394 = vsub.s32 0, %v199
      %v395 = vsel %vm393, %v394, %v199
      %v396 = vshrl.u32 %v395, 4
      %v397 = vand.u32 %v395, 15
      %v398 = vsub.s32 0, %v397
      %v399 = vsel %vm393, %v398, %v397
      %vm400 = vcmp.lt.s32.totalorder %v200, 0
      %v401 = vsub.s32 0, %v200
      %v402 = vsel %vm400, %v401, %v200
      %v403 = vshrl.u32 %v402, 4
      %v404 = vand.u32 %v402, 15
      %v405 = vsub.s32 0, %v404
      %v406 = vsel %vm400, %v405, %v404
      %vm407 = vcmp.lt.s32.totalorder %v201, 0
      %v408 = vsub.s32 0, %v201
      %v409 = vsel %vm407, %v408, %v201
      %v410 = vshrl.u32 %v409, 4
      %v411 = vand.u32 %v409, 15
      %v412 = vsub.s32 0, %v411
      %v413 = vsel %vm407, %v412, %v411
      %vm414 = vcmp.lt.s32.totalorder %v202, 0
      %v415 = vsub.s32 0, %v202
      %v416 = vsel %vm414, %v415, %v202
      %v417 = vshrl.u32 %v416, 4
      %v418 = vand.u32 %v416, 15
      %v419 = vsub.s32 0, %v418
      %v420 = vsel %vm414, %v419, %v418
      %vm421 = vcmp.lt.s32.totalorder %v203, 0
      %v422 = vsub.s32 0, %v203
      %v423 = vsel %vm421, %v422, %v203
      %v424 = vshrl.u32 %v423, 4
      %v425 = vand.u32 %v423, 15
      %v426 = vsub.s32 0, %v425
      %v427 = vsel %vm421, %v426, %v425
      %vm428 = vcmp.ne.s32.totalorder %v210, 0
      %vm429 = vcmp.ne.s32.totalorder %v217, 0
      %vm430 = vcmp.ne.s32.totalorder %v224, 0
      %vm431 = vcmp.ne.s32.totalorder %v231, 0
      %vm432 = vcmp.ne.s32.totalorder %v238, 0
      %vm433 = vcmp.ne.s32.totalorder %v245, 0
      %vm434 = vcmp.ne.s32.totalorder %v252, 0
      %vm435 = vcmp.ne.s32.totalorder %v259, 0
      %vm436 = vcmp.ne.s32.totalorder %v266, 0
      %vm437 = vcmp.ne.s32.totalorder %v273, 0
      %vm438 = vcmp.ne.s32.totalorder %v280, 0
      %vm439 = vcmp.ne.s32.totalorder %v287, 0
      %vm440 = vcmp.ne.s32.totalorder %v294, 0
      %vm441 = vcmp.ne.s32.totalorder %v301, 0
      %vm442 = vcmp.ne.s32.totalorder %v308, 0
      %vm443 = vcmp.ne.s32.totalorder %v315, 0
      %vm444 = vcmp.ne.s32.totalorder %v322, 0
      %vm445 = vcmp.ne.s32.totalorder %v329, 0
      %vm446 = vcmp.ne.s32.totalorder %v336, 0
      %vm447 = vcmp.ne.s32.totalorder %v343, 0
      %vm448 = vcmp.ne.s32.totalorder %v350, 0
      %vm449 = vcmp.ne.s32.totalorder %v357, 0
      %vm450 = vcmp.ne.s32.totalorder %v364, 0
      %vm451 = vcmp.ne.s32.totalorder %v371, 0
      %vm452 = vcmp.ne.s32.totalorder %v378, 0
      %vm453 = vcmp.ne.s32.totalorder %v385, 0
      %vm454 = vcmp.ne.s32.totalorder %v392, 0
      %vm455 = vcmp.ne.s32.totalorder %v399, 0
      %vm456 = vcmp.ne.s32.totalorder %v406, 0
      %vm457 = vcmp.ne.s32.totalorder %v413, 0
      %vm458 = vcmp.ne.s32.totalorder %v420, 0
      %vm459 = vcmp.ne.s32.totalorder %v427, 0
      %vm460 = vcmp.lt.s32.totalorder %v210, 0
      %vm461 = vcmp.lt.s32.totalorder %v217, 0
      %vm462 = vcmp.lt.s32.totalorder %v224, 0
      %vm463 = vcmp.lt.s32.totalorder %v231, 0
      %vm464 = vcmp.lt.s32.totalorder %v238, 0
      %vm465 = vcmp.lt.s32.totalorder %v245, 0
      %vm466 = vcmp.lt.s32.totalorder %v252, 0
      %vm467 = vcmp.lt.s32.totalorder %v259, 0
      %vm468 = vcmp.lt.s32.totalorder %v266, 0
      %vm469 = vcmp.lt.s32.totalorder %v273, 0
      %vm470 = vcmp.lt.s32.totalorder %v280, 0
      %vm471 = vcmp.lt.s32.totalorder %v287, 0
      %vm472 = vcmp.lt.s32.totalorder %v294, 0
      %vm473 = vcmp.lt.s32.totalorder %v301, 0
      %vm474 = vcmp.lt.s32.totalorder %v308, 0
      %vm475 = vcmp.lt.s32.totalorder %v315, 0
      %vm476 = vcmp.lt.s32.totalorder %v322, 0
      %vm477 = vcmp.lt.s32.totalorder %v329, 0
      %vm478 = vcmp.lt.s32.totalorder %v336, 0
      %vm479 = vcmp.lt.s32.totalorder %v343, 0
      %vm480 = vcmp.lt.s32.totalorder %v350, 0
      %vm481 = vcmp.lt.s32.totalorder %v357, 0
      %vm482 = vcmp.lt.s32.totalorder %v364, 0
      %vm483 = vcmp.lt.s32.totalorder %v371, 0
      %vm484 = vcmp.lt.s32.totalorder %v378, 0
      %vm485 = vcmp.lt.s32.totalorder %v385, 0
      %vm486 = vcmp.lt.s32.totalorder %v392, 0
      %vm487 = vcmp.lt.s32.totalorder %v399, 0
      %vm488 = vcmp.lt.s32.totalorder %v406, 0
      %vm489 = vcmp.lt.s32.totalorder %v413, 0
      %vm490 = vcmp.lt.s32.totalorder %v420, 0
      %vm491 = vcmp.lt.s32.totalorder %v427, 0
      %vm492 = vmand %vm460, %vm428
      %vm493 = vmand %vm461, %vm429
      %vm494 = vmand %vm462, %vm430
      %vm495 = vmand %vm463, %vm431
      %vm496 = vmand %vm464, %vm432
      %vm497 = vmand %vm465, %vm433
      %vm498 = vmand %vm466, %vm434
      %vm499 = vmand %vm467, %vm435
      %vm500 = vmand %vm468, %vm436
      %vm501 = vmand %vm469, %vm437
      %vm502 = vmand %vm470, %vm438
      %vm503 = vmand %vm471, %vm439
      %vm504 = vmand %vm472, %vm440
      %vm505 = vmand %vm473, %vm441
      %vm506 = vmand %vm474, %vm442
      %vm507 = vmand %vm475, %vm443
      %vm508 = vmand %vm476, %vm444
      %vm509 = vmand %vm477, %vm445
      %vm510 = vmand %vm478, %vm446
      %vm511 = vmand %vm479, %vm447
      %vm512 = vmand %vm480, %vm448
      %vm513 = vmand %vm481, %vm449
      %vm514 = vmand %vm482, %vm450
      %vm515 = vmand %vm483, %vm451
      %vm516 = vmand %vm484, %vm452
      %vm517 = vmand %vm485, %vm453
      %vm518 = vmand %vm486, %vm454
      %vm519 = vmand %vm487, %vm455
      %vm520 = vmand %vm488, %vm456
      %vm521 = vmand %vm489, %vm457
      %vm522 = vmand %vm490, %vm458
      %vm523 = vmand %vm491, %vm459
      %v524 = vadd.s32 %v210, 16
      %v525 = vadd.s32 %v217, 16
      %v526 = vadd.s32 %v224, 16
      %v527 = vadd.s32 %v231, 16
      %v528 = vadd.s32 %v238, 16
      %v529 = vadd.s32 %v245, 16
      %v530 = vadd.s32 %v252, 16
      %v531 = vadd.s32 %v259, 16
      %v532 = vadd.s32 %v266, 16
      %v533 = vadd.s32 %v273, 16
      %v534 = vadd.s32 %v280, 16
      %v535 = vadd.s32 %v287, 16
      %v536 = vadd.s32 %v294, 16
      %v537 = vadd.s32 %v301, 16
      %v538 = vadd.s32 %v308, 16
      %v539 = vadd.s32 %v315, 16
      %v540 = vadd.s32 %v322, 16
      %v541 = vadd.s32 %v329, 16
      %v542 = vadd.s32 %v336, 16
      %v543 = vadd.s32 %v343, 16
      %v544 = vadd.s32 %v350, 16
      %v545 = vadd.s32 %v357, 16
      %v546 = vadd.s32 %v364, 16
      %v547 = vadd.s32 %v371, 16
      %v548 = vadd.s32 %v378, 16
      %v549 = vadd.s32 %v385, 16
      %v550 = vadd.s32 %v392, 16
      %v551 = vadd.s32 %v399, 16
      %v552 = vadd.s32 %v406, 16
      %v553 = vadd.s32 %v413, 16
      %v554 = vadd.s32 %v420, 16
      %v555 = vadd.s32 %v427, 16
      %v556 = vsel %vm492, %v524, %v210
      %v557 = vsel %vm493, %v525, %v217
      %v558 = vsel %vm494, %v526, %v224
      %v559 = vsel %vm495, %v527, %v231
      %v560 = vsel %vm496, %v528, %v238
      %v561 = vsel %vm497, %v529, %v245
      %v562 = vsel %vm498, %v530, %v252
      %v563 = vsel %vm499, %v531, %v259
      %v564 = vsel %vm500, %v532, %v266
      %v565 = vsel %vm501, %v533, %v273
      %v566 = vsel %vm502, %v534, %v280
      %v567 = vsel %vm503, %v535, %v287
      %v568 = vsel %vm504, %v536, %v294
      %v569 = vsel %vm505, %v537, %v301
      %v570 = vsel %vm506, %v538, %v308
      %v571 = vsel %vm507, %v539, %v315
      %v572 = vsel %vm508, %v540, %v322
      %v573 = vsel %vm509, %v541, %v329
      %v574 = vsel %vm510, %v542, %v336
      %v575 = vsel %vm511, %v543, %v343
      %v576 = vsel %vm512, %v544, %v350
      %v577 = vsel %vm513, %v545, %v357
      %v578 = vsel %vm514, %v546, %v364
      %v579 = vsel %vm515, %v547, %v371
      %v580 = vsel %vm516, %v548, %v378
      %v581 = vsel %vm517, %v549, %v385
      %v582 = vsel %vm518, %v550, %v392
      %v583 = vsel %vm519, %v551, %v399
      %v584 = vsel %vm520, %v552, %v406
      %v585 = vsel %vm521, %v553, %v413
      %v586 = vsel %vm522, %v554, %v420
      %v587 = vsel %vm523, %v555, %v427
      %vm588 = vcmp.eq.s32.totalorder %v556, 0
      %vm589 = vcmp.eq.s32.totalorder %v557, 0
      %vm590 = vcmp.eq.s32.totalorder %v558, 0
      %vm591 = vcmp.eq.s32.totalorder %v559, 0
      %vm592 = vcmp.eq.s32.totalorder %v560, 0
      %vm593 = vcmp.eq.s32.totalorder %v561, 0
      %vm594 = vcmp.eq.s32.totalorder %v562, 0
      %vm595 = vcmp.eq.s32.totalorder %v563, 0
      %vm596 = vcmp.eq.s32.totalorder %v564, 0
      %vm597 = vcmp.eq.s32.totalorder %v565, 0
      %vm598 = vcmp.eq.s32.totalorder %v566, 0
      %vm599 = vcmp.eq.s32.totalorder %v567, 0
      %vm600 = vcmp.eq.s32.totalorder %v568, 0
      %vm601 = vcmp.eq.s32.totalorder %v569, 0
      %vm602 = vcmp.eq.s32.totalorder %v570, 0
      %vm603 = vcmp.eq.s32.totalorder %v571, 0
      %vm604 = vcmp.eq.s32.totalorder %v572, 0
      %vm605 = vcmp.eq.s32.totalorder %v573, 0
      %vm606 = vcmp.eq.s32.totalorder %v574, 0
      %vm607 = vcmp.eq.s32.totalorder %v575, 0
      %vm608 = vcmp.eq.s32.totalorder %v576, 0
      %vm609 = vcmp.eq.s32.totalorder %v577, 0
      %vm610 = vcmp.eq.s32.totalorder %v578, 0
      %vm611 = vcmp.eq.s32.totalorder %v579, 0
      %vm612 = vcmp.eq.s32.totalorder %v580, 0
      %vm613 = vcmp.eq.s32.totalorder %v581, 0
      %vm614 = vcmp.eq.s32.totalorder %v582, 0
      %vm615 = vcmp.eq.s32.totalorder %v583, 0
      %vm616 = vcmp.eq.s32.totalorder %v584, 0
      %vm617 = vcmp.eq.s32.totalorder %v585, 0
      %vm618 = vcmp.eq.s32.totalorder %v586, 0
      %vm619 = vcmp.eq.s32.totalorder %v587, 0
      %vm620 = vcmp.eq.s32.totalorder %v556, 15
      %vm621 = vcmp.eq.s32.totalorder %v557, 15
      %vm622 = vcmp.eq.s32.totalorder %v558, 15
      %vm623 = vcmp.eq.s32.totalorder %v559, 15
      %vm624 = vcmp.eq.s32.totalorder %v560, 15
      %vm625 = vcmp.eq.s32.totalorder %v561, 15
      %vm626 = vcmp.eq.s32.totalorder %v562, 15
      %vm627 = vcmp.eq.s32.totalorder %v563, 15
      %vm628 = vcmp.eq.s32.totalorder %v564, 15
      %vm629 = vcmp.eq.s32.totalorder %v565, 15
      %vm630 = vcmp.eq.s32.totalorder %v566, 15
      %vm631 = vcmp.eq.s32.totalorder %v567, 15
      %vm632 = vcmp.eq.s32.totalorder %v568, 15
      %vm633 = vcmp.eq.s32.totalorder %v569, 15
      %vm634 = vcmp.eq.s32.totalorder %v570, 15
      %vm635 = vcmp.eq.s32.totalorder %v571, 15
      %vm636 = vcmp.eq.s32.totalorder %v572, 15
      %vm637 = vcmp.eq.s32.totalorder %v573, 15
      %vm638 = vcmp.eq.s32.totalorder %v574, 15
      %vm639 = vcmp.eq.s32.totalorder %v575, 15
      %vm640 = vcmp.eq.s32.totalorder %v576, 15
      %vm641 = vcmp.eq.s32.totalorder %v577, 15
      %vm642 = vcmp.eq.s32.totalorder %v578, 15
      %vm643 = vcmp.eq.s32.totalorder %v579, 15
      %vm644 = vcmp.eq.s32.totalorder %v580, 15
      %vm645 = vcmp.eq.s32.totalorder %v581, 15
      %vm646 = vcmp.eq.s32.totalorder %v582, 15
      %vm647 = vcmp.eq.s32.totalorder %v583, 15
      %vm648 = vcmp.eq.s32.totalorder %v584, 15
      %vm649 = vcmp.eq.s32.totalorder %v585, 15
      %vm650 = vcmp.eq.s32.totalorder %v586, 15
      %vm651 = vcmp.eq.s32.totalorder %v587, 15
      %652 = vst [vmem:[#allocation2] sm:$0xff] 0.0
      %vm653 = vcmask 523264
      %654 = vst.msk [vmem:[#allocation2 + $0x8] sm:$0xff] %vm653, 0.0
      %655 = vst [vmem:[#allocation2 + $0x10] sm:$0xff] 0.0
      %656 = vst.msk [vmem:[#allocation2 + $0x18] sm:$0xff] %vm653, 0.0
      %657 = vst [vmem:[#allocation2 + $0x20] sm:$0x1] 0.0
      %vm658 = vcmask 516096
      %659 = vst.msk [vmem:[#allocation2 + $0x28] sm:$0x1] %vm658, 0.0
      %660 = vst [vmem:[#allocation2 + $0x210] sm:$0x80] 0.0
      %vm661 = vcmask 523271
      %662 = vst.msk [vmem:[#allocation2 + $0x218] sm:$0x80] %vm661, 0.0
      %663 = vst [vmem:[#allocation2 + $0x220] sm:$0xff] 0.0
      %664 = vst.msk [vmem:[#allocation2 + $0x228] sm:$0xff] %vm653, 0.0
      %665 = vst [vmem:[#allocation2 + $0x230] sm:$0xff] 0.0
      %666 = vst.msk [vmem:[#allocation2 + $0x238] sm:$0xff] %vm653, 0.0
      %v667 = vld [vmem:[%s165] sm:$0xff]
      %v668 = vld [vmem:[%s165 + $0x8] sm:$0xff]
      %v669 = vld [vmem:[%s165 + $0x10] sm:$0xff]
      %v670 = vld [vmem:[%s165 + $0x18] sm:$0xff]
      %v671 = vld [vmem:[%s165 + $0x20] sm:$0xff]
      %v672 = vld [vmem:[%s165 + $0x28] sm:$0xff]
      %v673 = vld [vmem:[%s165 + $0x30] sm:$0xff]
      %v674 = vld [vmem:[%s165 + $0x38] sm:$0xff]
      %v675 = vld [vmem:[%s165 + $0x40] sm:$0xff]
      %v676 = vld [vmem:[%s165 + $0x48] sm:$0xff]
      %v677 = vld [vmem:[%s165 + $0x50] sm:$0xff]
      %v678 = vld [vmem:[%s165 + $0x58] sm:$0xff]
      %v679 = vld [vmem:[%s165 + $0x60] sm:$0xff]
      %v680 = vld [vmem:[%s165 + $0x68] sm:$0xff]
      %v681 = vld [vmem:[%s165 + $0x70] sm:$0xff]
      %v682 = vld [vmem:[%s165 + $0x78] sm:$0xff]
      %v683 = vld [vmem:[%s165 + $0x80] sm:$0xff]
      %v684 = vld [vmem:[%s165 + $0x88] sm:$0xff]
      %v685 = vld [vmem:[%s165 + $0x90] sm:$0xff]
      %v686 = vld [vmem:[%s165 + $0x98] sm:$0xff]
      %v687 = vld [vmem:[%s165 + $0xa0] sm:$0xff]
      %v688 = vld [vmem:[%s165 + $0xa8] sm:$0xff]
      %v689 = vld [vmem:[%s165 + $0xb0] sm:$0xff]
      %v690 = vld [vmem:[%s165 + $0xb8] sm:$0xff]
      %v691 = vld [vmem:[%s165 + $0xc0] sm:$0xff]
      %v692 = vld [vmem:[%s165 + $0xc8] sm:$0xff]
      %v693 = vld [vmem:[%s165 + $0xd0] sm:$0xff]
      %v694 = vld [vmem:[%s165 + $0xd8] sm:$0xff]
      %v695 = vld [vmem:[%s165 + $0xe0] sm:$0xff]
      %v696 = vld [vmem:[%s165 + $0xe8] sm:$0xff]
      %v697 = vld [vmem:[%s165 + $0xf0] sm:$0xff]
      %v698 = vld [vmem:[%s165 + $0xf8] sm:$0xff]
      %v699 = vsel %vm620, 1, 0
      %v700 = vsel %vm621, 1, 0
      %v701 = vsel %vm622, 1, 0
      %v702 = vsel %vm623, 1, 0
      %v703 = vsel %vm624, 1, 0
      %v704 = vsel %vm625, 1, 0
      %v705 = vsel %vm626, 1, 0
      %v706 = vsel %vm627, 1, 0
      %v707 = vsel %vm628, 1, 0
      %v708 = vsel %vm629, 1, 0
      %v709 = vsel %vm630, 1, 0
      %v710 = vsel %vm631, 1, 0
      %v711 = vsel %vm632, 1, 0
      %v712 = vsel %vm633, 1, 0
      %v713 = vsel %vm634, 1, 0
      %v714 = vsel %vm635, 1, 0
      %v715 = vsel %vm636, 1, 0
      %v716 = vsel %vm637, 1, 0
      %v717 = vsel %vm638, 1, 0
      %v718 = vsel %vm639, 1, 0
      %v719 = vsel %vm640, 1, 0
      %v720 = vsel %vm641, 1, 0
      %v721 = vsel %vm642, 1, 0
      %v722 = vsel %vm643, 1, 0
      %v723 = vsel %vm644, 1, 0
      %v724 = vsel %vm645, 1, 0
      %v725 = vsel %vm646, 1, 0
      %v726 = vsel %vm647, 1, 0
      %v727 = vsel %vm648, 1, 0
      %v728 = vsel %vm649, 1, 0
      %v729 = vsel %vm650, 1, 0
      %v730 = vsel %vm651, 1, 0
      %vm731 = vcmp.eq.s32.totalorder %v699, 1
      %vm732 = vcmp.eq.s32.totalorder %v700, 1
      %vm733 = vcmp.eq.s32.totalorder %v701, 1
      %vm734 = vcmp.eq.s32.totalorder %v702, 1
      %vm735 = vcmp.eq.s32.totalorder %v703, 1
      %vm736 = vcmp.eq.s32.totalorder %v704, 1
      %vm737 = vcmp.eq.s32.totalorder %v705, 1
      %vm738 = vcmp.eq.s32.totalorder %v706, 1
      %vm739 = vcmp.eq.s32.totalorder %v707, 1
      %vm740 = vcmp.eq.s32.totalorder %v708, 1
      %vm741 = vcmp.eq.s32.totalorder %v709, 1
      %vm742 = vcmp.eq.s32.totalorder %v710, 1
      %vm743 = vcmp.eq.s32.totalorder %v711, 1
      %vm744 = vcmp.eq.s32.totalorder %v712, 1
      %vm745 = vcmp.eq.s32.totalorder %v713, 1
      %vm746 = vcmp.eq.s32.totalorder %v714, 1
      %vm747 = vcmp.eq.s32.totalorder %v715, 1
      %vm748 = vcmp.eq.s32.totalorder %v716, 1
      %vm749 = vcmp.eq.s32.totalorder %v717, 1
      %vm750 = vcmp.eq.s32.totalorder %v718, 1
      %vm751 = vcmp.eq.s32.totalorder %v719, 1
      %vm752 = vcmp.eq.s32.totalorder %v720, 1
      %vm753 = vcmp.eq.s32.totalorder %v721, 1
      %vm754 = vcmp.eq.s32.totalorder %v722, 1
      %vm755 = vcmp.eq.s32.totalorder %v723, 1
      %vm756 = vcmp.eq.s32.totalorder %v724, 1
      %vm757 = vcmp.eq.s32.totalorder %v725, 1
      %vm758 = vcmp.eq.s32.totalorder %v726, 1
      %vm759 = vcmp.eq.s32.totalorder %v727, 1
      %vm760 = vcmp.eq.s32.totalorder %v728, 1
      %vm761 = vcmp.eq.s32.totalorder %v729, 1
      %vm762 = vcmp.eq.s32.totalorder %v730, 1
      %v763 = vsel %vm731, 0.0, %v667
      %v764 = vsel %vm732, 0.0, %v668
      %v765 = vsel %vm733, 0.0, %v669
      %v766 = vsel %vm734, 0.0, %v670
      %v767 = vsel %vm735, 0.0, %v671
      %v768 = vsel %vm736, 0.0, %v672
      %v769 = vsel %vm737, 0.0, %v673
      %v770 = vsel %vm738, 0.0, %v674
      %v771 = vsel %vm739, 0.0, %v675
      %v772 = vsel %vm740, 0.0, %v676
      %v773 = vsel %vm741, 0.0, %v677
      %v774 = vsel %vm742, 0.0, %v678
      %v775 = vsel %vm743, 0.0, %v679
      %v776 = vsel %vm744, 0.0, %v680
      %v777 = vsel %vm745, 0.0, %v681
      %v778 = vsel %vm746, 0.0, %v682
      %v779 = vsel %vm747, 0.0, %v683
      %v780 = vsel %vm748, 0.0, %v684
      %v781 = vsel %vm749, 0.0, %v685
      %v782 = vsel %vm750, 0.0, %v686
      %v783 = vsel %vm751, 0.0, %v687
      %v784 = vsel %vm752, 0.0, %v688
      %v785 = vsel %vm753, 0.0, %v689
      %v786 = vsel %vm754, 0.0, %v690
      %v787 = vsel %vm755, 0.0, %v691
      %v788 = vsel %vm756, 0.0, %v692
      %v789 = vsel %vm757, 0.0, %v693
      %v790 = vsel %vm758, 0.0, %v694
      %v791 = vsel %vm759, 0.0, %v695
      %v792 = vsel %vm760, 0.0, %v696
      %v793 = vsel %vm761, 0.0, %v697
      %v794 = vsel %vm762, 0.0, %v698
      %vm827 = vcmask 1040384
      %v828 = vrot.slane %v763, 7
      %v829 = vrot.slane %v764, 7
      %v830 = vsel %vm827, %v828, %v829
      %v831 = vrot.slane %v765, 7
      %v832 = vsel %vm827, %v829, %v831
      %v833 = vrot.slane %v766, 7
      %v834 = vsel %vm827, %v831, %v833
      %v835 = vrot.slane %v767, 7
      %v836 = vsel %vm827, %v833, %v835
      %v837 = vrot.slane %v768, 7
      %v838 = vsel %vm827, %v835, %v837
      %v839 = vrot.slane %v769, 7
      %v840 = vsel %vm827, %v837, %v839
      %v841 = vrot.slane %v770, 7
      %v842 = vsel %vm827, %v839, %v841
      %v843 = vrot.slane %v771, 7
      %v844 = vsel %vm827, %v841, %v843
      %v845 = vrot.slane %v772, 7
      %v846 = vsel %vm827, %v843, %v845
      %v847 = vrot.slane %v773, 7
      %v848 = vsel %vm827, %v845, %v847
      %v849 = vrot.slane %v774, 7
      %v850 = vsel %vm827, %v847, %v849
      %v851 = vrot.slane %v775, 7
      %v852 = vsel %vm827, %v849, %v851
      %v853 = vrot.slane %v776, 7
      %v854 = vsel %vm827, %v851, %v853
      %v855 = vrot.slane %v777, 7
      %v856 = vsel %vm827, %v853, %v855
      %v857 = vrot.slane %v778, 7
      %v858 = vsel %vm827, %v855, %v857
      %v859 = vrot.slane %v779, 7
      %v860 = vsel %vm827, %v857, %v859
      %v861 = vrot.slane %v780, 7
      %v862 = vsel %vm827, %v859, %v861
      %v863 = vrot.slane %v781, 7
      %v864 = vsel %vm827, %v861, %v863
      %v865 = vrot.slane %v782, 7
      %v866 = vsel %vm827, %v863, %v865
      %v867 = vrot.slane %v783, 7
      %v868 = vsel %vm827, %v865, %v867
      %v869 = vrot.slane %v784, 7
      %v870 = vsel %vm827, %v867, %v869
      %v871 = vrot.slane %v785, 7
      %v872 = vsel %vm827, %v869, %v871
      %v873 = vrot.slane %v786, 7
      %v874 = vsel %vm827, %v871, %v873
      %v875 = vrot.slane %v787, 7
      %v876 = vsel %vm827, %v873, %v875
      %v877 = vrot.slane %v788, 7
      %v878 = vsel %vm827, %v875, %v877
      %v879 = vrot.slane %v789, 7
      %v880 = vsel %vm827, %v877, %v879
      %v881 = vrot.slane %v790, 7
      %v882 = vsel %vm827, %v879, %v881
      %v883 = vrot.slane %v791, 7
      %v884 = vsel %vm827, %v881, %v883
      %v885 = vrot.slane %v792, 7
      %v886 = vsel %vm827, %v883, %v885
      %v887 = vrot.slane %v793, 7
      %v888 = vsel %vm827, %v885, %v887
      %v889 = vrot.slane %v794, 7
      %v890 = vsel %vm827, %v887, %v889
      %vm924 = vcmask 523265
      %925 = vst.msk [vmem:[#allocation2 + $0x20] sm:$0xfe] %vm924, %v828
      %926 = vst.msk [vmem:[#allocation2 + $0x30] sm:$0xff] %vm653, %v830
      %927 = vst.msk [vmem:[#allocation2 + $0x40] sm:$0xff] %vm653, %v832
      %928 = vst.msk [vmem:[#allocation2 + $0x50] sm:$0xff] %vm653, %v834
      %929 = vst.msk [vmem:[#allocation2 + $0x60] sm:$0xff] %vm653, %v836
      %930 = vst.msk [vmem:[#allocation2 + $0x70] sm:$0xff] %vm653, %v838
      %931 = vst.msk [vmem:[#allocation2 + $0x80] sm:$0xff] %vm653, %v840
      %932 = vst.msk [vmem:[#allocation2 + $0x90] sm:$0xff] %vm653, %v842
      %933 = vst.msk [vmem:[#allocation2 + $0xa0] sm:$0xff] %vm653, %v844
      %934 = vst.msk [vmem:[#allocation2 + $0xb0] sm:$0xff] %vm653, %v846
      %935 = vst.msk [vmem:[#allocation2 + $0xc0] sm:$0xff] %vm653, %v848
      %936 = vst.msk [vmem:[#allocation2 + $0xd0] sm:$0xff] %vm653, %v850
      %937 = vst.msk [vmem:[#allocation2 + $0xe0] sm:$0xff] %vm653, %v852
      %938 = vst.msk [vmem:[#allocation2 + $0xf0] sm:$0xff] %vm653, %v854
      %939 = vst.msk [vmem:[#allocation2 + $0x100] sm:$0xff] %vm653, %v856
      %940 = vst.msk [vmem:[#allocation2 + $0x110] sm:$0xff] %vm653, %v858
      %941 = vst.msk [vmem:[#allocation2 + $0x120] sm:$0xff] %vm653, %v860
      %942 = vst.msk [vmem:[#allocation2 + $0x130] sm:$0xff] %vm653, %v862
      %943 = vst.msk [vmem:[#allocation2 + $0x140] sm:$0xff] %vm653, %v864
      %944 = vst.msk [vmem:[#allocation2 + $0x150] sm:$0xff] %vm653, %v866
      %945 = vst.msk [vmem:[#allocation2 + $0x160] sm:$0xff] %vm653, %v868
      %946 = vst.msk [vmem:[#allocation2 + $0x170] sm:$0xff] %vm653, %v870
      %947 = vst.msk [vmem:[#allocation2 + $0x180] sm:$0xff] %vm653, %v872
      %948 = vst.msk [vmem:[#allocation2 + $0x190] sm:$0xff] %vm653, %v874
      %949 = vst.msk [vmem:[#allocation2 + $0x1a0] sm:$0xff] %vm653, %v876
      %950 = vst.msk [vmem:[#allocation2 + $0x1b0] sm:$0xff] %vm653, %v878
      %951 = vst.msk [vmem:[#allocation2 + $0x1c0] sm:$0xff] %vm653, %v880
      %952 = vst.msk [vmem:[#allocation2 + $0x1d0] sm:$0xff] %vm653, %v882
      %953 = vst.msk [vmem:[#allocation2 + $0x1e0] sm:$0xff] %vm653, %v884
      %954 = vst.msk [vmem:[#allocation2 + $0x1f0] sm:$0xff] %vm653, %v886
      %955 = vst.msk [vmem:[#allocation2 + $0x200] sm:$0xff] %vm653, %v888
      %956 = vst.msk [vmem:[#allocation2 + $0x210] sm:$0xff] %vm653, %v890
      %957 = vst.msk [vmem:[#allocation2 + $0x220] sm:$0x1] %vm658, %v889
      %990 = vrot.lane.b32.xlu0 %v667, 64
      %v991 = vpop.permute.xlu0 %990
      %992 = vrot.lane.b32.xlu0 %v668, 64
      %v993 = vpop.permute.xlu0 %992
      %994 = vrot.lane.b32.xlu0 %v669, 64
      %v995 = vpop.permute.xlu0 %994
      %996 = vrot.lane.b32.xlu0 %v670, 64
      %v997 = vpop.permute.xlu0 %996
      %998 = vrot.lane.b32.xlu0 %v671, 64
      %v999 = vpop.permute.xlu0 %998
      %1000 = vrot.lane.b32.xlu0 %v672, 64
      %v1001 = vpop.permute.xlu0 %1000
      %1002 = vrot.lane.b32.xlu0 %v673, 64
      %v1003 = vpop.permute.xlu0 %1002
      %1004 = vrot.lane.b32.xlu0 %v674, 64
      %v1005 = vpop.permute.xlu0 %1004
      %1006 = vrot.lane.b32.xlu0 %v675, 64
      %v1007 = vpop.permute.xlu0 %1006
      %1008 = vrot.lane.b32.xlu0 %v676, 64
      %v1009 = vpop.permute.xlu0 %1008
      %1010 = vrot.lane.b32.xlu0 %v677, 64
      %v1011 = vpop.permute.xlu0 %1010
      %1012 = vrot.lane.b32.xlu0 %v678, 64
      %v1013 = vpop.permute.xlu0 %1012
      %1014 = vrot.lane.b32.xlu0 %v679, 64
      %v1015 = vpop.permute.xlu0 %1014
      %1016 = vrot.lane.b32.xlu0 %v680, 64
      %v1017 = vpop.permute.xlu0 %1016
      %1018 = vrot.lane.b32.xlu0 %v681, 64
      %v1019 = vpop.permute.xlu0 %1018
      %1020 = vrot.lane.b32.xlu0 %v682, 64
      %v1021 = vpop.permute.xlu0 %1020
      %1022 = vrot.lane.b32.xlu0 %v683, 64
      %v1023 = vpop.permute.xlu0 %1022
      %1024 = vrot.lane.b32.xlu0 %v684, 64
      %v1025 = vpop.permute.xlu0 %1024
      %1026 = vrot.lane.b32.xlu0 %v685, 64
      %v1027 = vpop.permute.xlu0 %1026
      %1028 = vrot.lane.b32.xlu0 %v686, 64
      %v1029 = vpop.permute.xlu0 %1028
      %1030 = vrot.lane.b32.xlu0 %v687, 64
      %v1031 = vpop.permute.xlu0 %1030
      %1032 = vrot.lane.b32.xlu0 %v688, 64
      %v1033 = vpop.permute.xlu0 %1032
      %1034 = vrot.lane.b32.xlu0 %v689, 64
      %v1035 = vpop.permute.xlu0 %1034
      %1036 = vrot.lane.b32.xlu0 %v690, 64
      %v1037 = vpop.permute.xlu0 %1036
      %1038 = vrot.lane.b32.xlu0 %v691, 64
      %v1039 = vpop.permute.xlu0 %1038
      %1040 = vrot.lane.b32.xlu0 %v692, 64
      %v1041 = vpop.permute.xlu0 %1040
      %1042 = vrot.lane.b32.xlu0 %v693, 64
      %v1043 = vpop.permute.xlu0 %1042
      %1044 = vrot.lane.b32.xlu0 %v694, 64
      %v1045 = vpop.permute.xlu0 %1044
      %1046 = vrot.lane.b32.xlu0 %v695, 64
      %v1047 = vpop.permute.xlu0 %1046
      %1048 = vrot.lane.b32.xlu0 %v696, 64
      %v1049 = vpop.permute.xlu0 %1048
      %1050 = vrot.lane.b32.xlu0 %v697, 64
      %v1051 = vpop.permute.xlu0 %1050
      %1052 = vrot.lane.b32.xlu0 %v698, 64
      %v1053 = vpop.permute.xlu0 %1052
      %vm1086 = vcmask 1048064
      %1087 = vst.msk [vmem:[#allocation2 + $0x20] sm:$0xff] %vm1086, %v991
      %1088 = vst.msk [vmem:[#allocation2 + $0x30] sm:$0xff] %vm1086, %v993
      %1089 = vst.msk [vmem:[#allocation2 + $0x40] sm:$0xff] %vm1086, %v995
      %1090 = vst.msk [vmem:[#allocation2 + $0x50] sm:$0xff] %vm1086, %v997
      %1091 = vst.msk [vmem:[#allocation2 + $0x60] sm:$0xff] %vm1086, %v999
      %1092 = vst.msk [vmem:[#allocation2 + $0x70] sm:$0xff] %vm1086, %v1001
      %1093 = vst.msk [vmem:[#allocation2 + $0x80] sm:$0xff] %vm1086, %v1003
      %1094 = vst.msk [vmem:[#allocation2 + $0x90] sm:$0xff] %vm1086, %v1005
      %1095 = vst.msk [vmem:[#allocation2 + $0xa0] sm:$0xff] %vm1086, %v1007
      %1096 = vst.msk [vmem:[#allocation2 + $0xb0] sm:$0xff] %vm1086, %v1009
      %1097 = vst.msk [vmem:[#allocation2 + $0xc0] sm:$0xff] %vm1086, %v1011
      %1098 = vst.msk [vmem:[#allocation2 + $0xd0] sm:$0xff] %vm1086, %v1013
      %1099 = vst.msk [vmem:[#allocation2 + $0xe0] sm:$0xff] %vm1086, %v1015
      %1100 = vst.msk [vmem:[#allocation2 + $0xf0] sm:$0xff] %vm1086, %v1017
      %1101 = vst.msk [vmem:[#allocation2 + $0x100] sm:$0xff] %vm1086, %v1019
      %1102 = vst.msk [vmem:[#allocation2 + $0x110] sm:$0xff] %vm1086, %v1021
      %1103 = vst.msk [vmem:[#allocation2 + $0x120] sm:$0xff] %vm1086, %v1023
      %1104 = vst.msk [vmem:[#allocation2 + $0x130] sm:$0xff] %vm1086, %v1025
      %1105 = vst.msk [vmem:[#allocation2 + $0x140] sm:$0xff] %vm1086, %v1027
      %1106 = vst.msk [vmem:[#allocation2 + $0x150] sm:$0xff] %vm1086, %v1029
      %1107 = vst.msk [vmem:[#allocation2 + $0x160] sm:$0xff] %vm1086, %v1031
      %1108 = vst.msk [vmem:[#allocation2 + $0x170] sm:$0xff] %vm1086, %v1033
      %1109 = vst.msk [vmem:[#allocation2 + $0x180] sm:$0xff] %vm1086, %v1035
      %1110 = vst.msk [vmem:[#allocation2 + $0x190] sm:$0xff] %vm1086, %v1037
      %1111 = vst.msk [vmem:[#allocation2 + $0x1a0] sm:$0xff] %vm1086, %v1039
      %1112 = vst.msk [vmem:[#allocation2 + $0x1b0] sm:$0xff] %vm1086, %v1041
      %1113 = vst.msk [vmem:[#allocation2 + $0x1c0] sm:$0xff] %vm1086, %v1043
      %1114 = vst.msk [vmem:[#allocation2 + $0x1d0] sm:$0xff] %vm1086, %v1045
      %1115 = vst.msk [vmem:[#allocation2 + $0x1e0] sm:$0xff] %vm1086, %v1047
      %1116 = vst.msk [vmem:[#allocation2 + $0x1f0] sm:$0xff] %vm1086, %v1049
      %1117 = vst.msk [vmem:[#allocation2 + $0x200] sm:$0xff] %vm1086, %v1051
      %1118 = vst.msk [vmem:[#allocation2 + $0x210] sm:$0xff] %vm1086, %v1053
      %v1119 = vsel %vm588, 1, 0
      %v1120 = vsel %vm589, 1, 0
      %v1121 = vsel %vm590, 1, 0
      %v1122 = vsel %vm591, 1, 0
      %v1123 = vsel %vm592, 1, 0
      %v1124 = vsel %vm593, 1, 0
      %v1125 = vsel %vm594, 1, 0
      %v1126 = vsel %vm595, 1, 0
      %v1127 = vsel %vm596, 1, 0
      %v1128 = vsel %vm597, 1, 0
      %v1129 = vsel %vm598, 1, 0
      %v1130 = vsel %vm599, 1, 0
      %v1131 = vsel %vm600, 1, 0
      %v1132 = vsel %vm601, 1, 0
      %v1133 = vsel %vm602, 1, 0
      %v1134 = vsel %vm603, 1, 0
      %v1135 = vsel %vm604, 1, 0
      %v1136 = vsel %vm605, 1, 0
      %v1137 = vsel %vm606, 1, 0
      %v1138 = vsel %vm607, 1, 0
      %v1139 = vsel %vm608, 1, 0
      %v1140 = vsel %vm609, 1, 0
      %v1141 = vsel %vm610, 1, 0
      %v1142 = vsel %vm611, 1, 0
      %v1143 = vsel %vm612, 1, 0
      %v1144 = vsel %vm613, 1, 0
      %v1145 = vsel %vm614, 1, 0
      %v1146 = vsel %vm615, 1, 0
      %v1147 = vsel %vm616, 1, 0
      %v1148 = vsel %vm617, 1, 0
      %v1149 = vsel %vm618, 1, 0
      %v1150 = vsel %vm619, 1, 0
      %vm1151 = vcmp.eq.s32.totalorder %v1119, 1
      %vm1152 = vcmp.eq.s32.totalorder %v1120, 1
      %vm1153 = vcmp.eq.s32.totalorder %v1121, 1
      %vm1154 = vcmp.eq.s32.totalorder %v1122, 1
      %vm1155 = vcmp.eq.s32.totalorder %v1123, 1
      %vm1156 = vcmp.eq.s32.totalorder %v1124, 1
      %vm1157 = vcmp.eq.s32.totalorder %v1125, 1
      %vm1158 = vcmp.eq.s32.totalorder %v1126, 1
      %vm1159 = vcmp.eq.s32.totalorder %v1127, 1
      %vm1160 = vcmp.eq.s32.totalorder %v1128, 1
      %vm1161 = vcmp.eq.s32.totalorder %v1129, 1
      %vm1162 = vcmp.eq.s32.totalorder %v1130, 1
      %vm1163 = vcmp.eq.s32.totalorder %v1131, 1
      %vm1164 = vcmp.eq.s32.totalorder %v1132, 1
      %vm1165 = vcmp.eq.s32.totalorder %v1133, 1
      %vm1166 = vcmp.eq.s32.totalorder %v1134, 1
      %vm1167 = vcmp.eq.s32.totalorder %v1135, 1
      %vm1168 = vcmp.eq.s32.totalorder %v1136, 1
      %vm1169 = vcmp.eq.s32.totalorder %v1137, 1
      %vm1170 = vcmp.eq.s32.totalorder %v1138, 1
      %vm1171 = vcmp.eq.s32.totalorder %v1139, 1
      %vm1172 = vcmp.eq.s32.totalorder %v1140, 1
      %vm1173 = vcmp.eq.s32.totalorder %v1141, 1
      %vm1174 = vcmp.eq.s32.totalorder %v1142, 1
      %vm1175 = vcmp.eq.s32.totalorder %v1143, 1
      %vm1176 = vcmp.eq.s32.totalorder %v1144, 1
      %vm1177 = vcmp.eq.s32.totalorder %v1145, 1
      %vm1178 = vcmp.eq.s32.totalorder %v1146, 1
      %vm1179 = vcmp.eq.s32.totalorder %v1147, 1
      %vm1180 = vcmp.eq.s32.totalorder %v1148, 1
      %vm1181 = vcmp.eq.s32.totalorder %v1149, 1
      %vm1182 = vcmp.eq.s32.totalorder %v1150, 1
      %v1183 = vsel %vm1151, 0.0, %v667
      %v1184 = vsel %vm1152, 0.0, %v668
      %v1185 = vsel %vm1153, 0.0, %v669
      %v1186 = vsel %vm1154, 0.0, %v670
      %v1187 = vsel %vm1155, 0.0, %v671
      %v1188 = vsel %vm1156, 0.0, %v672
      %v1189 = vsel %vm1157, 0.0, %v673
      %v1190 = vsel %vm1158, 0.0, %v674
      %v1191 = vsel %vm1159, 0.0, %v675
      %v1192 = vsel %vm1160, 0.0, %v676
      %v1193 = vsel %vm1161, 0.0, %v677
      %v1194 = vsel %vm1162, 0.0, %v678
      %v1195 = vsel %vm1163, 0.0, %v679
      %v1196 = vsel %vm1164, 0.0, %v680
      %v1197 = vsel %vm1165, 0.0, %v681
      %v1198 = vsel %vm1166, 0.0, %v682
      %v1199 = vsel %vm1167, 0.0, %v683
      %v1200 = vsel %vm1168, 0.0, %v684
      %v1201 = vsel %vm1169, 0.0, %v685
      %v1202 = vsel %vm1170, 0.0, %v686
      %v1203 = vsel %vm1171, 0.0, %v687
      %v1204 = vsel %vm1172, 0.0, %v688
      %v1205 = vsel %vm1173, 0.0, %v689
      %v1206 = vsel %vm1174, 0.0, %v690
      %v1207 = vsel %vm1175, 0.0, %v691
      %v1208 = vsel %vm1176, 0.0, %v692
      %v1209 = vsel %vm1177, 0.0, %v693
      %v1210 = vsel %vm1178, 0.0, %v694
      %v1211 = vsel %vm1179, 0.0, %v695
      %v1212 = vsel %vm1180, 0.0, %v696
      %v1213 = vsel %vm1181, 0.0, %v697
      %v1214 = vsel %vm1182, 0.0, %v698
      %vm1247 = vcmask 1046528
      %v1248 = vrot.slane %v1183, 1
      %v1249 = vrot.slane %v1184, 1
      %v1250 = vsel %vm1247, %v1248, %v1249
      %v1251 = vrot.slane %v1185, 1
      %v1252 = vsel %vm1247, %v1249, %v1251
      %v1253 = vrot.slane %v1186, 1
      %v1254 = vsel %vm1247, %v1251, %v1253
      %v1255 = vrot.slane %v1187, 1
      %v1256 = vsel %vm1247, %v1253, %v1255
      %v1257 = vrot.slane %v1188, 1
      %v1258 = vsel %vm1247, %v1255, %v1257
      %v1259 = vrot.slane %v1189, 1
      %v1260 = vsel %vm1247, %v1257, %v1259
      %v1261 = vrot.slane %v1190, 1
      %v1262 = vsel %vm1247, %v1259, %v1261
      %v1263 = vrot.slane %v1191, 1
      %v1264 = vsel %vm1247, %v1261, %v1263
      %v1265 = vrot.slane %v1192, 1
      %v1266 = vsel %vm1247, %v1263, %v1265
      %v1267 = vrot.slane %v1193, 1
      %v1268 = vsel %vm1247, %v1265, %v1267
      %v1269 = vrot.slane %v1194, 1
      %v1270 = vsel %vm1247, %v1267, %v1269
      %v1271 = vrot.slane %v1195, 1
      %v1272 = vsel %vm1247, %v1269, %v1271
      %v1273 = vrot.slane %v1196, 1
      %v1274 = vsel %vm1247, %v1271, %v1273
      %v1275 = vrot.slane %v1197, 1
      %v1276 = vsel %vm1247, %v1273, %v1275
      %v1277 = vrot.slane %v1198, 1
      %v1278 = vsel %vm1247, %v1275, %v1277
      %v1279 = vrot.slane %v1199, 1
      %v1280 = vsel %vm1247, %v1277, %v1279
      %v1281 = vrot.slane %v1200, 1
      %v1282 = vsel %vm1247, %v1279, %v1281
      %v1283 = vrot.slane %v1201, 1
      %v1284 = vsel %vm1247, %v1281, %v1283
      %v1285 = vrot.slane %v1202, 1
      %v1286 = vsel %vm1247, %v1283, %v1285
      %v1287 = vrot.slane %v1203, 1
      %v1288 = vsel %vm1247, %v1285, %v1287
      %v1289 = vrot.slane %v1204, 1
      %v1290 = vsel %vm1247, %v1287, %v1289
      %v1291 = vrot.slane %v1205, 1
      %v1292 = vsel %vm1247, %v1289, %v1291
      %v1293 = vrot.slane %v1206, 1
      %v1294 = vsel %vm1247, %v1291, %v1293
      %v1295 = vrot.slane %v1207, 1
      %v1296 = vsel %vm1247, %v1293, %v1295
      %v1297 = vrot.slane %v1208, 1
      %v1298 = vsel %vm1247, %v1295, %v1297
      %v1299 = vrot.slane %v1209, 1
      %v1300 = vsel %vm1247, %v1297, %v1299
      %v1301 = vrot.slane %v1210, 1
      %v1302 = vsel %vm1247, %v1299, %v1301
      %v1303 = vrot.slane %v1211, 1
      %v1304 = vsel %vm1247, %v1301, %v1303
      %v1305 = vrot.slane %v1212, 1
      %v1306 = vsel %vm1247, %v1303, %v1305
      %v1307 = vrot.slane %v1213, 1
      %v1308 = vsel %vm1247, %v1305, %v1307
      %v1309 = vrot.slane %v1214, 1
      %v1310 = vsel %vm1247, %v1307, %v1309
      %1344 = vst.msk [vmem:[#allocation2 + $0x18] sm:$0x80] %vm661, %v1248
      %1345 = vst.msk [vmem:[#allocation2 + $0x28] sm:$0xff] %vm653, %v1250
      %1346 = vst.msk [vmem:[#allocation2 + $0x38] sm:$0xff] %vm653, %v1252
      %1347 = vst.msk [vmem:[#allocation2 + $0x48] sm:$0xff] %vm653, %v1254
      %1348 = vst.msk [vmem:[#allocation2 + $0x58] sm:$0xff] %vm653, %v1256
      %1349 = vst.msk [vmem:[#allocation2 + $0x68] sm:$0xff] %vm653, %v1258
      %1350 = vst.msk [vmem:[#allocation2 + $0x78] sm:$0xff] %vm653, %v1260
      %1351 = vst.msk [vmem:[#allocation2 + $0x88] sm:$0xff] %vm653, %v1262
      %1352 = vst.msk [vmem:[#allocation2 + $0x98] sm:$0xff] %vm653, %v1264
      %1353 = vst.msk [vmem:[#allocation2 + $0xa8] sm:$0xff] %vm653, %v1266
      %1354 = vst.msk [vmem:[#allocation2 + $0xb8] sm:$0xff] %vm653, %v1268
      %1355 = vst.msk [vmem:[#allocation2 + $0xc8] sm:$0xff] %vm653, %v1270
      %1356 = vst.msk [vmem:[#allocation2 + $0xd8] sm:$0xff] %vm653, %v1272
      %1357 = vst.msk [vmem:[#allocation2 + $0xe8] sm:$0xff] %vm653, %v1274
      %1358 = vst.msk [vmem:[#allocation2 + $0xf8] sm:$0xff] %vm653, %v1276
      %1359 = vst.msk [vmem:[#allocation2 + $0x108] sm:$0xff] %vm653, %v1278
      %1360 = vst.msk [vmem:[#allocation2 + $0x118] sm:$0xff] %vm653, %v1280
      %1361 = vst.msk [vmem:[#allocation2 + $0x128] sm:$0xff] %vm653, %v1282
      %1362 = vst.msk [vmem:[#allocation2 + $0x138] sm:$0xff] %vm653, %v1284
      %1363 = vst.msk [vmem:[#allocation2 + $0x148] sm:$0xff] %vm653, %v1286
      %1364 = vst.msk [vmem:[#allocation2 + $0x158] sm:$0xff] %vm653, %v1288
      %1365 = vst.msk [vmem:[#allocation2 + $0x168] sm:$0xff] %vm653, %v1290
      %1366 = vst.msk [vmem:[#allocation2 + $0x178] sm:$0xff] %vm653, %v1292
      %1367 = vst.msk [vmem:[#allocation2 + $0x188] sm:$0xff] %vm653, %v1294
      %1368 = vst.msk [vmem:[#allocation2 + $0x198] sm:$0xff] %vm653, %v1296
      %1369 = vst.msk [vmem:[#allocation2 + $0x1a8] sm:$0xff] %vm653, %v1298
      %1370 = vst.msk [vmem:[#allocation2 + $0x1b8] sm:$0xff] %vm653, %v1300
      %1371 = vst.msk [vmem:[#allocation2 + $0x1c8] sm:$0xff] %vm653, %v1302
      %1372 = vst.msk [vmem:[#allocation2 + $0x1d8] sm:$0xff] %vm653, %v1304
      %1373 = vst.msk [vmem:[#allocation2 + $0x1e8] sm:$0xff] %vm653, %v1306
      %1374 = vst.msk [vmem:[#allocation2 + $0x1f8] sm:$0xff] %vm653, %v1308
      %1375 = vst.msk [vmem:[#allocation2 + $0x208] sm:$0xff] %vm653, %v1310
      %vm1376 = vcmask 522240
      %1377 = vst.msk [vmem:[#allocation2 + $0x218] sm:$0x7f] %vm1376, %v1309
      %v1378 = vld [vmem:[#allocation2] sm:$0xff]
      %v1379 = vld [vmem:[#allocation2 + $0x8] sm:$0xff]
      %v1380 = vld [vmem:[#allocation2 + $0x10] sm:$0xff]
      %v1381 = vld [vmem:[#allocation2 + $0x18] sm:$0xff]
      %v1382 = vld [vmem:[#allocation2 + $0x20] sm:$0xff]
      %v1383 = vld [vmem:[#allocation2 + $0x28] sm:$0xff]
      %v1384 = vld [vmem:[#allocation2 + $0x30] sm:$0xff]
      %v1385 = vld [vmem:[#allocation2 + $0x38] sm:$0xff]
      %v1386 = vld [vmem:[#allocation2 + $0x40] sm:$0xff]
      %v1387 = vld [vmem:[#allocation2 + $0x48] sm:$0xff]
      %v1388 = vld [vmem:[#allocation2 + $0x50] sm:$0xff]
      %v1389 = vld [vmem:[#allocation2 + $0x58] sm:$0xff]
      %v1390 = vld [vmem:[#allocation2 + $0x60] sm:$0xff]
      %v1391 = vld [vmem:[#allocation2 + $0x68] sm:$0xff]
      %v1392 = vld [vmem:[#allocation2 + $0x70] sm:$0xff]
      %v1393 = vld [vmem:[#allocation2 + $0x78] sm:$0xff]
      %v1394 = vld [vmem:[#allocation2 + $0x80] sm:$0xff]
      %v1395 = vld [vmem:[#allocation2 + $0x88] sm:$0xff]
      %v1396 = vld [vmem:[#allocation2 + $0x90] sm:$0xff]
      %v1397 = vld [vmem:[#allocation2 + $0x98] sm:$0xff]
      %v1398 = vld [vmem:[#allocation2 + $0xa0] sm:$0xff]
      %v1399 = vld [vmem:[#allocation2 + $0xa8] sm:$0xff]
      %v1400 = vld [vmem:[#allocation2 + $0xb0] sm:$0xff]
      %v1401 = vld [vmem:[#allocation2 + $0xb8] sm:$0xff]
      %v1402 = vld [vmem:[#allocation2 + $0xc0] sm:$0xff]
      %v1403 = vld [vmem:[#allocation2 + $0xc8] sm:$0xff]
      %v1404 = vld [vmem:[#allocation2 + $0xd0] sm:$0xff]
      %v1405 = vld [vmem:[#allocation2 + $0xd8] sm:$0xff]
      %v1406 = vld [vmem:[#allocation2 + $0xe0] sm:$0xff]
      %v1407 = vld [vmem:[#allocation2 + $0xe8] sm:$0xff]
      %v1408 = vld [vmem:[#allocation2 + $0xf0] sm:$0xff]
      %v1409 = vld [vmem:[#allocation2 + $0xf8] sm:$0xff]
      %v1410 = vld [vmem:[#allocation2 + $0x100] sm:$0xff]
      %v1411 = vld [vmem:[#allocation2 + $0x108] sm:$0xff]
      %v1412 = vld [vmem:[#allocation2 + $0x110] sm:$0xff]
      %v1413 = vld [vmem:[#allocation2 + $0x118] sm:$0xff]
      %v1414 = vld [vmem:[#allocation2 + $0x120] sm:$0xff]
      %v1415 = vld [vmem:[#allocation2 + $0x128] sm:$0xff]
      %v1416 = vld [vmem:[#allocation2 + $0x130] sm:$0xff]
      %v1417 = vld [vmem:[#allocation2 + $0x138] sm:$0xff]
      %v1418 = vld [vmem:[#allocation2 + $0x140] sm:$0xff]
      %v1419 = vld [vmem:[#allocation2 + $0x148] sm:$0xff]
      %v1420 = vld [vmem:[#allocation2 + $0x150] sm:$0xff]
      %v1421 = vld [vmem:[#allocation2 + $0x158] sm:$0xff]
      %v1422 = vld [vmem:[#allocation2 + $0x160] sm:$0xff]
      %v1423 = vld [vmem:[#allocation2 + $0x168] sm:$0xff]
      %v1424 = vld [vmem:[#allocation2 + $0x170] sm:$0xff]
      %v1425 = vld [vmem:[#allocation2 + $0x178] sm:$0xff]
      %v1426 = vld [vmem:[#allocation2 + $0x180] sm:$0xff]
      %v1427 = vld [vmem:[#allocation2 + $0x188] sm:$0xff]
      %v1428 = vld [vmem:[#allocation2 + $0x190] sm:$0xff]
      %v1429 = vld [vmem:[#allocation2 + $0x198] sm:$0xff]
      %v1430 = vld [vmem:[#allocation2 + $0x1a0] sm:$0xff]
      %v1431 = vld [vmem:[#allocation2 + $0x1a8] sm:$0xff]
      %v1432 = vld [vmem:[#allocation2 + $0x1b0] sm:$0xff]
      %v1433 = vld [vmem:[#allocation2 + $0x1b8] sm:$0xff]
      %v1434 = vld [vmem:[#allocation2 + $0x1c0] sm:$0xff]
      %v1435 = vld [vmem:[#allocation2 + $0x1c8] sm:$0xff]
      %v1436 = vld [vmem:[#allocation2 + $0x1d0] sm:$0xff]
      %v1437 = vld [vmem:[#allocation2 + $0x1d8] sm:$0xff]
      %v1438 = vld [vmem:[#allocation2 + $0x1e0] sm:$0xff]
      %v1439 = vld [vmem:[#allocation2 + $0x1e8] sm:$0xff]
      %v1440 = vld [vmem:[#allocation2 + $0x1f0] sm:$0xff]
      %v1441 = vld [vmem:[#allocation2 + $0x1f8] sm:$0xff]
      %v1442 = vld [vmem:[%s1] sm:$0xff]
      %v1443 = vld [vmem:[%s1 + $0x8] sm:$0xff]
      %v1444 = vld [vmem:[%s1 + $0x10] sm:$0xff]
      %v1445 = vld [vmem:[%s1 + $0x18] sm:$0xff]
      %v1446 = vld [vmem:[%s1 + $0x20] sm:$0xff]
      %v1447 = vld [vmem:[%s1 + $0x28] sm:$0xff]
      %v1448 = vld [vmem:[%s1 + $0x30] sm:$0xff]
      %v1449 = vld [vmem:[%s1 + $0x38] sm:$0xff]
      %v1450 = vld [vmem:[%s1 + $0x40] sm:$0xff]
      %v1451 = vld [vmem:[%s1 + $0x48] sm:$0xff]
      %v1452 = vld [vmem:[%s1 + $0x50] sm:$0xff]
      %v1453 = vld [vmem:[%s1 + $0x58] sm:$0xff]
      %v1454 = vld [vmem:[%s1 + $0x60] sm:$0xff]
      %v1455 = vld [vmem:[%s1 + $0x68] sm:$0xff]
      %v1456 = vld [vmem:[%s1 + $0x70] sm:$0xff]
      %v1457 = vld [vmem:[%s1 + $0x78] sm:$0xff]
      %v1458 = vld [vmem:[%s1 + $0x80] sm:$0xff]
      %v1459 = vld [vmem:[%s1 + $0x88] sm:$0xff]
      %v1460 = vld [vmem:[%s1 + $0x90] sm:$0xff]
      %v1461 = vld [vmem:[%s1 + $0x98] sm:$0xff]
      %v1462 = vld [vmem:[%s1 + $0xa0] sm:$0xff]
      %v1463 = vld [vmem:[%s1 + $0xa8] sm:$0xff]
      %v1464 = vld [vmem:[%s1 + $0xb0] sm:$0xff]
      %v1465 = vld [vmem:[%s1 + $0xb8] sm:$0xff]
      %v1466 = vld [vmem:[#allocation2 + $0x200] sm:$0xff]
      %v1467 = vld [vmem:[#allocation2 + $0x208] sm:$0xff]
      %v1468 = vld [vmem:[#allocation2 + $0x210] sm:$0xff]
      %v1469 = vld [vmem:[#allocation2 + $0x218] sm:$0xff]
      %s1470 = scalar_lea.vmem %s1, 192
      %v1471 = vld [vmem:[%s1470] sm:$0xff]
      %v1472 = vld [vmem:[%s1470 + $0x8] sm:$0xff]
      %v1473 = vld [vmem:[%s1470 + $0x10] sm:$0xff]
      %v1474 = vld [vmem:[%s1470 + $0x18] sm:$0xff]
      %v1475 = vld [vmem:[%s1470 + $0x20] sm:$0xff]
      %v1476 = vld [vmem:[%s1470 + $0x28] sm:$0xff]
      %v1477 = vld [vmem:[%s1470 + $0x30] sm:$0xff]
      %v1478 = vld [vmem:[%s1470 + $0x38] sm:$0xff]
      %v1479 = vld [vmem:[%s1470 + $0x40] sm:$0xff]
      %v1480 = vld [vmem:[%s1470 + $0x48] sm:$0xff]
      %v1481 = vld [vmem:[%s1470 + $0x50] sm:$0xff]
      %v1482 = vld [vmem:[%s1470 + $0x58] sm:$0xff]
      %v1483 = vld [vmem:[%s1470 + $0x60] sm:$0xff]
      %v1484 = vld [vmem:[%s1470 + $0x68] sm:$0xff]
      %v1485 = vld [vmem:[%s1470 + $0x70] sm:$0xff]
      %v1486 = vld [vmem:[%s1470 + $0x78] sm:$0xff]
      %v1487 = vld [vmem:[%s1470 + $0x80] sm:$0xff]
      %v1488 = vld [vmem:[%s1470 + $0x88] sm:$0xff]
      %v1489 = vld [vmem:[%s1470 + $0x90] sm:$0xff]
      %v1490 = vld [vmem:[%s1470 + $0x98] sm:$0xff]
      %v1491 = vld [vmem:[%s1470 + $0xa0] sm:$0xff]
      %v1492 = vld [vmem:[%s1470 + $0xa8] sm:$0xff]
      %v1493 = vld [vmem:[%s1470 + $0xb0] sm:$0xff]
      %v1494 = vld [vmem:[%s1470 + $0xb8] sm:$0xff]
      %v1496 = vsel %vm653, %v1383, 0
      %v1499 = vsel %vm653, %v1385, 0
      %v1502 = vsel %vm653, %v1387, 0
      %v1505 = vsel %vm653, %v1389, 0
      %v1508 = vsel %vm653, %v1391, 0
      %v1511 = vsel %vm653, %v1393, 0
      %v1514 = vsel %vm653, %v1395, 0
      %v1517 = vsel %vm653, %v1397, 0
      %v1520 = vsel %vm653, %v1399, 0
      %v1523 = vsel %vm653, %v1401, 0
      %v1526 = vsel %vm653, %v1403, 0
      %v1529 = vsel %vm653, %v1405, 0
      %v1532 = vsel %vm653, %v1407, 0
      %v1535 = vsel %vm653, %v1409, 0
      %v1538 = vsel %vm653, %v1411, 0
      %v1541 = vsel %vm653, %v1413, 0
      %v1544 = vsel %vm653, %v1415, 0
      %v1547 = vsel %vm653, %v1417, 0
      %v1550 = vsel %vm653, %v1419, 0
      %v1553 = vsel %vm653, %v1421, 0
      %v1556 = vsel %vm653, %v1423, 0
      %v1559 = vsel %vm653, %v1425, 0
      %v1562 = vsel %vm653, %v1427, 0
      %v1565 = vsel %vm653, %v1429, 0
      %v1568 = vsel %vm653, %v1431, 0
      %v1571 = vsel %vm653, %v1433, 0
      %v1574 = vsel %vm653, %v1435, 0
      %v1577 = vsel %vm653, %v1437, 0
      %v1580 = vsel %vm653, %v1439, 0
      %v1583 = vsel %vm653, %v1441, 0
      %v1586 = vsel %vm653, %v1467, 0
      %v1589 = vsel %vm653, %v1469, 0
      %1591 = vmatprep.subr.mxu0 0.0
      %1592 = vmatpush1.msra.mxu0 %v1471
      %1593 = vmatprep.subr.mxu0 0.0
      %1594 = vmatpush1.msra.mxu0 %v1472
      %1595 = vmatprep.subr.mxu0 0.0
      %1596 = vmatpush1.msra.mxu0 %v1473
      %1597 = vmatprep.subr.mxu0 0.0
      %1598 = vmatpush1.msra.mxu0 %v1474
      %1599 = vmatprep.subr.mxu0 0.0
      %1600 = vmatpush1.msra.mxu0 %v1475
      %1601 = vmatprep.subr.mxu0 0.0
      %1602 = vmatpush1.msra.mxu0 %v1476
      %1603 = vmatprep.subr.mxu0 0.0
      %1604 = vmatpush1.msra.mxu0 %v1477
      %1605 = vmatprep.subr.mxu0 0.0
      %1606 = vmatpush1.msra.mxu0 %v1478
      %1607 = vmatprep.subr.mxu0 0.0
      %1608 = vmatpush1.msra.mxu0 %v1479
      %1609 = vmatprep.subr.mxu0 0.0
      %1610 = vmatpush1.msra.mxu0 %v1480
      %1611 = vmatprep.subr.mxu0 0.0
      %1612 = vmatpush1.msra.mxu0 %v1481
      %1613 = vmatprep.subr.mxu0 0.0
      %1614 = vmatpush1.msra.mxu0 %v1482
      %1615 = vmatprep.subr.mxu0 0.0
      %1616 = vmatpush1.msra.mxu0 %v1483
      %1617 = vmatprep.subr.mxu0 0.0
      %1618 = vmatpush1.msra.mxu0 %v1484
      %1619 = vmatprep.subr.mxu0 0.0
      %1620 = vmatpush1.msra.mxu0 %v1485
      %1621 = vmatprep.subr.mxu0 0.0
      %1622 = vmatpush1.msra.mxu0 %v1486
      %1623 = vmatprep.subr.mxu0 0.0
      %1624 = vmatpush1.msra.mxu0 %v1487
      %1625 = vmatprep.subr.mxu0 0.0
      %1626 = vmatpush1.msra.mxu0 %v1488
      %1627 = vmatprep.subr.mxu0 0.0
      %1628 = vmatpush1.msra.mxu0 %v1489
      %1629 = vmatprep.subr.mxu0 0.0
      %1630 = vmatpush1.msra.mxu0 %v1490
      %1631 = vmatprep.subr.mxu0 0.0
      %1632 = vmatpush1.msra.mxu0 %v1491
      %1633 = vmatprep.subr.mxu0 0.0
      %1634 = vmatpush1.msra.mxu0 %v1492
      %1635 = vmatprep.subr.mxu0 0.0
      %1636 = vmatpush1.msra.mxu0 %v1493
      %1637 = vmatprep.subr.mxu0 0.0
      %1638 = vmatpush1.msra.mxu0 %v1494
      %1639 = vmatprep.subr.mxu0 0.0
      %1640 = vmatpush1.msra.mxu0 0.0
      %1641 = vmatprep.subr.mxu0 0.0
      %1642 = vmatpush1.msra.mxu0 0.0
      %1643 = vmatprep.subr.mxu0 0.0
      %1644 = vmatpush1.msra.mxu0 0.0
      %1645 = vmatprep.subr.mxu0 0.0
      %1646 = vmatpush1.msra.mxu0 0.0
      %1647 = vmatprep.subr.mxu0 0.0
      %1648 = vmatpush1.msra.mxu0 0.0
      %1649 = vmatprep.subr.mxu0 0.0
      %1650 = vmatpush1.msra.mxu0 0.0
      %1651 = vmatprep.subr.mxu0 0.0
      %1652 = vmatpush1.msra.mxu0 0.0
      %1653 = vmatprep.subr.mxu0 0.0
      %1654 = vmatpush1.msra.mxu0 0.0
      %1655 = vmatprep.mubr.f32.mxu0 %v1496
      %1656 = vmatmul.mubr.f32.gmra.mrb[0].mxu0 %v1382
      %v1657 = vpop.f32.mrb[0].mxu0
      %v1658 = vadd.f32 0.0, %v1657
      %v1659 = vpop.f32.mrb[0].mxu0
      %1660 = vmatprep.mubr.f32.mxu0 %v1499
      %1661 = vmatmul.mubr.f32.gmra.mrb[0].mxu0 %v1384
      %v1662 = vpop.f32.mrb[0].mxu0
      %v1663 = vadd.f32 0.0, %v1662
      %v1664 = vpop.f32.mrb[0].mxu0
      %1665 = vmatprep.mubr.f32.mxu0 %v1502
      %1666 = vmatmul.mubr.f32.gmra.mrb[0].mxu0 %v1386
      %v1667 = vpop.f32.mrb[0].mxu0
      %v1668 = vadd.f32 0.0, %v1667
      %v1669 = vpop.f32.mrb[0].mxu0
      %1670 = vmatprep.mubr.f32.mxu0 %v1505
      %1671 = vmatmul.mubr.f32.gmra.mrb[0].mxu0 %v1388
      %v1672 = vpop.f32.mrb[0].mxu0
      %v1673 = vadd.f32 0.0, %v1672
      %v1674 = vpop.f32.mrb[0].mxu0
      %1675 = vmatprep.mubr.f32.mxu0 %v1508
      %1676 = vmatmul.mubr.f32.gmra.mrb[0].mxu0 %v1390
      %v1677 = vpop.f32.mrb[0].mxu0
      %v1678 = vadd.f32 0.0, %v1677
      %v1679 = vpop.f32.mrb[0].mxu0
      %1680 = vmatprep.mubr.f32.mxu0 %v1511
      %1681 = vmatmul.mubr.f32.gmra.mrb[0].mxu0 %v1392
      %v1682 = vpop.f32.mrb[0].mxu0
      %v1683 = vadd.f32 0.0, %v1682
      %v1684 = vpop.f32.mrb[0].mxu0
      %1685 = vmatprep.mubr.f32.mxu0 %v1514
      %1686 = vmatmul.mubr.f32.gmra.mrb[0].mxu0 %v1394
      %v1687 = vpop.f32.mrb[0].mxu0
      %v1688 = vadd.f32 0.0, %v1687
      %v1689 = vpop.f32.mrb[0].mxu0
      %1690 = vmatprep.mubr.f32.mxu0 %v1517
      %1691 = vmatmul.mubr.f32.gmra.mrb[0].mxu0 %v1396
      %v1692 = vpop.f32.mrb[0].mxu0
      %v1693 = vadd.f32 0.0, %v1692
      %v1694 = vpop.f32.mrb[0].mxu0
      %1695 = vmatprep.mubr.f32.mxu0 %v1520
      %1696 = vmatmul.mubr.f32.gmra.mrb[0].mxu0 %v1398
      %v1697 = vpop.f32.mrb[0].mxu0
      %v1698 = vadd.f32 0.0, %v1697
      %v1699 = vpop.f32.mrb[0].mxu0
      %1700 = vmatprep.mubr.f32.mxu0 %v1523
      %1701 = vmatmul.mubr.f32.gmra.mrb[0].mxu0 %v1400
      %v1702 = vpop.f32.mrb[0].mxu0
      %v1703 = vadd.f32 0.0, %v1702
      %v1704 = vpop.f32.mrb[0].mxu0
      %1705 = vmatprep.mubr.f32.mxu0 %v1526
      %1706 = vmatmul.mubr.f32.gmra.mrb[0].mxu0 %v1402
      %v1707 = vpop.f32.mrb[0].mxu0
      %v1708 = vadd.f32 0.0, %v1707
      %v1709 = vpop.f32.mrb[0].mxu0
      %1710 = vmatprep.mubr.f32.mxu0 %v1529
      %1711 = vmatmul.mubr.f32.gmra.mrb[0].mxu0 %v1404
      %v1712 = vpop.f32.mrb[0].mxu0
      %v1713 = vadd.f32 0.0, %v1712
      %v1714 = vpop.f32.mrb[0].mxu0
      %1715 = vmatprep.mubr.f32.mxu0 %v1532
      %1716 = vmatmul.mubr.f32.gmra.mrb[0].mxu0 %v1406
      %v1717 = vpop.f32.mrb[0].mxu0
      %v1718 = vadd.f32 0.0, %v1717
      %v1719 = vpop.f32.mrb[0].mxu0
      %1720 = vmatprep.mubr.f32.mxu0 %v1535
      %1721 = vmatmul.mubr.f32.gmra.mrb[0].mxu0 %v1408
      %v1722 = vpop.f32.mrb[0].mxu0
      %v1723 = vadd.f32 0.0, %v1722
      %v1724 = vpop.f32.mrb[0].mxu0
      %1725 = vmatprep.mubr.f32.mxu0 %v1538
      %1726 = vmatmul.mubr.f32.gmra.mrb[0].mxu0 %v1410
      %v1727 = vpop.f32.mrb[0].mxu0
      %v1728 = vadd.f32 0.0, %v1727
      %v1729 = vpop.f32.mrb[0].mxu0
      %1730 = vmatprep.mubr.f32.mxu0 %v1541
      %1731 = vmatmul.mubr.f32.gmra.mrb[0].mxu0 %v1412
      %v1732 = vpop.f32.mrb[0].mxu0
      %v1733 = vadd.f32 0.0, %v1732
      %v1734 = vpop.f32.mrb[0].mxu0
      %1735 = vmatprep.mubr.f32.mxu0 %v1544
      %1736 = vmatmul.mubr.f32.gmra.mrb[0].mxu0 %v1414
      %v1737 = vpop.f32.mrb[0].mxu0
      %v1738 = vadd.f32 0.0, %v1737
      %v1739 = vpop.f32.mrb[0].mxu0
      %1740 = vmatprep.mubr.f32.mxu0 %v1547
      %1741 = vmatmul.mubr.f32.gmra.mrb[0].mxu0 %v1416
      %v1742 = vpop.f32.mrb[0].mxu0
      %v1743 = vadd.f32 0.0, %v1742
      %v1744 = vpop.f32.mrb[0].mxu0
      %1745 = vmatprep.mubr.f32.mxu0 %v1550
      %1746 = vmatmul.mubr.f32.gmra.mrb[0].mxu0 %v1418
      %v1747 = vpop.f32.mrb[0].mxu0
      %v1748 = vadd.f32 0.0, %v1747
      %v1749 = vpop.f32.mrb[0].mxu0
      %1750 = vmatprep.mubr.f32.mxu0 %v1553
      %1751 = vmatmul.mubr.f32.gmra.mrb[0].mxu0 %v1420
      %v1752 = vpop.f32.mrb[0].mxu0
      %v1753 = vadd.f32 0.0, %v1752
      %v1754 = vpop.f32.mrb[0].mxu0
      %1755 = vmatprep.mubr.f32.mxu0 %v1556
      %1756 = vmatmul.mubr.f32.gmra.mrb[0].mxu0 %v1422
      %v1757 = vpop.f32.mrb[0].mxu0
      %v1758 = vadd.f32 0.0, %v1757
      %v1759 = vpop.f32.mrb[0].mxu0
      %1760 = vmatprep.mubr.f32.mxu0 %v1559
      %1761 = vmatmul.mubr.f32.gmra.mrb[0].mxu0 %v1424
      %v1762 = vpop.f32.mrb[0].mxu0
      %v1763 = vadd.f32 0.0, %v1762
      %v1764 = vpop.f32.mrb[0].mxu0
      %1765 = vmatprep.mubr.f32.mxu0 %v1562
      %1766 = vmatmul.mubr.f32.gmra.mrb[0].mxu0 %v1426
      %v1767 = vpop.f32.mrb[0].mxu0
      %v1768 = vadd.f32 0.0, %v1767
      %v1769 = vpop.f32.mrb[0].mxu0
      %1770 = vmatprep.mubr.f32.mxu0 %v1565
      %1771 = vmatmul.mubr.f32.gmra.mrb[0].mxu0 %v1428
      %v1772 = vpop.f32.mrb[0].mxu0
      %v1773 = vadd.f32 0.0, %v1772
      %v1774 = vpop.f32.mrb[0].mxu0
      %1775 = vmatprep.mubr.f32.mxu0 %v1568
      %1776 = vmatmul.mubr.f32.gmra.mrb[0].mxu0 %v1430
      %v1777 = vpop.f32.mrb[0].mxu0
      %v1778 = vadd.f32 0.0, %v1777
      %v1779 = vpop.f32.mrb[0].mxu0
      %1780 = vmatprep.mubr.f32.mxu0 %v1571
      %1781 = vmatmul.mubr.f32.gmra.mrb[0].mxu0 %v1432
      %v1782 = vpop.f32.mrb[0].mxu0
      %v1783 = vadd.f32 0.0, %v1782
      %v1784 = vpop.f32.mrb[0].mxu0
      %1785 = vmatprep.mubr.f32.mxu0 %v1574
      %1786 = vmatmul.mubr.f32.gmra.mrb[0].mxu0 %v1434
      %v1787 = vpop.f32.mrb[0].mxu0
      %v1788 = vadd.f32 0.0, %v1787
      %v1789 = vpop.f32.mrb[0].mxu0
      %1790 = vmatprep.mubr.f32.mxu0 %v1577
      %1791 = vmatmul.mubr.f32.gmra.mrb[0].mxu0 %v1436
      %v1792 = vpop.f32.mrb[0].mxu0
      %v1793 = vadd.f32 0.0, %v1792
      %v1794 = vpop.f32.mrb[0].mxu0
      %1795 = vmatprep.mubr.f32.mxu0 %v1580
      %1796 = vmatmul.mubr.f32.gmra.mrb[0].mxu0 %v1438
      %v1797 = vpop.f32.mrb[0].mxu0
      %v1798 = vadd.f32 0.0, %v1797
      %v1799 = vpop.f32.mrb[0].mxu0
      %1800 = vmatprep.mubr.f32.mxu0 %v1583
      %1801 = vmatmul.mubr.f32.gmra.mrb[0].mxu0 %v1440
      %v1802 = vpop.f32.mrb[0].mxu0
      %v1803 = vadd.f32 0.0, %v1802
      %v1804 = vpop.f32.mrb[0].mxu0
      %1805 = vmatprep.mubr.f32.mxu0 %v1586
      %1806 = vmatmul.mubr.f32.gmra.mrb[0].mxu0 %v1466
      %v1807 = vpop.f32.mrb[0].mxu0
      %v1808 = vadd.f32 0.0, %v1807
      %v1809 = vpop.f32.mrb[0].mxu0
      %1810 = vmatprep.mubr.f32.mxu0 %v1589
      %1811 = vmatmul.mubr.f32.gmra.mrb[0].mxu0 %v1468
      %v1812 = vpop.f32.mrb[0].mxu0
      %v1813 = vadd.f32 0.0, %v1812
      %v1814 = vpop.f32.mrb[0].mxu0
      %1815 = vdwg.mxu0
      %v1817 = vsel %vm653, %v1379, 0
      %v1820 = vsel %vm653, %v1381, 0
      %1822 = vmatprep.subr.mxu0 0.0
      %1823 = vmatpush1.msra.mxu0 %v1442
      %1824 = vmatprep.subr.mxu0 0.0
      %1825 = vmatpush1.msra.mxu0 %v1443
      %1826 = vmatprep.subr.mxu0 0.0
      %1827 = vmatpush1.msra.mxu0 %v1444
      %1828 = vmatprep.subr.mxu0 0.0
      %1829 = vmatpush1.msra.mxu0 %v1445
      %1830 = vmatprep.subr.mxu0 0.0
      %1831 = vmatpush1.msra.mxu0 %v1446
      %1832 = vmatprep.subr.mxu0 0.0
      %1833 = vmatpush1.msra.mxu0 %v1447
      %1834 = vmatprep.subr.mxu0 0.0
      %1835 = vmatpush1.msra.mxu0 %v1448
      %1836 = vmatprep.subr.mxu0 0.0
      %1837 = vmatpush1.msra.mxu0 %v1449
      %1838 = vmatprep.subr.mxu0 0.0
      %1839 = vmatpush1.msra.mxu0 %v1450
      %1840 = vmatprep.subr.mxu0 0.0
      %1841 = vmatpush1.msra.mxu0 %v1451
      %1842 = vmatprep.subr.mxu0 0.0
      %1843 = vmatpush1.msra.mxu0 %v1452
      %1844 = vmatprep.subr.mxu0 0.0
      %1845 = vmatpush1.msra.mxu0 %v1453
      %1846 = vmatprep.subr.mxu0 0.0
      %1847 = vmatpush1.msra.mxu0 %v1454
      %1848 = vmatprep.subr.mxu0 0.0
      %1849 = vmatpush1.msra.mxu0 %v1455
      %1850 = vmatprep.subr.mxu0 0.0
      %1851 = vmatpush1.msra.mxu0 %v1456
      %1852 = vmatprep.subr.mxu0 0.0
      %1853 = vmatpush1.msra.mxu0 %v1457
      %1854 = vmatprep.subr.mxu0 0.0
      %1855 = vmatpush1.msra.mxu0 %v1458
      %1856 = vmatprep.subr.mxu0 0.0
      %1857 = vmatpush1.msra.mxu0 %v1459
      %1858 = vmatprep.subr.mxu0 0.0
      %1859 = vmatpush1.msra.mxu0 %v1460
      %1860 = vmatprep.subr.mxu0 0.0
      %1861 = vmatpush1.msra.mxu0 %v1461
      %1862 = vmatprep.subr.mxu0 0.0
      %1863 = vmatpush1.msra.mxu0 %v1462
      %1864 = vmatprep.subr.mxu0 0.0
      %1865 = vmatpush1.msra.mxu0 %v1463
      %1866 = vmatprep.subr.mxu0 0.0
      %1867 = vmatpush1.msra.mxu0 %v1464
      %1868 = vmatprep.subr.mxu0 0.0
      %1869 = vmatpush1.msra.mxu0 %v1465
      %1870 = vmatprep.subr.mxu0 0.0
      %1871 = vmatpush1.msra.mxu0 0.0
      %1872 = vmatprep.subr.mxu0 0.0
      %1873 = vmatpush1.msra.mxu0 0.0
      %1874 = vmatprep.subr.mxu0 0.0
      %1875 = vmatpush1.msra.mxu0 0.0
      %1876 = vmatprep.subr.mxu0 0.0
      %1877 = vmatpush1.msra.mxu0 0.0
      %1878 = vmatprep.subr.mxu0 0.0
      %1879 = vmatpush1.msra.mxu0 0.0
      %1880 = vmatprep.subr.mxu0 0.0
      %1881 = vmatpush1.msra.mxu0 0.0
      %1882 = vmatprep.subr.mxu0 0.0
      %1883 = vmatpush1.msra.mxu0 0.0
      %1884 = vmatprep.subr.mxu0 0.0
      %1885 = vmatpush1.msra.mxu0 0.0
      %1886 = vmatprep.mubr.f32.mxu0 %v1817
      %1887 = vmatmul.mubr.f32.gmra.mrb[0].mxu0 %v1378
      %v1888 = vpop.f32.mrb[0].mxu0
      %v1889 = vadd.f32 %v1658, %v1888
      %v1890 = vpop.f32.mrb[0].mxu0
      %1891 = vmatprep.mubr.f32.mxu0 %v1820
      %1892 = vmatmul.mubr.f32.gmra.mrb[0].mxu0 %v1380
      %v1893 = vpop.f32.mrb[0].mxu0
      %v1894 = vadd.f32 %v1663, %v1893
      %v1895 = vpop.f32.mrb[0].mxu0
      %1896 = vmatprep.mubr.f32.mxu0 %v1496
      %1897 = vmatmul.mubr.f32.gmra.mrb[0].mxu0 %v1382
      %v1898 = vpop.f32.mrb[0].mxu0
      %v1899 = vadd.f32 %v1668, %v1898
      %v1900 = vpop.f32.mrb[0].mxu0
      %1901 = vmatprep.mubr.f32.mxu0 %v1499
      %1902 = vmatmul.mubr.f32.gmra.mrb[0].mxu0 %v1384
      %v1903 = vpop.f32.mrb[0].mxu0
      %v1904 = vadd.f32 %v1673, %v1903
      %v1905 = vpop.f32.mrb[0].mxu0
      %1906 = vmatprep.mubr.f32.mxu0 %v1502
      %1907 = vmatmul.mubr.f32.gmra.mrb[0].mxu0 %v1386
      %v1908 = vpop.f32.mrb[0].mxu0
      %v1909 = vadd.f32 %v1678, %v1908
      %v1910 = vpop.f32.mrb[0].mxu0
      %1911 = vmatprep.mubr.f32.mxu0 %v1505
      %1912 = vmatmul.mubr.f32.gmra.mrb[0].mxu0 %v1388
      %v1913 = vpop.f32.mrb[0].mxu0
      %v1914 = vadd.f32 %v1683, %v1913
      %v1915 = vpop.f32.mrb[0].mxu0
      %1916 = vmatprep.mubr.f32.mxu0 %v1508
      %1917 = vmatmul.mubr.f32.gmra.mrb[0].mxu0 %v1390
      %v1918 = vpop.f32.mrb[0].mxu0
      %v1919 = vadd.f32 %v1688, %v1918
      %v1920 = vpop.f32.mrb[0].mxu0
      %1921 = vmatprep.mubr.f32.mxu0 %v1511
      %1922 = vmatmul.mubr.f32.gmra.mrb[0].mxu0 %v1392
      %v1923 = vpop.f32.mrb[0].mxu0
      %v1924 = vadd.f32 %v1693, %v1923
      %v1925 = vpop.f32.mrb[0].mxu0
      %1926 = vmatprep.mubr.f32.mxu0 %v1514
      %1927 = vmatmul.mubr.f32.gmra.mrb[0].mxu0 %v1394
      %v1928 = vpop.f32.mrb[0].mxu0
      %v1929 = vadd.f32 %v1698, %v1928
      %v1930 = vpop.f32.mrb[0].mxu0
      %1931 = vmatprep.mubr.f32.mxu0 %v1517
      %1932 = vmatmul.mubr.f32.gmra.mrb[0].mxu0 %v1396
      %v1933 = vpop.f32.mrb[0].mxu0
      %v1934 = vadd.f32 %v1703, %v1933
      %v1935 = vpop.f32.mrb[0].mxu0
      %1936 = vmatprep.mubr.f32.mxu0 %v1520
      %1937 = vmatmul.mubr.f32.gmra.mrb[0].mxu0 %v1398
      %v1938 = vpop.f32.mrb[0].mxu0
      %v1939 = vadd.f32 %v1708, %v1938
      %v1940 = vpop.f32.mrb[0].mxu0
      %1941 = vmatprep.mubr.f32.mxu0 %v1523
      %1942 = vmatmul.mubr.f32.gmra.mrb[0].mxu0 %v1400
      %v1943 = vpop.f32.mrb[0].mxu0
      %v1944 = vadd.f32 %v1713, %v1943
      %v1945 = vpop.f32.mrb[0].mxu0
      %1946 = vmatprep.mubr.f32.mxu0 %v1526
      %1947 = vmatmul.mubr.f32.gmra.mrb[0].mxu0 %v1402
      %v1948 = vpop.f32.mrb[0].mxu0
      %v1949 = vadd.f32 %v1718, %v1948
      %v1950 = vpop.f32.mrb[0].mxu0
      %1951 = vmatprep.mubr.f32.mxu0 %v1529
      %1952 = vmatmul.mubr.f32.gmra.mrb[0].mxu0 %v1404
      %v1953 = vpop.f32.mrb[0].mxu0
      %v1954 = vadd.f32 %v1723, %v1953
      %v1955 = vpop.f32.mrb[0].mxu0
      %1956 = vmatprep.mubr.f32.mxu0 %v1532
      %1957 = vmatmul.mubr.f32.gmra.mrb[0].mxu0 %v1406
      %v1958 = vpop.f32.mrb[0].mxu0
      %v1959 = vadd.f32 %v1728, %v1958
      %v1960 = vpop.f32.mrb[0].mxu0
      %1961 = vmatprep.mubr.f32.mxu0 %v1535
      %1962 = vmatmul.mubr.f32.gmra.mrb[0].mxu0 %v1408
      %v1963 = vpop.f32.mrb[0].mxu0
      %v1964 = vadd.f32 %v1733, %v1963
      %v1965 = vpop.f32.mrb[0].mxu0
      %1966 = vmatprep.mubr.f32.mxu0 %v1538
      %1967 = vmatmul.mubr.f32.gmra.mrb[0].mxu0 %v1410
      %v1968 = vpop.f32.mrb[0].mxu0
      %v1969 = vadd.f32 %v1738, %v1968
      %v1970 = vpop.f32.mrb[0].mxu0
      %1971 = vmatprep.mubr.f32.mxu0 %v1541
      %1972 = vmatmul.mubr.f32.gmra.mrb[0].mxu0 %v1412
      %v1973 = vpop.f32.mrb[0].mxu0
      %v1974 = vadd.f32 %v1743, %v1973
      %v1975 = vpop.f32.mrb[0].mxu0
      %1976 = vmatprep.mubr.f32.mxu0 %v1544
      %1977 = vmatmul.mubr.f32.gmra.mrb[0].mxu0 %v1414
      %v1978 = vpop.f32.mrb[0].mxu0
      %v1979 = vadd.f32 %v1748, %v1978
      %v1980 = vpop.f32.mrb[0].mxu0
      %1981 = vmatprep.mubr.f32.mxu0 %v1547
      %1982 = vmatmul.mubr.f32.gmra.mrb[0].mxu0 %v1416
      %v1983 = vpop.f32.mrb[0].mxu0
      %v1984 = vadd.f32 %v1753, %v1983
      %v1985 = vpop.f32.mrb[0].mxu0
      %1986 = vmatprep.mubr.f32.mxu0 %v1550
      %1987 = vmatmul.mubr.f32.gmra.mrb[0].mxu0 %v1418
      %v1988 = vpop.f32.mrb[0].mxu0
      %v1989 = vadd.f32 %v1758, %v1988
      %v1990 = vpop.f32.mrb[0].mxu0
      %1991 = vmatprep.mubr.f32.mxu0 %v1553
      %1992 = vmatmul.mubr.f32.gmra.mrb[0].mxu0 %v1420
      %v1993 = vpop.f32.mrb[0].mxu0
      %v1994 = vadd.f32 %v1763, %v1993
      %v1995 = vpop.f32.mrb[0].mxu0
      %1996 = vmatprep.mubr.f32.mxu0 %v1556
      %1997 = vmatmul.mubr.f32.gmra.mrb[0].mxu0 %v1422
      %v1998 = vpop.f32.mrb[0].mxu0
      %v1999 = vadd.f32 %v1768, %v1998
      %v2000 = vpop.f32.mrb[0].mxu0
      %2001 = vmatprep.mubr.f32.mxu0 %v1559
      %2002 = vmatmul.mubr.f32.gmra.mrb[0].mxu0 %v1424
      %v2003 = vpop.f32.mrb[0].mxu0
      %v2004 = vadd.f32 %v1773, %v2003
      %v2005 = vpop.f32.mrb[0].mxu0
      %2006 = vmatprep.mubr.f32.mxu0 %v1562
      %2007 = vmatmul.mubr.f32.gmra.mrb[0].mxu0 %v1426
      %v2008 = vpop.f32.mrb[0].mxu0
      %v2009 = vadd.f32 %v1778, %v2008
      %v2010 = vpop.f32.mrb[0].mxu0
      %2011 = vmatprep.mubr.f32.mxu0 %v1565
      %2012 = vmatmul.mubr.f32.gmra.mrb[0].mxu0 %v1428
      %v2013 = vpop.f32.mrb[0].mxu0
      %v2014 = vadd.f32 %v1783, %v2013
      %v2015 = vpop.f32.mrb[0].mxu0
      %2016 = vmatprep.mubr.f32.mxu0 %v1568
      %2017 = vmatmul.mubr.f32.gmra.mrb[0].mxu0 %v1430
      %v2018 = vpop.f32.mrb[0].mxu0
      %v2019 = vadd.f32 %v1788, %v2018
      %v2020 = vpop.f32.mrb[0].mxu0
      %2021 = vmatprep.mubr.f32.mxu0 %v1571
      %2022 = vmatmul.mubr.f32.gmra.mrb[0].mxu0 %v1432
      %v2023 = vpop.f32.mrb[0].mxu0
      %v2024 = vadd.f32 %v1793, %v2023
      %v2025 = vpop.f32.mrb[0].mxu0
      %2026 = vmatprep.mubr.f32.mxu0 %v1574
      %2027 = vmatmul.mubr.f32.gmra.mrb[0].mxu0 %v1434
      %v2028 = vpop.f32.mrb[0].mxu0
      %v2029 = vadd.f32 %v1798, %v2028
      %v2030 = vpop.f32.mrb[0].mxu0
      %2031 = vmatprep.mubr.f32.mxu0 %v1577
      %2032 = vmatmul.mubr.f32.gmra.mrb[0].mxu0 %v1436
      %v2033 = vpop.f32.mrb[0].mxu0
      %v2034 = vadd.f32 %v1803, %v2033
      %v2035 = vpop.f32.mrb[0].mxu0
      %2036 = vmatprep.mubr.f32.mxu0 %v1580
      %2037 = vmatmul.mubr.f32.gmra.mrb[0].mxu0 %v1438
      %v2038 = vpop.f32.mrb[0].mxu0
      %v2039 = vadd.f32 %v1808, %v2038
      %v2040 = vpop.f32.mrb[0].mxu0
      %2041 = vmatprep.mubr.f32.mxu0 %v1583
      %2042 = vmatmul.mubr.f32.gmra.mrb[0].mxu0 %v1440
      %v2043 = vpop.f32.mrb[0].mxu0
      %v2044 = vadd.f32 %v1813, %v2043
      %v2045 = vpop.f32.mrb[0].mxu0
      %2046 = vdwg.mxu0
      %v2047 = vld [vmem:[#allocation2 + $0x40] sm:$0xff]
      %v2048 = vld [vmem:[#allocation2 + $0x48] sm:$0xff]
      %v2049 = vld [vmem:[#allocation2 + $0x50] sm:$0xff]
      %v2050 = vld [vmem:[#allocation2 + $0x58] sm:$0xff]
      %v2051 = vld [vmem:[#allocation2 + $0x60] sm:$0xff]
      %v2052 = vld [vmem:[#allocation2 + $0x68] sm:$0xff]
      %v2053 = vld [vmem:[#allocation2 + $0x70] sm:$0xff]
      %v2054 = vld [vmem:[#allocation2 + $0x78] sm:$0xff]
      %v2055 = vld [vmem:[#allocation2 + $0x80] sm:$0xff]
      %v2056 = vld [vmem:[#allocation2 + $0x88] sm:$0xff]
      %v2057 = vld [vmem:[#allocation2 + $0x90] sm:$0xff]
      %v2058 = vld [vmem:[#allocation2 + $0x98] sm:$0xff]
      %v2059 = vld [vmem:[#allocation2 + $0xa0] sm:$0xff]
      %v2060 = vld [vmem:[#allocation2 + $0xa8] sm:$0xff]
      %v2061 = vld [vmem:[#allocation2 + $0xb0] sm:$0xff]
      %v2062 = vld [vmem:[#allocation2 + $0xb8] sm:$0xff]
      %v2063 = vld [vmem:[#allocation2 + $0xc0] sm:$0xff]
      %v2064 = vld [vmem:[#allocation2 + $0xc8] sm:$0xff]
      %v2065 = vld [vmem:[#allocation2 + $0xd0] sm:$0xff]
      %v2066 = vld [vmem:[#allocation2 + $0xd8] sm:$0xff]
      %v2067 = vld [vmem:[#allocation2 + $0xe0] sm:$0xff]
      %v2068 = vld [vmem:[#allocation2 + $0xe8] sm:$0xff]
      %v2069 = vld [vmem:[#allocation2 + $0xf0] sm:$0xff]
      %v2070 = vld [vmem:[#allocation2 + $0xf8] sm:$0xff]
      %v2071 = vld [vmem:[#allocation2 + $0x100] sm:$0xff]
      %v2072 = vld [vmem:[#allocation2 + $0x108] sm:$0xff]
      %v2073 = vld [vmem:[#allocation2 + $0x110] sm:$0xff]
      %v2074 = vld [vmem:[#allocation2 + $0x118] sm:$0xff]
      %v2075 = vld [vmem:[#allocation2 + $0x120] sm:$0xff]
      %v2076 = vld [vmem:[#allocation2 + $0x128] sm:$0xff]
      %v2077 = vld [vmem:[#allocation2 + $0x130] sm:$0xff]
      %v2078 = vld [vmem:[#allocation2 + $0x138] sm:$0xff]
      %v2079 = vld [vmem:[#allocation2 + $0x140] sm:$0xff]
      %v2080 = vld [vmem:[#allocation2 + $0x148] sm:$0xff]
      %v2081 = vld [vmem:[#allocation2 + $0x150] sm:$0xff]
      %v2082 = vld [vmem:[#allocation2 + $0x158] sm:$0xff]
      %v2083 = vld [vmem:[#allocation2 + $0x160] sm:$0xff]
      %v2084 = vld [vmem:[#allocation2 + $0x168] sm:$0xff]
      %v2085 = vld [vmem:[#allocation2 + $0x170] sm:$0xff]
      %v2086 = vld [vmem:[#allocation2 + $0x178] sm:$0xff]
      %v2087 = vld [vmem:[#allocation2 + $0x180] sm:$0xff]
      %v2088 = vld [vmem:[#allocation2 + $0x188] sm:$0xff]
      %v2089 = vld [vmem:[#allocation2 + $0x190] sm:$0xff]
      %v2090 = vld [vmem:[#allocation2 + $0x198] sm:$0xff]
      %v2091 = vld [vmem:[#allocation2 + $0x1a0] sm:$0xff]
      %v2092 = vld [vmem:[#allocation2 + $0x1a8] sm:$0xff]
      %v2093 = vld [vmem:[#allocation2 + $0x1b0] sm:$0xff]
      %v2094 = vld [vmem:[#allocation2 + $0x1b8] sm:$0xff]
      %v2095 = vld [vmem:[#allocation2 + $0x1c0] sm:$0xff]
      %v2096 = vld [vmem:[#allocation2 + $0x1c8] sm:$0xff]
      %v2097 = vld [vmem:[#allocation2 + $0x1d0] sm:$0xff]
      %v2098 = vld [vmem:[#allocation2 + $0x1d8] sm:$0xff]
      %v2099 = vld [vmem:[#allocation2 + $0x1e0] sm:$0xff]
      %v2100 = vld [vmem:[#allocation2 + $0x1e8] sm:$0xff]
      %v2101 = vld [vmem:[#allocation2 + $0x1f0] sm:$0xff]
      %v2102 = vld [vmem:[#allocation2 + $0x1f8] sm:$0xff]
      %v2103 = vld [vmem:[#allocation2 + $0x200] sm:$0xff]
      %v2104 = vld [vmem:[#allocation2 + $0x208] sm:$0xff]
      %v2105 = vld [vmem:[#allocation2 + $0x210] sm:$0xff]
      %v2106 = vld [vmem:[#allocation2 + $0x218] sm:$0xff]
      %v2107 = vld [vmem:[#allocation2 + $0x220] sm:$0xff]
      %v2108 = vld [vmem:[#allocation2 + $0x228] sm:$0xff]
      %v2109 = vld [vmem:[#allocation2 + $0x230] sm:$0xff]
      %v2110 = vld [vmem:[#allocation2 + $0x238] sm:$0xff]
      %s2111 = scalar_lea.vmem %s1, 384
      %v2112 = vld [vmem:[%s2111] sm:$0xff]
      %v2113 = vld [vmem:[%s2111 + $0x8] sm:$0xff]
      %v2114 = vld [vmem:[%s2111 + $0x10] sm:$0xff]
      %v2115 = vld [vmem:[%s2111 + $0x18] sm:$0xff]
      %v2116 = vld [vmem:[%s2111 + $0x20] sm:$0xff]
      %v2117 = vld [vmem:[%s2111 + $0x28] sm:$0xff]
      %v2118 = vld [vmem:[%s2111 + $0x30] sm:$0xff]
      %v2119 = vld [vmem:[%s2111 + $0x38] sm:$0xff]
      %v2120 = vld [vmem:[%s2111 + $0x40] sm:$0xff]
      %v2121 = vld [vmem:[%s2111 + $0x48] sm:$0xff]
      %v2122 = vld [vmem:[%s2111 + $0x50] sm:$0xff]
      %v2123 = vld [vmem:[%s2111 + $0x58] sm:$0xff]
      %v2124 = vld [vmem:[%s2111 + $0x60] sm:$0xff]
      %v2125 = vld [vmem:[%s2111 + $0x68] sm:$0xff]
      %v2126 = vld [vmem:[%s2111 + $0x70] sm:$0xff]
      %v2127 = vld [vmem:[%s2111 + $0x78] sm:$0xff]
      %v2128 = vld [vmem:[%s2111 + $0x80] sm:$0xff]
      %v2129 = vld [vmem:[%s2111 + $0x88] sm:$0xff]
      %v2130 = vld [vmem:[%s2111 + $0x90] sm:$0xff]
      %v2131 = vld [vmem:[%s2111 + $0x98] sm:$0xff]
      %v2132 = vld [vmem:[%s2111 + $0xa0] sm:$0xff]
      %v2133 = vld [vmem:[%s2111 + $0xa8] sm:$0xff]
      %v2134 = vld [vmem:[%s2111 + $0xb0] sm:$0xff]
      %v2135 = vld [vmem:[%s2111 + $0xb8] sm:$0xff]
      %v2137 = vsel %vm653, %v2048, 0
      %v2140 = vsel %vm653, %v2050, 0
      %v2143 = vsel %vm653, %v2052, 0
      %v2146 = vsel %vm653, %v2054, 0
      %v2149 = vsel %vm653, %v2056, 0
      %v2152 = vsel %vm653, %v2058, 0
      %v2155 = vsel %vm653, %v2060, 0
      %v2158 = vsel %vm653, %v2062, 0
      %v2161 = vsel %vm653, %v2064, 0
      %v2164 = vsel %vm653, %v2066, 0
      %v2167 = vsel %vm653, %v2068, 0
      %v2170 = vsel %vm653, %v2070, 0
      %v2173 = vsel %vm653, %v2072, 0
      %v2176 = vsel %vm653, %v2074, 0
      %v2179 = vsel %vm653, %v2076, 0
      %v2182 = vsel %vm653, %v2078, 0
      %v2185 = vsel %vm653, %v2080, 0
      %v2188 = vsel %vm653, %v2082, 0
      %v2191 = vsel %vm653, %v2084, 0
      %v2194 = vsel %vm653, %v2086, 0
      %v2197 = vsel %vm653, %v2088, 0
      %v2200 = vsel %vm653, %v2090, 0
      %v2203 = vsel %vm653, %v2092, 0
      %v2206 = vsel %vm653, %v2094, 0
      %v2209 = vsel %vm653, %v2096, 0
      %v2212 = vsel %vm653, %v2098, 0
      %v2215 = vsel %vm653, %v2100, 0
      %v2218 = vsel %vm653, %v2102, 0
      %v2221 = vsel %vm653, %v2104, 0
      %v2224 = vsel %vm653, %v2106, 0
      %v2227 = vsel %vm653, %v2108, 0
      %v2230 = vsel %vm653, %v2110, 0
      %2232 = vmatprep.subr.mxu0 0.0
      %2233 = vmatpush1.msra.mxu0 %v2112
      %2234 = vmatprep.subr.mxu0 0.0
      %2235 = vmatpush1.msra.mxu0 %v2113
      %2236 = vmatprep.subr.mxu0 0.0
      %2237 = vmatpush1.msra.mxu0 %v2114
      %2238 = vmatprep.subr.mxu0 0.0
      %2239 = vmatpush1.msra.mxu0 %v2115
      %2240 = vmatprep.subr.mxu0 0.0
      %2241 = vmatpush1.msra.mxu0 %v2116
      %2242 = vmatprep.subr.mxu0 0.0
      %2243 = vmatpush1.msra.mxu0 %v2117
      %2244 = vmatprep.subr.mxu0 0.0
      %2245 = vmatpush1.msra.mxu0 %v2118
      %2246 = vmatprep.subr.mxu0 0.0
      %2247 = vmatpush1.msra.mxu0 %v2119
      %2248 = vmatprep.subr.mxu0 0.0
      %2249 = vmatpush1.msra.mxu0 %v2120
      %2250 = vmatprep.subr.mxu0 0.0
      %2251 = vmatpush1.msra.mxu0 %v2121
      %2252 = vmatprep.subr.mxu0 0.0
      %2253 = vmatpush1.msra.mxu0 %v2122
      %2254 = vmatprep.subr.mxu0 0.0
      %2255 = vmatpush1.msra.mxu0 %v2123
      %2256 = vmatprep.subr.mxu0 0.0
      %2257 = vmatpush1.msra.mxu0 %v2124
      %2258 = vmatprep.subr.mxu0 0.0
      %2259 = vmatpush1.msra.mxu0 %v2125
      %2260 = vmatprep.subr.mxu0 0.0
      %2261 = vmatpush1.msra.mxu0 %v2126
      %2262 = vmatprep.subr.mxu0 0.0
      %2263 = vmatpush1.msra.mxu0 %v2127
      %2264 = vmatprep.subr.mxu0 0.0
      %2265 = vmatpush1.msra.mxu0 %v2128
      %2266 = vmatprep.subr.mxu0 0.0
      %2267 = vmatpush1.msra.mxu0 %v2129
      %2268 = vmatprep.subr.mxu0 0.0
      %2269 = vmatpush1.msra.mxu0 %v2130
      %2270 = vmatprep.subr.mxu0 0.0
      %2271 = vmatpush1.msra.mxu0 %v2131
      %2272 = vmatprep.subr.mxu0 0.0
      %2273 = vmatpush1.msra.mxu0 %v2132
      %2274 = vmatprep.subr.mxu0 0.0
      %2275 = vmatpush1.msra.mxu0 %v2133
      %2276 = vmatprep.subr.mxu0 0.0
      %2277 = vmatpush1.msra.mxu0 %v2134
      %2278 = vmatprep.subr.mxu0 0.0
      %2279 = vmatpush1.msra.mxu0 %v2135
      %2280 = vmatprep.subr.mxu0 0.0
      %2281 = vmatpush1.msra.mxu0 0.0
      %2282 = vmatprep.subr.mxu0 0.0
      %2283 = vmatpush1.msra.mxu0 0.0
      %2284 = vmatprep.subr.mxu0 0.0
      %2285 = vmatpush1.msra.mxu0 0.0
      %2286 = vmatprep.subr.mxu0 0.0
      %2287 = vmatpush1.msra.mxu0 0.0
      %2288 = vmatprep.subr.mxu0 0.0
      %2289 = vmatpush1.msra.mxu0 0.0
      %2290 = vmatprep.subr.mxu0 0.0
      %2291 = vmatpush1.msra.mxu0 0.0
      %2292 = vmatprep.subr.mxu0 0.0
      %2293 = vmatpush1.msra.mxu0 0.0
      %2294 = vmatprep.subr.mxu0 0.0
      %2295 = vmatpush1.msra.mxu0 0.0
      %2296 = vmatprep.mubr.f32.mxu0 %v2137
      %2297 = vmatmul.mubr.f32.gmra.mrb[0].mxu0 %v2047
      %v2298 = vpop.f32.mrb[0].mxu0
      %v2299 = vadd.f32 0.0, %v2298
      %v2300 = vpop.f32.mrb[0].mxu0
      %2301 = vmatprep.mubr.f32.mxu0 %v2140
      %2302 = vmatmul.mubr.f32.gmra.mrb[0].mxu0 %v2049
      %v2303 = vpop.f32.mrb[0].mxu0
      %v2304 = vadd.f32 0.0, %v2303
      %v2305 = vpop.f32.mrb[0].mxu0
      %2306 = vmatprep.mubr.f32.mxu0 %v2143
      %2307 = vmatmul.mubr.f32.gmra.mrb[0].mxu0 %v2051
      %v2308 = vpop.f32.mrb[0].mxu0
      %v2309 = vadd.f32 0.0, %v2308
      %v2310 = vpop.f32.mrb[0].mxu0
      %2311 = vmatprep.mubr.f32.mxu0 %v2146
      %2312 = vmatmul.mubr.f32.gmra.mrb[0].mxu0 %v2053
      %v2313 = vpop.f32.mrb[0].mxu0
      %v2314 = vadd.f32 0.0, %v2313
      %v2315 = vpop.f32.mrb[0].mxu0
      %2316 = vmatprep.mubr.f32.mxu0 %v2149
      %2317 = vmatmul.mubr.f32.gmra.mrb[0].mxu0 %v2055
      %v2318 = vpop.f32.mrb[0].mxu0
      %v2319 = vadd.f32 0.0, %v2318
      %v2320 = vpop.f32.mrb[0].mxu0
      %2321 = vmatprep.mubr.f32.mxu0 %v2152
      %2322 = vmatmul.mubr.f32.gmra.mrb[0].mxu0 %v2057
      %v2323 = vpop.f32.mrb[0].mxu0
      %v2324 = vadd.f32 0.0, %v2323
      %v2325 = vpop.f32.mrb[0].mxu0
      %2326 = vmatprep.mubr.f32.mxu0 %v2155
      %2327 = vmatmul.mubr.f32.gmra.mrb[0].mxu0 %v2059
      %v2328 = vpop.f32.mrb[0].mxu0
      %v2329 = vadd.f32 0.0, %v2328
      %v2330 = vpop.f32.mrb[0].mxu0
      %2331 = vmatprep.mubr.f32.mxu0 %v2158
      %2332 = vmatmul.mubr.f32.gmra.mrb[0].mxu0 %v2061
      %v2333 = vpop.f32.mrb[0].mxu0
      %v2334 = vadd.f32 0.0, %v2333
      %v2335 = vpop.f32.mrb[0].mxu0
      %2336 = vmatprep.mubr.f32.mxu0 %v2161
      %2337 = vmatmul.mubr.f32.gmra.mrb[0].mxu0 %v2063
      %v2338 = vpop.f32.mrb[0].mxu0
      %v2339 = vadd.f32 0.0, %v2338
      %v2340 = vpop.f32.mrb[0].mxu0
      %2341 = vmatprep.mubr.f32.mxu0 %v2164
      %2342 = vmatmul.mubr.f32.gmra.mrb[0].mxu0 %v2065
      %v2343 = vpop.f32.mrb[0].mxu0
      %v2344 = vadd.f32 0.0, %v2343
      %v2345 = vpop.f32.mrb[0].mxu0
      %2346 = vmatprep.mubr.f32.mxu0 %v2167
      %2347 = vmatmul.mubr.f32.gmra.mrb[0].mxu0 %v2067
      %v2348 = vpop.f32.mrb[0].mxu0
      %v2349 = vadd.f32 0.0, %v2348
      %v2350 = vpop.f32.mrb[0].mxu0
      %2351 = vmatprep.mubr.f32.mxu0 %v2170
      %2352 = vmatmul.mubr.f32.gmra.mrb[0].mxu0 %v2069
      %v2353 = vpop.f32.mrb[0].mxu0
      %v2354 = vadd.f32 0.0, %v2353
      %v2355 = vpop.f32.mrb[0].mxu0
      %2356 = vmatprep.mubr.f32.mxu0 %v2173
      %2357 = vmatmul.mubr.f32.gmra.mrb[0].mxu0 %v2071
      %v2358 = vpop.f32.mrb[0].mxu0
      %v2359 = vadd.f32 0.0, %v2358
      %v2360 = vpop.f32.mrb[0].mxu0
      %2361 = vmatprep.mubr.f32.mxu0 %v2176
      %2362 = vmatmul.mubr.f32.gmra.mrb[0].mxu0 %v2073
      %v2363 = vpop.f32.mrb[0].mxu0
      %v2364 = vadd.f32 0.0, %v2363
      %v2365 = vpop.f32.mrb[0].mxu0
      %2366 = vmatprep.mubr.f32.mxu0 %v2179
      %2367 = vmatmul.mubr.f32.gmra.mrb[0].mxu0 %v2075
      %v2368 = vpop.f32.mrb[0].mxu0
      %v2369 = vadd.f32 0.0, %v2368
      %v2370 = vpop.f32.mrb[0].mxu0
      %2371 = vmatprep.mubr.f32.mxu0 %v2182
      %2372 = vmatmul.mubr.f32.gmra.mrb[0].mxu0 %v2077
      %v2373 = vpop.f32.mrb[0].mxu0
      %v2374 = vadd.f32 0.0, %v2373
      %v2375 = vpop.f32.mrb[0].mxu0
      %2376 = vmatprep.mubr.f32.mxu0 %v2185
      %2377 = vmatmul.mubr.f32.gmra.mrb[0].mxu0 %v2079
      %v2378 = vpop.f32.mrb[0].mxu0
      %v2379 = vadd.f32 0.0, %v2378
      %v2380 = vpop.f32.mrb[0].mxu0
      %2381 = vmatprep.mubr.f32.mxu0 %v2188
      %2382 = vmatmul.mubr.f32.gmra.mrb[0].mxu0 %v2081
      %v2383 = vpop.f32.mrb[0].mxu0
      %v2384 = vadd.f32 0.0, %v2383
      %v2385 = vpop.f32.mrb[0].mxu0
      %2386 = vmatprep.mubr.f32.mxu0 %v2191
      %2387 = vmatmul.mubr.f32.gmra.mrb[0].mxu0 %v2083
      %v2388 = vpop.f32.mrb[0].mxu0
      %v2389 = vadd.f32 0.0, %v2388
      %v2390 = vpop.f32.mrb[0].mxu0
      %2391 = vmatprep.mubr.f32.mxu0 %v2194
      %2392 = vmatmul.mubr.f32.gmra.mrb[0].mxu0 %v2085
      %v2393 = vpop.f32.mrb[0].mxu0
      %v2394 = vadd.f32 0.0, %v2393
      %v2395 = vpop.f32.mrb[0].mxu0
      %2396 = vmatprep.mubr.f32.mxu0 %v2197
      %2397 = vmatmul.mubr.f32.gmra.mrb[0].mxu0 %v2087
      %v2398 = vpop.f32.mrb[0].mxu0
      %v2399 = vadd.f32 0.0, %v2398
      %v2400 = vpop.f32.mrb[0].mxu0
      %2401 = vmatprep.mubr.f32.mxu0 %v2200
      %2402 = vmatmul.mubr.f32.gmra.mrb[0].mxu0 %v2089
      %v2403 = vpop.f32.mrb[0].mxu0
      %v2404 = vadd.f32 0.0, %v2403
      %v2405 = vpop.f32.mrb[0].mxu0
      %2406 = vmatprep.mubr.f32.mxu0 %v2203
      %2407 = vmatmul.mubr.f32.gmra.mrb[0].mxu0 %v2091
      %v2408 = vpop.f32.mrb[0].mxu0
      %v2409 = vadd.f32 0.0, %v2408
      %v2410 = vpop.f32.mrb[0].mxu0
      %2411 = vmatprep.mubr.f32.mxu0 %v2206
      %2412 = vmatmul.mubr.f32.gmra.mrb[0].mxu0 %v2093
      %v2413 = vpop.f32.mrb[0].mxu0
      %v2414 = vadd.f32 0.0, %v2413
      %v2415 = vpop.f32.mrb[0].mxu0
      %2416 = vmatprep.mubr.f32.mxu0 %v2209
      %2417 = vmatmul.mubr.f32.gmra.mrb[0].mxu0 %v2095
      %v2418 = vpop.f32.mrb[0].mxu0
      %v2419 = vadd.f32 0.0, %v2418
      %v2420 = vpop.f32.mrb[0].mxu0
      %2421 = vmatprep.mubr.f32.mxu0 %v2212
      %2422 = vmatmul.mubr.f32.gmra.mrb[0].mxu0 %v2097
      %v2423 = vpop.f32.mrb[0].mxu0
      %v2424 = vadd.f32 0.0, %v2423
      %v2425 = vpop.f32.mrb[0].mxu0
      %2426 = vmatprep.mubr.f32.mxu0 %v2215
      %2427 = vmatmul.mubr.f32.gmra.mrb[0].mxu0 %v2099
      %v2428 = vpop.f32.mrb[0].mxu0
      %v2429 = vadd.f32 0.0, %v2428
      %v2430 = vpop.f32.mrb[0].mxu0
      %2431 = vmatprep.mubr.f32.mxu0 %v2218
      %2432 = vmatmul.mubr.f32.gmra.mrb[0].mxu0 %v2101
      %v2433 = vpop.f32.mrb[0].mxu0
      %v2434 = vadd.f32 0.0, %v2433
      %v2435 = vpop.f32.mrb[0].mxu0
      %2436 = vmatprep.mubr.f32.mxu0 %v2221
      %2437 = vmatmul.mubr.f32.gmra.mrb[0].mxu0 %v2103
      %v2438 = vpop.f32.mrb[0].mxu0
      %v2439 = vadd.f32 0.0, %v2438
      %v2440 = vpop.f32.mrb[0].mxu0
      %2441 = vmatprep.mubr.f32.mxu0 %v2224
      %2442 = vmatmul.mubr.f32.gmra.mrb[0].mxu0 %v2105
      %v2443 = vpop.f32.mrb[0].mxu0
      %v2444 = vadd.f32 0.0, %v2443
      %v2445 = vpop.f32.mrb[0].mxu0
      %2446 = vmatprep.mubr.f32.mxu0 %v2227
      %2447 = vmatmul.mubr.f32.gmra.mrb[0].mxu0 %v2107
      %v2448 = vpop.f32.mrb[0].mxu0
      %v2449 = vadd.f32 0.0, %v2448
      %v2450 = vpop.f32.mrb[0].mxu0
      %2451 = vmatprep.mubr.f32.mxu0 %v2230
      %2452 = vmatmul.mubr.f32.gmra.mrb[0].mxu0 %v2109
      %v2453 = vpop.f32.mrb[0].mxu0
      %v2454 = vadd.f32 0.0, %v2453
      %v2455 = vpop.f32.mrb[0].mxu0
      %2456 = vdwg.mxu0
      %v2457 = vadd.f32 %v1889, %v2299
      %v2458 = vadd.f32 %v1894, %v2304
      %v2459 = vadd.f32 %v1899, %v2309
      %v2460 = vadd.f32 %v1904, %v2314
      %v2461 = vadd.f32 %v1909, %v2319
      %v2462 = vadd.f32 %v1914, %v2324
      %v2463 = vadd.f32 %v1919, %v2329
      %v2464 = vadd.f32 %v1924, %v2334
      %v2465 = vadd.f32 %v1929, %v2339
      %v2466 = vadd.f32 %v1934, %v2344
      %v2467 = vadd.f32 %v1939, %v2349
      %v2468 = vadd.f32 %v1944, %v2354
      %v2469 = vadd.f32 %v1949, %v2359
      %v2470 = vadd.f32 %v1954, %v2364
      %v2471 = vadd.f32 %v1959, %v2369
      %v2472 = vadd.f32 %v1964, %v2374
      %v2473 = vadd.f32 %v1969, %v2379
      %v2474 = vadd.f32 %v1974, %v2384
      %v2475 = vadd.f32 %v1979, %v2389
      %v2476 = vadd.f32 %v1984, %v2394
      %v2477 = vadd.f32 %v1989, %v2399
      %v2478 = vadd.f32 %v1994, %v2404
      %v2479 = vadd.f32 %v1999, %v2409
      %v2480 = vadd.f32 %v2004, %v2414
      %v2481 = vadd.f32 %v2009, %v2419
      %v2482 = vadd.f32 %v2014, %v2424
      %v2483 = vadd.f32 %v2019, %v2429
      %v2484 = vadd.f32 %v2024, %v2434
      %v2485 = vadd.f32 %v2029, %v2439
      %v2486 = vadd.f32 %v2034, %v2444
      %v2487 = vadd.f32 %v2039, %v2449
      %v2488 = vadd.f32 %v2044, %v2454
      %v2489 = vsel %vm653, %v2457, 0.0
      %v2490 = vsel %vm653, %v2458, 0.0
      %v2491 = vadd.f32 %v2489, %v2490
      %v2492 = vsel %vm653, %v2459, 0.0
      %v2493 = vadd.f32 %v2491, %v2492
      %v2494 = vsel %vm653, %v2460, 0.0
      %v2495 = vadd.f32 %v2493, %v2494
      %v2496 = vsel %vm653, %v2461, 0.0
      %v2497 = vadd.f32 %v2495, %v2496
      %v2498 = vsel %vm653, %v2462, 0.0
      %v2499 = vadd.f32 %v2497, %v2498
      %v2500 = vsel %vm653, %v2463, 0.0
      %v2501 = vadd.f32 %v2499, %v2500
      %v2502 = vsel %vm653, %v2464, 0.0
      %v2503 = vadd.f32 %v2501, %v2502
      %v2504 = vsel %vm653, %v2465, 0.0
      %v2505 = vadd.f32 %v2503, %v2504
      %v2506 = vsel %vm653, %v2466, 0.0
      %v2507 = vadd.f32 %v2505, %v2506
      %v2508 = vsel %vm653, %v2467, 0.0
      %v2509 = vadd.f32 %v2507, %v2508
      %v2510 = vsel %vm653, %v2468, 0.0
      %v2511 = vadd.f32 %v2509, %v2510
      %v2512 = vsel %vm653, %v2469, 0.0
      %v2513 = vadd.f32 %v2511, %v2512
      %v2514 = vsel %vm653, %v2470, 0.0
      %v2515 = vadd.f32 %v2513, %v2514
      %v2516 = vsel %vm653, %v2471, 0.0
      %v2517 = vadd.f32 %v2515, %v2516
      %v2518 = vsel %vm653, %v2472, 0.0
      %v2519 = vadd.f32 %v2517, %v2518
      %v2520 = vsel %vm653, %v2473, 0.0
      %v2521 = vadd.f32 %v2519, %v2520
      %v2522 = vsel %vm653, %v2474, 0.0
      %v2523 = vadd.f32 %v2521, %v2522
      %v2524 = vsel %vm653, %v2475, 0.0
      %v2525 = vadd.f32 %v2523, %v2524
      %v2526 = vsel %vm653, %v2476, 0.0
      %v2527 = vadd.f32 %v2525, %v2526
      %v2528 = vsel %vm653, %v2477, 0.0
      %v2529 = vadd.f32 %v2527, %v2528
      %v2530 = vsel %vm653, %v2478, 0.0
      %v2531 = vadd.f32 %v2529, %v2530
      %v2532 = vsel %vm653, %v2479, 0.0
      %v2533 = vadd.f32 %v2531, %v2532
      %v2534 = vsel %vm653, %v2480, 0.0
      %v2535 = vadd.f32 %v2533, %v2534
      %v2536 = vsel %vm653, %v2481, 0.0
      %v2537 = vadd.f32 %v2535, %v2536
      %v2538 = vsel %vm653, %v2482, 0.0
      %v2539 = vadd.f32 %v2537, %v2538
      %v2540 = vsel %vm653, %v2483, 0.0
      %v2541 = vadd.f32 %v2539, %v2540
      %v2542 = vsel %vm653, %v2484, 0.0
      %v2543 = vadd.f32 %v2541, %v2542
      %v2544 = vsel %vm653, %v2485, 0.0
      %v2545 = vadd.f32 %v2543, %v2544
      %v2546 = vsel %vm653, %v2486, 0.0
      %v2547 = vadd.f32 %v2545, %v2546
      %v2548 = vsel %vm653, %v2487, 0.0
      %v2549 = vadd.f32 %v2547, %v2548
      %v2550 = vsel %vm653, %v2488, 0.0
      %v2551 = vadd.f32 %v2549, %v2550
      %v2552 = vrot.slane %v2551, 4
      %v2553 = vadd.f32 %v2551, %v2552
      %v2554 = vrot.slane %v2553, 2
      %v2555 = vadd.f32 %v2553, %v2554
      %v2556 = vrot.slane %v2555, 1
      %v2557 = vadd.f32 %v2555, %v2556
      %v2558 = vmul.f32 %v2457, %v2457
      %v2559 = vmul.f32 %v2458, %v2458
      %v2560 = vmul.f32 %v2459, %v2459
      %v2561 = vmul.f32 %v2460, %v2460
      %v2562 = vmul.f32 %v2461, %v2461
      %v2563 = vmul.f32 %v2462, %v2462
      %v2564 = vmul.f32 %v2463, %v2463
      %v2565 = vmul.f32 %v2464, %v2464
      %v2566 = vmul.f32 %v2465, %v2465
      %v2567 = vmul.f32 %v2466, %v2466
      %v2568 = vmul.f32 %v2467, %v2467
      %v2569 = vmul.f32 %v2468, %v2468
      %v2570 = vmul.f32 %v2469, %v2469
      %v2571 = vmul.f32 %v2470, %v2470
      %v2572 = vmul.f32 %v2471, %v2471
      %v2573 = vmul.f32 %v2472, %v2472
      %v2574 = vmul.f32 %v2473, %v2473
      %v2575 = vmul.f32 %v2474, %v2474
      %v2576 = vmul.f32 %v2475, %v2475
      %v2577 = vmul.f32 %v2476, %v2476
      %v2578 = vmul.f32 %v2477, %v2477
      %v2579 = vmul.f32 %v2478, %v2478
      %v2580 = vmul.f32 %v2479, %v2479
      %v2581 = vmul.f32 %v2480, %v2480
      %v2582 = vmul.f32 %v2481, %v2481
      %v2583 = vmul.f32 %v2482, %v2482
      %v2584 = vmul.f32 %v2483, %v2483
      %v2585 = vmul.f32 %v2484, %v2484
      %v2586 = vmul.f32 %v2485, %v2485
      %v2587 = vmul.f32 %v2486, %v2486
      %v2588 = vmul.f32 %v2487, %v2487
      %v2589 = vmul.f32 %v2488, %v2488
      %v2590 = vsel %vm653, %v2558, 0.0
      %v2591 = vsel %vm653, %v2559, 0.0
      %v2592 = vadd.f32 %v2590, %v2591
      %v2593 = vsel %vm653, %v2560, 0.0
      %v2594 = vadd.f32 %v2592, %v2593
      %v2595 = vsel %vm653, %v2561, 0.0
      %v2596 = vadd.f32 %v2594, %v2595
      %v2597 = vsel %vm653, %v2562, 0.0
      %v2598 = vadd.f32 %v2596, %v2597
      %v2599 = vsel %vm653, %v2563, 0.0
      %v2600 = vadd.f32 %v2598, %v2599
      %v2601 = vsel %vm653, %v2564, 0.0
      %v2602 = vadd.f32 %v2600, %v2601
      %v2603 = vsel %vm653, %v2565, 0.0
      %v2604 = vadd.f32 %v2602, %v2603
      %v2605 = vsel %vm653, %v2566, 0.0
      %v2606 = vadd.f32 %v2604, %v2605
      %v2607 = vsel %vm653, %v2567, 0.0
      %v2608 = vadd.f32 %v2606, %v2607
      %v2609 = vsel %vm653, %v2568, 0.0
      %v2610 = vadd.f32 %v2608, %v2609
      %v2611 = vsel %vm653, %v2569, 0.0
      %v2612 = vadd.f32 %v2610, %v2611
      %v2613 = vsel %vm653, %v2570, 0.0
      %v2614 = vadd.f32 %v2612, %v2613
      %v2615 = vsel %vm653, %v2571, 0.0
      %v2616 = vadd.f32 %v2614, %v2615
      %v2617 = vsel %vm653, %v2572, 0.0
      %v2618 = vadd.f32 %v2616, %v2617
      %v2619 = vsel %vm653, %v2573, 0.0
      %v2620 = vadd.f32 %v2618, %v2619
      %v2621 = vsel %vm653, %v2574, 0.0
      %v2622 = vadd.f32 %v2620, %v2621
      %v2623 = vsel %vm653, %v2575, 0.0
      %v2624 = vadd.f32 %v2622, %v2623
      %v2625 = vsel %vm653, %v2576, 0.0
      %v2626 = vadd.f32 %v2624, %v2625
      %v2627 = vsel %vm653, %v2577, 0.0
      %v2628 = vadd.f32 %v2626, %v2627
      %v2629 = vsel %vm653, %v2578, 0.0
      %v2630 = vadd.f32 %v2628, %v2629
      %v2631 = vsel %vm653, %v2579, 0.0
      %v2632 = vadd.f32 %v2630, %v2631
      %v2633 = vsel %vm653, %v2580, 0.0
      %v2634 = vadd.f32 %v2632, %v2633
      %v2635 = vsel %vm653, %v2581, 0.0
      %v2636 = vadd.f32 %v2634, %v2635
      %v2637 = vsel %vm653, %v2582, 0.0
      %v2638 = vadd.f32 %v2636, %v2637
      %v2639 = vsel %vm653, %v2583, 0.0
      %v2640 = vadd.f32 %v2638, %v2639
      %v2641 = vsel %vm653, %v2584, 0.0
      %v2642 = vadd.f32 %v2640, %v2641
      %v2643 = vsel %vm653, %v2585, 0.0
      %v2644 = vadd.f32 %v2642, %v2643
      %v2645 = vsel %vm653, %v2586, 0.0
      %v2646 = vadd.f32 %v2644, %v2645
      %v2647 = vsel %vm653, %v2587, 0.0
      %v2648 = vadd.f32 %v2646, %v2647
      %v2649 = vsel %vm653, %v2588, 0.0
      %v2650 = vadd.f32 %v2648, %v2649
      %v2651 = vsel %vm653, %v2589, 0.0
      %v2652 = vadd.f32 %v2650, %v2651
      %v2653 = vrot.slane %v2652, 4
      %v2654 = vadd.f32 %v2652, %v2653
      %v2655 = vrot.slane %v2654, 2
      %v2656 = vadd.f32 %v2654, %v2655
      %v2657 = vrot.slane %v2656, 1
      %v2658 = vadd.f32 %v2656, %v2657
      %v2659 = vmul.f32 %v2557, 0.00390625
      %v2660 = vmul.f32 %v2658, 0.00390625
      %v2661 = vmul.f32 %v2659, %v2659
      %v2662 = vsub.f32 %v2660, %v2661
      %v2663 = vmax.f32 %v2662, 0.0
      %v2664 = vsub.f32 %v2457, %v2659
      %v2665 = vsub.f32 %v2458, %v2659
      %v2666 = vsub.f32 %v2459, %v2659
      %v2667 = vsub.f32 %v2460, %v2659
      %v2668 = vsub.f32 %v2461, %v2659
      %v2669 = vsub.f32 %v2462, %v2659
      %v2670 = vsub.f32 %v2463, %v2659
      %v2671 = vsub.f32 %v2464, %v2659
      %v2672 = vsub.f32 %v2465, %v2659
      %v2673 = vsub.f32 %v2466, %v2659
      %v2674 = vsub.f32 %v2467, %v2659
      %v2675 = vsub.f32 %v2468, %v2659
      %v2676 = vsub.f32 %v2469, %v2659
      %v2677 = vsub.f32 %v2470, %v2659
      %v2678 = vsub.f32 %v2471, %v2659
      %v2679 = vsub.f32 %v2472, %v2659
      %v2680 = vsub.f32 %v2473, %v2659
      %v2681 = vsub.f32 %v2474, %v2659
      %v2682 = vsub.f32 %v2475, %v2659
      %v2683 = vsub.f32 %v2476, %v2659
      %v2684 = vsub.f32 %v2477, %v2659
      %v2685 = vsub.f32 %v2478, %v2659
      %v2686 = vsub.f32 %v2479, %v2659
      %v2687 = vsub.f32 %v2480, %v2659
      %v2688 = vsub.f32 %v2481, %v2659
      %v2689 = vsub.f32 %v2482, %v2659
      %v2690 = vsub.f32 %v2483, %v2659
      %v2691 = vsub.f32 %v2484, %v2659
      %v2692 = vsub.f32 %v2485, %v2659
      %v2693 = vsub.f32 %v2486, %v2659
      %v2694 = vsub.f32 %v2487, %v2659
      %v2695 = vsub.f32 %v2488, %v2659
      %v2696 = vadd.f32 %v2663, 1e-05
      %v2697 = vrsqrt.pop %v2696
      %v2698 = vmul.f32 %v2664, %v2697
      %v2699 = vmul.f32 %v2665, %v2697
      %v2700 = vmul.f32 %v2666, %v2697
      %v2701 = vmul.f32 %v2667, %v2697
      %v2702 = vmul.f32 %v2668, %v2697
      %v2703 = vmul.f32 %v2669, %v2697
      %v2704 = vmul.f32 %v2670, %v2697
      %v2705 = vmul.f32 %v2671, %v2697
      %v2706 = vmul.f32 %v2672, %v2697
      %v2707 = vmul.f32 %v2673, %v2697
      %v2708 = vmul.f32 %v2674, %v2697
      %v2709 = vmul.f32 %v2675, %v2697
      %v2710 = vmul.f32 %v2676, %v2697
      %v2711 = vmul.f32 %v2677, %v2697
      %v2712 = vmul.f32 %v2678, %v2697
      %v2713 = vmul.f32 %v2679, %v2697
      %v2714 = vmul.f32 %v2680, %v2697
      %v2715 = vmul.f32 %v2681, %v2697
      %v2716 = vmul.f32 %v2682, %v2697
      %v2717 = vmul.f32 %v2683, %v2697
      %v2718 = vmul.f32 %v2684, %v2697
      %v2719 = vmul.f32 %v2685, %v2697
      %v2720 = vmul.f32 %v2686, %v2697
      %v2721 = vmul.f32 %v2687, %v2697
      %v2722 = vmul.f32 %v2688, %v2697
      %v2723 = vmul.f32 %v2689, %v2697
      %v2724 = vmul.f32 %v2690, %v2697
      %v2725 = vmul.f32 %v2691, %v2697
      %v2726 = vmul.f32 %v2692, %v2697
      %v2727 = vmul.f32 %v2693, %v2697
      %v2728 = vmul.f32 %v2694, %v2697
      %v2729 = vmul.f32 %v2695, %v2697
      %v2730 = vmax.f32 %v2698, 0.0
      %v2731 = vmax.f32 %v2699, 0.0
      %v2732 = vmax.f32 %v2700, 0.0
      %v2733 = vmax.f32 %v2701, 0.0
      %v2734 = vmax.f32 %v2702, 0.0
      %v2735 = vmax.f32 %v2703, 0.0
      %v2736 = vmax.f32 %v2704, 0.0
      %v2737 = vmax.f32 %v2705, 0.0
      %v2738 = vmax.f32 %v2706, 0.0
      %v2739 = vmax.f32 %v2707, 0.0
      %v2740 = vmax.f32 %v2708, 0.0
      %v2741 = vmax.f32 %v2709, 0.0
      %v2742 = vmax.f32 %v2710, 0.0
      %v2743 = vmax.f32 %v2711, 0.0
      %v2744 = vmax.f32 %v2712, 0.0
      %v2745 = vmax.f32 %v2713, 0.0
      %v2746 = vmax.f32 %v2714, 0.0
      %v2747 = vmax.f32 %v2715, 0.0
      %v2748 = vmax.f32 %v2716, 0.0
      %v2749 = vmax.f32 %v2717, 0.0
      %v2750 = vmax.f32 %v2718, 0.0
      %v2751 = vmax.f32 %v2719, 0.0
      %v2752 = vmax.f32 %v2720, 0.0
      %v2753 = vmax.f32 %v2721, 0.0
      %v2754 = vmax.f32 %v2722, 0.0
      %v2755 = vmax.f32 %v2723, 0.0
      %v2756 = vmax.f32 %v2724, 0.0
      %v2757 = vmax.f32 %v2725, 0.0
      %v2758 = vmax.f32 %v2726, 0.0
      %v2759 = vmax.f32 %v2727, 0.0
      %v2760 = vmax.f32 %v2728, 0.0
      %v2761 = vmax.f32 %v2729, 0.0
      %v2762 = vsel %vm731, 0.0, %v2730
      %v2763 = vsel %vm732, 0.0, %v2731
      %v2764 = vsel %vm733, 0.0, %v2732
      %v2765 = vsel %vm734, 0.0, %v2733
      %v2766 = vsel %vm735, 0.0, %v2734
      %v2767 = vsel %vm736, 0.0, %v2735
      %v2768 = vsel %vm737, 0.0, %v2736
      %v2769 = vsel %vm738, 0.0, %v2737
      %v2770 = vsel %vm739, 0.0, %v2738
      %v2771 = vsel %vm740, 0.0, %v2739
      %v2772 = vsel %vm741, 0.0, %v2740
      %v2773 = vsel %vm742, 0.0, %v2741
      %v2774 = vsel %vm743, 0.0, %v2742
      %v2775 = vsel %vm744, 0.0, %v2743
      %v2776 = vsel %vm745, 0.0, %v2744
      %v2777 = vsel %vm746, 0.0, %v2745
      %v2778 = vsel %vm747, 0.0, %v2746
      %v2779 = vsel %vm748, 0.0, %v2747
      %v2780 = vsel %vm749, 0.0, %v2748
      %v2781 = vsel %vm750, 0.0, %v2749
      %v2782 = vsel %vm751, 0.0, %v2750
      %v2783 = vsel %vm752, 0.0, %v2751
      %v2784 = vsel %vm753, 0.0, %v2752
      %v2785 = vsel %vm754, 0.0, %v2753
      %v2786 = vsel %vm755, 0.0, %v2754
      %v2787 = vsel %vm756, 0.0, %v2755
      %v2788 = vsel %vm757, 0.0, %v2756
      %v2789 = vsel %vm758, 0.0, %v2757
      %v2790 = vsel %vm759, 0.0, %v2758
      %v2791 = vsel %vm760, 0.0, %v2759
      %v2792 = vsel %vm761, 0.0, %v2760
      %v2793 = vsel %vm762, 0.0, %v2761
      %v2826 = vrot.slane %v2762, 7
      %v2827 = vrot.slane %v2763, 7
      %v2828 = vsel %vm827, %v2826, %v2827
      %v2829 = vrot.slane %v2764, 7
      %v2830 = vsel %vm827, %v2827, %v2829
      %v2831 = vrot.slane %v2765, 7
      %v2832 = vsel %vm827, %v2829, %v2831
      %v2833 = vrot.slane %v2766, 7
      %v2834 = vsel %vm827, %v2831, %v2833
      %v2835 = vrot.slane %v2767, 7
      %v2836 = vsel %vm827, %v2833, %v2835
      %v2837 = vrot.slane %v2768, 7
      %v2838 = vsel %vm827, %v2835, %v2837
      %v2839 = vrot.slane %v2769, 7
      %v2840 = vsel %vm827, %v2837, %v2839
      %v2841 = vrot.slane %v2770, 7
      %v2842 = vsel %vm827, %v2839, %v2841
      %v2843 = vrot.slane %v2771, 7
      %v2844 = vsel %vm827, %v2841, %v2843
      %v2845 = vrot.slane %v2772, 7
      %v2846 = vsel %vm827, %v2843, %v2845
      %v2847 = vrot.slane %v2773, 7
      %v2848 = vsel %vm827, %v2845, %v2847
      %v2849 = vrot.slane %v2774, 7
      %v2850 = vsel %vm827, %v2847, %v2849
      %v2851 = vrot.slane %v2775, 7
      %v2852 = vsel %vm827, %v2849, %v2851
      %v2853 = vrot.slane %v2776, 7
      %v2854 = vsel %vm827, %v2851, %v2853
      %v2855 = vrot.slane %v2777, 7
      %v2856 = vsel %vm827, %v2853, %v2855
      %v2857 = vrot.slane %v2778, 7
      %v2858 = vsel %vm827, %v2855, %v2857
      %v2859 = vrot.slane %v2779, 7
      %v2860 = vsel %vm827, %v2857, %v2859
      %v2861 = vrot.slane %v2780, 7
      %v2862 = vsel %vm827, %v2859, %v2861
      %v2863 = vrot.slane %v2781, 7
      %v2864 = vsel %vm827, %v2861, %v2863
      %v2865 = vrot.slane %v2782, 7
      %v2866 = vsel %vm827, %v2863, %v2865
      %v2867 = vrot.slane %v2783, 7
      %v2868 = vsel %vm827, %v2865, %v2867
      %v2869 = vrot.slane %v2784, 7
      %v2870 = vsel %vm827, %v2867, %v2869
      %v2871 = vrot.slane %v2785, 7
      %v2872 = vsel %vm827, %v2869, %v2871
      %v2873 = vrot.slane %v2786, 7
      %v2874 = vsel %vm827, %v2871, %v2873
      %v2875 = vrot.slane %v2787, 7
      %v2876 = vsel %vm827, %v2873, %v2875
      %v2877 = vrot.slane %v2788, 7
      %v2878 = vsel %vm827, %v2875, %v2877
      %v2879 = vrot.slane %v2789, 7
      %v2880 = vsel %vm827, %v2877, %v2879
      %v2881 = vrot.slane %v2790, 7
      %v2882 = vsel %vm827, %v2879, %v2881
      %v2883 = vrot.slane %v2791, 7
      %v2884 = vsel %vm827, %v2881, %v2883
      %v2885 = vrot.slane %v2792, 7
      %v2886 = vsel %vm827, %v2883, %v2885
      %v2887 = vrot.slane %v2793, 7
      %v2888 = vsel %vm827, %v2885, %v2887
      %2922 = vst.msk [vmem:[#allocation2 + $0x20] sm:$0xfe] %vm924, %v2826
      %2923 = vst.msk [vmem:[#allocation2 + $0x30] sm:$0xff] %vm653, %v2828
      %2924 = vst.msk [vmem:[#allocation2 + $0x40] sm:$0xff] %vm653, %v2830
      %2925 = vst.msk [vmem:[#allocation2 + $0x50] sm:$0xff] %vm653, %v2832
      %2926 = vst.msk [vmem:[#allocation2 + $0x60] sm:$0xff] %vm653, %v2834
      %2927 = vst.msk [vmem:[#allocation2 + $0x70] sm:$0xff] %vm653, %v2836
      %2928 = vst.msk [vmem:[#allocation2 + $0x80] sm:$0xff] %vm653, %v2838
      %2929 = vst.msk [vmem:[#allocation2 + $0x90] sm:$0xff] %vm653, %v2840
      %2930 = vst.msk [vmem:[#allocation2 + $0xa0] sm:$0xff] %vm653, %v2842
      %2931 = vst.msk [vmem:[#allocation2 + $0xb0] sm:$0xff] %vm653, %v2844
      %2932 = vst.msk [vmem:[#allocation2 + $0xc0] sm:$0xff] %vm653, %v2846
      %2933 = vst.msk [vmem:[#allocation2 + $0xd0] sm:$0xff] %vm653, %v2848
      %2934 = vst.msk [vmem:[#allocation2 + $0xe0] sm:$0xff] %vm653, %v2850
      %2935 = vst.msk [vmem:[#allocation2 + $0xf0] sm:$0xff] %vm653, %v2852
      %2936 = vst.msk [vmem:[#allocation2 + $0x100] sm:$0xff] %vm653, %v2854
      %2937 = vst.msk [vmem:[#allocation2 + $0x110] sm:$0xff] %vm653, %v2856
      %2938 = vst.msk [vmem:[#allocation2 + $0x120] sm:$0xff] %vm653, %v2858
      %2939 = vst.msk [vmem:[#allocation2 + $0x130] sm:$0xff] %vm653, %v2860
      %2940 = vst.msk [vmem:[#allocation2 + $0x140] sm:$0xff] %vm653, %v2862
      %2941 = vst.msk [vmem:[#allocation2 + $0x150] sm:$0xff] %vm653, %v2864
      %2942 = vst.msk [vmem:[#allocation2 + $0x160] sm:$0xff] %vm653, %v2866
      %2943 = vst.msk [vmem:[#allocation2 + $0x170] sm:$0xff] %vm653, %v2868
      %2944 = vst.msk [vmem:[#allocation2 + $0x180] sm:$0xff] %vm653, %v2870
      %2945 = vst.msk [vmem:[#allocation2 + $0x190] sm:$0xff] %vm653, %v2872
      %2946 = vst.msk [vmem:[#allocation2 + $0x1a0] sm:$0xff] %vm653, %v2874
      %2947 = vst.msk [vmem:[#allocation2 + $0x1b0] sm:$0xff] %vm653, %v2876
      %2948 = vst.msk [vmem:[#allocation2 + $0x1c0] sm:$0xff] %vm653, %v2878
      %2949 = vst.msk [vmem:[#allocation2 + $0x1d0] sm:$0xff] %vm653, %v2880
      %2950 = vst.msk [vmem:[#allocation2 + $0x1e0] sm:$0xff] %vm653, %v2882
      %2951 = vst.msk [vmem:[#allocation2 + $0x1f0] sm:$0xff] %vm653, %v2884
      %2952 = vst.msk [vmem:[#allocation2 + $0x200] sm:$0xff] %vm653, %v2886
      %2953 = vst.msk [vmem:[#allocation2 + $0x210] sm:$0xff] %vm653, %v2888
      %2954 = vst.msk [vmem:[#allocation2 + $0x220] sm:$0x1] %vm658, %v2887
      %2987 = vrot.lane.b32.xlu0 %v2730, 64
      %v2988 = vpop.permute.xlu0 %2987
      %2989 = vrot.lane.b32.xlu0 %v2731, 64
      %v2990 = vpop.permute.xlu0 %2989
      %2991 = vrot.lane.b32.xlu0 %v2732, 64
      %v2992 = vpop.permute.xlu0 %2991
      %2993 = vrot.lane.b32.xlu0 %v2733, 64
      %v2994 = vpop.permute.xlu0 %2993
      %2995 = vrot.lane.b32.xlu0 %v2734, 64
      %v2996 = vpop.permute.xlu0 %2995
      %2997 = vrot.lane.b32.xlu0 %v2735, 64
      %v2998 = vpop.permute.xlu0 %2997
      %2999 = vrot.lane.b32.xlu0 %v2736, 64
      %v3000 = vpop.permute.xlu0 %2999
      %3001 = vrot.lane.b32.xlu0 %v2737, 64
      %v3002 = vpop.permute.xlu0 %3001
      %3003 = vrot.lane.b32.xlu0 %v2738, 64
      %v3004 = vpop.permute.xlu0 %3003
      %3005 = vrot.lane.b32.xlu0 %v2739, 64
      %v3006 = vpop.permute.xlu0 %3005
      %3007 = vrot.lane.b32.xlu0 %v2740, 64
      %v3008 = vpop.permute.xlu0 %3007
      %3009 = vrot.lane.b32.xlu0 %v2741, 64
      %v3010 = vpop.permute.xlu0 %3009
      %3011 = vrot.lane.b32.xlu0 %v2742, 64
      %v3012 = vpop.permute.xlu0 %3011
      %3013 = vrot.lane.b32.xlu0 %v2743, 64
      %v3014 = vpop.permute.xlu0 %3013
      %3015 = vrot.lane.b32.xlu0 %v2744, 64
      %v3016 = vpop.permute.xlu0 %3015
      %3017 = vrot.lane.b32.xlu0 %v2745, 64
      %v3018 = vpop.permute.xlu0 %3017
      %3019 = vrot.lane.b32.xlu0 %v2746, 64
      %v3020 = vpop.permute.xlu0 %3019
      %3021 = vrot.lane.b32.xlu0 %v2747, 64
      %v3022 = vpop.permute.xlu0 %3021
      %3023 = vrot.lane.b32.xlu0 %v2748, 64
      %v3024 = vpop.permute.xlu0 %3023
      %3025 = vrot.lane.b32.xlu0 %v2749, 64
      %v3026 = vpop.permute.xlu0 %3025
      %3027 = vrot.lane.b32.xlu0 %v2750, 64
      %v3028 = vpop.permute.xlu0 %3027
      %3029 = vrot.lane.b32.xlu0 %v2751, 64
      %v3030 = vpop.permute.xlu0 %3029
      %3031 = vrot.lane.b32.xlu0 %v2752, 64
      %v3032 = vpop.permute.xlu0 %3031
      %3033 = vrot.lane.b32.xlu0 %v2753, 64
      %v3034 = vpop.permute.xlu0 %3033
      %3035 = vrot.lane.b32.xlu0 %v2754, 64
      %v3036 = vpop.permute.xlu0 %3035
      %3037 = vrot.lane.b32.xlu0 %v2755, 64
      %v3038 = vpop.permute.xlu0 %3037
      %3039 = vrot.lane.b32.xlu0 %v2756, 64
      %v3040 = vpop.permute.xlu0 %3039
      %3041 = vrot.lane.b32.xlu0 %v2757, 64
      %v3042 = vpop.permute.xlu0 %3041
      %3043 = vrot.lane.b32.xlu0 %v2758, 64
      %v3044 = vpop.permute.xlu0 %3043
      %3045 = vrot.lane.b32.xlu0 %v2759, 64
      %v3046 = vpop.permute.xlu0 %3045
      %3047 = vrot.lane.b32.xlu0 %v2760, 64
      %v3048 = vpop.permute.xlu0 %3047
      %3049 = vrot.lane.b32.xlu0 %v2761, 64
      %v3050 = vpop.permute.xlu0 %3049
      %3083 = vst.msk [vmem:[#allocation2 + $0x20] sm:$0xff] %vm1086, %v2988
      %3084 = vst.msk [vmem:[#allocation2 + $0x30] sm:$0xff] %vm1086, %v2990
      %3085 = vst.msk [vmem:[#allocation2 + $0x40] sm:$0xff] %vm1086, %v2992
      %3086 = vst.msk [vmem:[#allocation2 + $0x50] sm:$0xff] %vm1086, %v2994
      %3087 = vst.msk [vmem:[#allocation2 + $0x60] sm:$0xff] %vm1086, %v2996
      %3088 = vst.msk [vmem:[#allocation2 + $0x70] sm:$0xff] %vm1086, %v2998
      %3089 = vst.msk [vmem:[#allocation2 + $0x80] sm:$0xff] %vm1086, %v3000
      %3090 = vst.msk [vmem:[#allocation2 + $0x90] sm:$0xff] %vm1086, %v3002
      %3091 = vst.msk [vmem:[#allocation2 + $0xa0] sm:$0xff] %vm1086, %v3004
      %3092 = vst.msk [vmem:[#allocation2 + $0xb0] sm:$0xff] %vm1086, %v3006
      %3093 = vst.msk [vmem:[#allocation2 + $0xc0] sm:$0xff] %vm1086, %v3008
      %3094 = vst.msk [vmem:[#allocation2 + $0xd0] sm:$0xff] %vm1086, %v3010
      %3095 = vst.msk [vmem:[#allocation2 + $0xe0] sm:$0xff] %vm1086, %v3012
      %3096 = vst.msk [vmem:[#allocation2 + $0xf0] sm:$0xff] %vm1086, %v3014
      %3097 = vst.msk [vmem:[#allocation2 + $0x100] sm:$0xff] %vm1086, %v3016
      %3098 = vst.msk [vmem:[#allocation2 + $0x110] sm:$0xff] %vm1086, %v3018
      %3099 = vst.msk [vmem:[#allocation2 + $0x120] sm:$0xff] %vm1086, %v3020
      %3100 = vst.msk [vmem:[#allocation2 + $0x130] sm:$0xff] %vm1086, %v3022
      %3101 = vst.msk [vmem:[#allocation2 + $0x140] sm:$0xff] %vm1086, %v3024
      %3102 = vst.msk [vmem:[#allocation2 + $0x150] sm:$0xff] %vm1086, %v3026
      %3103 = vst.msk [vmem:[#allocation2 + $0x160] sm:$0xff] %vm1086, %v3028
      %3104 = vst.msk [vmem:[#allocation2 + $0x170] sm:$0xff] %vm1086, %v3030
      %3105 = vst.msk [vmem:[#allocation2 + $0x180] sm:$0xff] %vm1086, %v3032
      %3106 = vst.msk [vmem:[#allocation2 + $0x190] sm:$0xff] %vm1086, %v3034
      %3107 = vst.msk [vmem:[#allocation2 + $0x1a0] sm:$0xff] %vm1086, %v3036
      %3108 = vst.msk [vmem:[#allocation2 + $0x1b0] sm:$0xff] %vm1086, %v3038
      %3109 = vst.msk [vmem:[#allocation2 + $0x1c0] sm:$0xff] %vm1086, %v3040
      %3110 = vst.msk [vmem:[#allocation2 + $0x1d0] sm:$0xff] %vm1086, %v3042
      %3111 = vst.msk [vmem:[#allocation2 + $0x1e0] sm:$0xff] %vm1086, %v3044
      %3112 = vst.msk [vmem:[#allocation2 + $0x1f0] sm:$0xff] %vm1086, %v3046
      %3113 = vst.msk [vmem:[#allocation2 + $0x200] sm:$0xff] %vm1086, %v3048
      %3114 = vst.msk [vmem:[#allocation2 + $0x210] sm:$0xff] %vm1086, %v3050
      %v3115 = vsel %vm1151, 0.0, %v2730
      %v3116 = vsel %vm1152, 0.0, %v2731
      %v3117 = vsel %vm1153, 0.0, %v2732
      %v3118 = vsel %vm1154, 0.0, %v2733
      %v3119 = vsel %vm1155, 0.0, %v2734
      %v3120 = vsel %vm1156, 0.0, %v2735
      %v3121 = vsel %vm1157, 0.0, %v2736
      %v3122 = vsel %vm1158, 0.0, %v2737
      %v3123 = vsel %vm1159, 0.0, %v2738
      %v3124 = vsel %vm1160, 0.0, %v2739
      %v3125 = vsel %vm1161, 0.0, %v2740
      %v3126 = vsel %vm1162, 0.0, %v2741
      %v3127 = vsel %vm1163, 0.0, %v2742
      %v3128 = vsel %vm1164, 0.0, %v2743
      %v3129 = vsel %vm1165, 0.0, %v2744
      %v3130 = vsel %vm1166, 0.0, %v2745
      %v3131 = vsel %vm1167, 0.0, %v2746
      %v3132 = vsel %vm1168, 0.0, %v2747
      %v3133 = vsel %vm1169, 0.0, %v2748
      %v3134 = vsel %vm1170, 0.0, %v2749
      %v3135 = vsel %vm1171, 0.0, %v2750
      %v3136 = vsel %vm1172, 0.0, %v2751
      %v3137 = vsel %vm1173, 0.0, %v2752
      %v3138 = vsel %vm1174, 0.0, %v2753
      %v3139 = vsel %vm1175, 0.0, %v2754
      %v3140 = vsel %vm1176, 0.0, %v2755
      %v3141 = vsel %vm1177, 0.0, %v2756
      %v3142 = vsel %vm1178, 0.0, %v2757
      %v3143 = vsel %vm1179, 0.0, %v2758
      %v3144 = vsel %vm1180, 0.0, %v2759
      %v3145 = vsel %vm1181, 0.0, %v2760
      %v3146 = vsel %vm1182, 0.0, %v2761
      %v3179 = vrot.slane %v3115, 1
      %v3180 = vrot.slane %v3116, 1
      %v3181 = vsel %vm1247, %v3179, %v3180
      %v3182 = vrot.slane %v3117, 1
      %v3183 = vsel %vm1247, %v3180, %v3182
      %v3184 = vrot.slane %v3118, 1
      %v3185 = vsel %vm1247, %v3182, %v3184
      %v3186 = vrot.slane %v3119, 1
      %v3187 = vsel %vm1247, %v3184, %v3186
      %v3188 = vrot.slane %v3120, 1
      %v3189 = vsel %vm1247, %v3186, %v3188
      %v3190 = vrot.slane %v3121, 1
      %v3191 = vsel %vm1247, %v3188, %v3190
      %v3192 = vrot.slane %v3122, 1
      %v3193 = vsel %vm1247, %v3190, %v3192
      %v3194 = vrot.slane %v3123, 1
      %v3195 = vsel %vm1247, %v3192, %v3194
      %v3196 = vrot.slane %v3124, 1
      %v3197 = vsel %vm1247, %v3194, %v3196
      %v3198 = vrot.slane %v3125, 1
      %v3199 = vsel %vm1247, %v3196, %v3198
      %v3200 = vrot.slane %v3126, 1
      %v3201 = vsel %vm1247, %v3198, %v3200
      %v3202 = vrot.slane %v3127, 1
      %v3203 = vsel %vm1247, %v3200, %v3202
      %v3204 = vrot.slane %v3128, 1
      %v3205 = vsel %vm1247, %v3202, %v3204
      %v3206 = vrot.slane %v3129, 1
      %v3207 = vsel %vm1247, %v3204, %v3206
      %v3208 = vrot.slane %v3130, 1
      %v3209 = vsel %vm1247, %v3206, %v3208
      %v3210 = vrot.slane %v3131, 1
      %v3211 = vsel %vm1247, %v3208, %v3210
      %v3212 = vrot.slane %v3132, 1
      %v3213 = vsel %vm1247, %v3210, %v3212
      %v3214 = vrot.slane %v3133, 1
      %v3215 = vsel %vm1247, %v3212, %v3214
      %v3216 = vrot.slane %v3134, 1
      %v3217 = vsel %vm1247, %v3214, %v3216
      %v3218 = vrot.slane %v3135, 1
      %v3219 = vsel %vm1247, %v3216, %v3218
      %v3220 = vrot.slane %v3136, 1
      %v3221 = vsel %vm1247, %v3218, %v3220
      %v3222 = vrot.slane %v3137, 1
      %v3223 = vsel %vm1247, %v3220, %v3222
      %v3224 = vrot.slane %v3138, 1
      %v3225 = vsel %vm1247, %v3222, %v3224
      %v3226 = vrot.slane %v3139, 1
      %v3227 = vsel %vm1247, %v3224, %v3226
      %v3228 = vrot.slane %v3140, 1
      %v3229 = vsel %vm1247, %v3226, %v3228
      %v3230 = vrot.slane %v3141, 1
      %v3231 = vsel %vm1247, %v3228, %v3230
      %v3232 = vrot.slane %v3142, 1
      %v3233 = vsel %vm1247, %v3230, %v3232
      %v3234 = vrot.slane %v3143, 1
      %v3235 = vsel %vm1247, %v3232, %v3234
      %v3236 = vrot.slane %v3144, 1
      %v3237 = vsel %vm1247, %v3234, %v3236
      %v3238 = vrot.slane %v3145, 1
      %v3239 = vsel %vm1247, %v3236, %v3238
      %v3240 = vrot.slane %v3146, 1
      %v3241 = vsel %vm1247, %v3238, %v3240
      %3275 = vst.msk [vmem:[#allocation2 + $0x18] sm:$0x80] %vm661, %v3179
      %3276 = vst.msk [vmem:[#allocation2 + $0x28] sm:$0xff] %vm653, %v3181
      %3277 = vst.msk [vmem:[#allocation2 + $0x38] sm:$0xff] %vm653, %v3183
      %3278 = vst.msk [vmem:[#allocation2 + $0x48] sm:$0xff] %vm653, %v3185
      %3279 = vst.msk [vmem:[#allocation2 + $0x58] sm:$0xff] %vm653, %v3187
      %3280 = vst.msk [vmem:[#allocation2 + $0x68] sm:$0xff] %vm653, %v3189
      %3281 = vst.msk [vmem:[#allocation2 + $0x78] sm:$0xff] %vm653, %v3191
      %3282 = vst.msk [vmem:[#allocation2 + $0x88] sm:$0xff] %vm653, %v3193
      %3283 = vst.msk [vmem:[#allocation2 + $0x98] sm:$0xff] %vm653, %v3195
      %3284 = vst.msk [vmem:[#allocation2 + $0xa8] sm:$0xff] %vm653, %v3197
      %3285 = vst.msk [vmem:[#allocation2 + $0xb8] sm:$0xff] %vm653, %v3199
      %3286 = vst.msk [vmem:[#allocation2 + $0xc8] sm:$0xff] %vm653, %v3201
      %3287 = vst.msk [vmem:[#allocation2 + $0xd8] sm:$0xff] %vm653, %v3203
      %3288 = vst.msk [vmem:[#allocation2 + $0xe8] sm:$0xff] %vm653, %v3205
      %3289 = vst.msk [vmem:[#allocation2 + $0xf8] sm:$0xff] %vm653, %v3207
      %3290 = vst.msk [vmem:[#allocation2 + $0x108] sm:$0xff] %vm653, %v3209
      %3291 = vst.msk [vmem:[#allocation2 + $0x118] sm:$0xff] %vm653, %v3211
      %3292 = vst.msk [vmem:[#allocation2 + $0x128] sm:$0xff] %vm653, %v3213
      %3293 = vst.msk [vmem:[#allocation2 + $0x138] sm:$0xff] %vm653, %v3215
      %3294 = vst.msk [vmem:[#allocation2 + $0x148] sm:$0xff] %vm653, %v3217
      %3295 = vst.msk [vmem:[#allocation2 + $0x158] sm:$0xff] %vm653, %v3219
      %3296 = vst.msk [vmem:[#allocation2 + $0x168] sm:$0xff] %vm653, %v3221
      %3297 = vst.msk [vmem:[#allocation2 + $0x178] sm:$0xff] %vm653, %v3223
      %3298 = vst.msk [vmem:[#allocation2 + $0x188] sm:$0xff] %vm653, %v3225
      %3299 = vst.msk [vmem:[#allocation2 + $0x198] sm:$0xff] %vm653, %v3227
      %3300 = vst.msk [vmem:[#allocation2 + $0x1a8] sm:$0xff] %vm653, %v3229
      %3301 = vst.msk [vmem:[#allocation2 + $0x1b8] sm:$0xff] %vm653, %v3231
      %3302 = vst.msk [vmem:[#allocation2 + $0x1c8] sm:$0xff] %vm653, %v3233
      %3303 = vst.msk [vmem:[#allocation2 + $0x1d8] sm:$0xff] %vm653, %v3235
      %3304 = vst.msk [vmem:[#allocation2 + $0x1e8] sm:$0xff] %vm653, %v3237
      %3305 = vst.msk [vmem:[#allocation2 + $0x1f8] sm:$0xff] %vm653, %v3239
      %3306 = vst.msk [vmem:[#allocation2 + $0x208] sm:$0xff] %vm653, %v3241
      %3307 = vst.msk [vmem:[#allocation2 + $0x218] sm:$0x7f] %vm1376, %v3240
      %v3308 = vld [vmem:[#allocation2] sm:$0xff]
      %v3309 = vld [vmem:[#allocation2 + $0x8] sm:$0xff]
      %v3310 = vld [vmem:[#allocation2 + $0x10] sm:$0xff]
      %v3311 = vld [vmem:[#allocation2 + $0x18] sm:$0xff]
      %v3312 = vld [vmem:[#allocation2 + $0x20] sm:$0xff]
      %v3313 = vld [vmem:[#allocation2 + $0x28] sm:$0xff]
      %v3314 = vld [vmem:[#allocation2 + $0x30] sm:$0xff]
      %v3315 = vld [vmem:[#allocation2 + $0x38] sm:$0xff]
      %v3316 = vld [vmem:[#allocation2 + $0x40] sm:$0xff]
      %v3317 = vld [vmem:[#allocation2 + $0x48] sm:$0xff]
      %v3318 = vld [vmem:[#allocation2 + $0x50] sm:$0xff]
      %v3319 = vld [vmem:[#allocation2 + $0x58] sm:$0xff]
      %v3320 = vld [vmem:[#allocation2 + $0x60] sm:$0xff]
      %v3321 = vld [vmem:[#allocation2 + $0x68] sm:$0xff]
      %v3322 = vld [vmem:[#allocation2 + $0x70] sm:$0xff]
      %v3323 = vld [vmem:[#allocation2 + $0x78] sm:$0xff]
      %v3324 = vld [vmem:[#allocation2 + $0x80] sm:$0xff]
      %v3325 = vld [vmem:[#allocation2 + $0x88] sm:$0xff]
      %v3326 = vld [vmem:[#allocation2 + $0x90] sm:$0xff]
      %v3327 = vld [vmem:[#allocation2 + $0x98] sm:$0xff]
      %v3328 = vld [vmem:[#allocation2 + $0xa0] sm:$0xff]
      %v3329 = vld [vmem:[#allocation2 + $0xa8] sm:$0xff]
      %v3330 = vld [vmem:[#allocation2 + $0xb0] sm:$0xff]
      %v3331 = vld [vmem:[#allocation2 + $0xb8] sm:$0xff]
      %v3332 = vld [vmem:[#allocation2 + $0xc0] sm:$0xff]
      %v3333 = vld [vmem:[#allocation2 + $0xc8] sm:$0xff]
      %v3334 = vld [vmem:[#allocation2 + $0xd0] sm:$0xff]
      %v3335 = vld [vmem:[#allocation2 + $0xd8] sm:$0xff]
      %v3336 = vld [vmem:[#allocation2 + $0xe0] sm:$0xff]
      %v3337 = vld [vmem:[#allocation2 + $0xe8] sm:$0xff]
      %v3338 = vld [vmem:[#allocation2 + $0xf0] sm:$0xff]
      %v3339 = vld [vmem:[#allocation2 + $0xf8] sm:$0xff]
      %v3340 = vld [vmem:[#allocation2 + $0x100] sm:$0xff]
      %v3341 = vld [vmem:[#allocation2 + $0x108] sm:$0xff]
      %v3342 = vld [vmem:[#allocation2 + $0x110] sm:$0xff]
      %v3343 = vld [vmem:[#allocation2 + $0x118] sm:$0xff]
      %v3344 = vld [vmem:[#allocation2 + $0x120] sm:$0xff]
      %v3345 = vld [vmem:[#allocation2 + $0x128] sm:$0xff]
      %v3346 = vld [vmem:[#allocation2 + $0x130] sm:$0xff]
      %v3347 = vld [vmem:[#allocation2 + $0x138] sm:$0xff]
      %v3348 = vld [vmem:[#allocation2 + $0x140] sm:$0xff]
      %v3349 = vld [vmem:[#allocation2 + $0x148] sm:$0xff]
      %v3350 = vld [vmem:[#allocation2 + $0x150] sm:$0xff]
      %v3351 = vld [vmem:[#allocation2 + $0x158] sm:$0xff]
      %v3352 = vld [vmem:[#allocation2 + $0x160] sm:$0xff]
      %v3353 = vld [vmem:[#allocation2 + $0x168] sm:$0xff]
      %v3354 = vld [vmem:[#allocation2 + $0x170] sm:$0xff]
      %v3355 = vld [vmem:[#allocation2 + $0x178] sm:$0xff]
      %v3356 = vld [vmem:[#allocation2 + $0x180] sm:$0xff]
      %v3357 = vld [vmem:[#allocation2 + $0x188] sm:$0xff]
      %v3358 = vld [vmem:[#allocation2 + $0x190] sm:$0xff]
      %v3359 = vld [vmem:[#allocation2 + $0x198] sm:$0xff]
      %v3360 = vld [vmem:[#allocation2 + $0x1a0] sm:$0xff]
      %v3361 = vld [vmem:[#allocation2 + $0x1a8] sm:$0xff]
      %v3362 = vld [vmem:[#allocation2 + $0x1b0] sm:$0xff]
      %v3363 = vld [vmem:[#allocation2 + $0x1b8] sm:$0xff]
      %v3364 = vld [vmem:[#allocation2 + $0x1c0] sm:$0xff]
      %v3365 = vld [vmem:[#allocation2 + $0x1c8] sm:$0xff]
      %v3366 = vld [vmem:[#allocation2 + $0x1d0] sm:$0xff]
      %v3367 = vld [vmem:[#allocation2 + $0x1d8] sm:$0xff]
      %v3368 = vld [vmem:[#allocation2 + $0x1e0] sm:$0xff]
      %v3369 = vld [vmem:[#allocation2 + $0x1e8] sm:$0xff]
      %v3370 = vld [vmem:[#allocation2 + $0x1f0] sm:$0xff]
      %v3371 = vld [vmem:[#allocation2 + $0x1f8] sm:$0xff]
      %v3372 = vld [vmem:[%s2] sm:$0xff]
      %v3373 = vld [vmem:[%s2 + $0x8] sm:$0xff]
      %v3374 = vld [vmem:[%s2 + $0x10] sm:$0xff]
      %v3375 = vld [vmem:[%s2 + $0x18] sm:$0xff]
      %v3376 = vld [vmem:[%s2 + $0x20] sm:$0xff]
      %v3377 = vld [vmem:[%s2 + $0x28] sm:$0xff]
      %v3378 = vld [vmem:[%s2 + $0x30] sm:$0xff]
      %v3379 = vld [vmem:[%s2 + $0x38] sm:$0xff]
      %v3380 = vld [vmem:[%s2 + $0x40] sm:$0xff]
      %v3381 = vld [vmem:[%s2 + $0x48] sm:$0xff]
      %v3382 = vld [vmem:[%s2 + $0x50] sm:$0xff]
      %v3383 = vld [vmem:[%s2 + $0x58] sm:$0xff]
      %v3384 = vld [vmem:[%s2 + $0x60] sm:$0xff]
      %v3385 = vld [vmem:[%s2 + $0x68] sm:$0xff]
      %v3386 = vld [vmem:[%s2 + $0x70] sm:$0xff]
      %v3387 = vld [vmem:[%s2 + $0x78] sm:$0xff]
      %v3388 = vld [vmem:[%s2 + $0x80] sm:$0xff]
      %v3389 = vld [vmem:[%s2 + $0x88] sm:$0xff]
      %v3390 = vld [vmem:[%s2 + $0x90] sm:$0xff]
      %v3391 = vld [vmem:[%s2 + $0x98] sm:$0xff]
      %v3392 = vld [vmem:[%s2 + $0xa0] sm:$0xff]
      %v3393 = vld [vmem:[%s2 + $0xa8] sm:$0xff]
      %v3394 = vld [vmem:[%s2 + $0xb0] sm:$0xff]
      %v3395 = vld [vmem:[%s2 + $0xb8] sm:$0xff]
      %v3396 = vld [vmem:[#allocation2 + $0x200] sm:$0xff]
      %v3397 = vld [vmem:[#allocation2 + $0x208] sm:$0xff]
      %v3398 = vld [vmem:[#allocation2 + $0x210] sm:$0xff]
      %v3399 = vld [vmem:[#allocation2 + $0x218] sm:$0xff]
      %s3400 = scalar_lea.vmem %s2, 192
      %v3401 = vld [vmem:[%s3400] sm:$0xff]
      %v3402 = vld [vmem:[%s3400 + $0x8] sm:$0xff]
      %v3403 = vld [vmem:[%s3400 + $0x10] sm:$0xff]
      %v3404 = vld [vmem:[%s3400 + $0x18] sm:$0xff]
      %v3405 = vld [vmem:[%s3400 + $0x20] sm:$0xff]
      %v3406 = vld [vmem:[%s3400 + $0x28] sm:$0xff]
      %v3407 = vld [vmem:[%s3400 + $0x30] sm:$0xff]
      %v3408 = vld [vmem:[%s3400 + $0x38] sm:$0xff]
      %v3409 = vld [vmem:[%s3400 + $0x40] sm:$0xff]
      %v3410 = vld [vmem:[%s3400 + $0x48] sm:$0xff]
      %v3411 = vld [vmem:[%s3400 + $0x50] sm:$0xff]
      %v3412 = vld [vmem:[%s3400 + $0x58] sm:$0xff]
      %v3413 = vld [vmem:[%s3400 + $0x60] sm:$0xff]
      %v3414 = vld [vmem:[%s3400 + $0x68] sm:$0xff]
      %v3415 = vld [vmem:[%s3400 + $0x70] sm:$0xff]
      %v3416 = vld [vmem:[%s3400 + $0x78] sm:$0xff]
      %v3417 = vld [vmem:[%s3400 + $0x80] sm:$0xff]
      %v3418 = vld [vmem:[%s3400 + $0x88] sm:$0xff]
      %v3419 = vld [vmem:[%s3400 + $0x90] sm:$0xff]
      %v3420 = vld [vmem:[%s3400 + $0x98] sm:$0xff]
      %v3421 = vld [vmem:[%s3400 + $0xa0] sm:$0xff]
      %v3422 = vld [vmem:[%s3400 + $0xa8] sm:$0xff]
      %v3423 = vld [vmem:[%s3400 + $0xb0] sm:$0xff]
      %v3424 = vld [vmem:[%s3400 + $0xb8] sm:$0xff]
      %v3426 = vsel %vm653, %v3313, 0
      %v3429 = vsel %vm653, %v3315, 0
      %v3432 = vsel %vm653, %v3317, 0
      %v3435 = vsel %vm653, %v3319, 0
      %v3438 = vsel %vm653, %v3321, 0
      %v3441 = vsel %vm653, %v3323, 0
      %v3444 = vsel %vm653, %v3325, 0
      %v3447 = vsel %vm653, %v3327, 0
      %v3450 = vsel %vm653, %v3329, 0
      %v3453 = vsel %vm653, %v3331, 0
      %v3456 = vsel %vm653, %v3333, 0
      %v3459 = vsel %vm653, %v3335, 0
      %v3462 = vsel %vm653, %v3337, 0
      %v3465 = vsel %vm653, %v3339, 0
      %v3468 = vsel %vm653, %v3341, 0
      %v3471 = vsel %vm653, %v3343, 0
      %v3474 = vsel %vm653, %v3345, 0
      %v3477 = vsel %vm653, %v3347, 0
      %v3480 = vsel %vm653, %v3349, 0
      %v3483 = vsel %vm653, %v3351, 0
      %v3486 = vsel %vm653, %v3353, 0
      %v3489 = vsel %vm653, %v3355, 0
      %v3492 = vsel %vm653, %v3357, 0
      %v3495 = vsel %vm653, %v3359, 0
      %v3498 = vsel %vm653, %v3361, 0
      %v3501 = vsel %vm653, %v3363, 0
      %v3504 = vsel %vm653, %v3365, 0
      %v3507 = vsel %vm653, %v3367, 0
      %v3510 = vsel %vm653, %v3369, 0
      %v3513 = vsel %vm653, %v3371, 0
      %v3516 = vsel %vm653, %v3397, 0
      %v3519 = vsel %vm653, %v3399, 0
      %3521 = vmatprep.subr.mxu0 0.0
      %3522 = vmatpush1.msra.mxu0 %v3401
      %3523 = vmatprep.subr.mxu0 0.0
      %3524 = vmatpush1.msra.mxu0 %v3402
      %3525 = vmatprep.subr.mxu0 0.0
      %3526 = vmatpush1.msra.mxu0 %v3403
      %3527 = vmatprep.subr.mxu0 0.0
      %3528 = vmatpush1.msra.mxu0 %v3404
      %3529 = vmatprep.subr.mxu0 0.0
      %3530 = vmatpush1.msra.mxu0 %v3405
      %3531 = vmatprep.subr.mxu0 0.0
      %3532 = vmatpush1.msra.mxu0 %v3406
      %3533 = vmatprep.subr.mxu0 0.0
      %3534 = vmatpush1.msra.mxu0 %v3407
      %3535 = vmatprep.subr.mxu0 0.0
      %3536 = vmatpush1.msra.mxu0 %v3408
      %3537 = vmatprep.subr.mxu0 0.0
      %3538 = vmatpush1.msra.mxu0 %v3409
      %3539 = vmatprep.subr.mxu0 0.0
      %3540 = vmatpush1.msra.mxu0 %v3410
      %3541 = vmatprep.subr.mxu0 0.0
      %3542 = vmatpush1.msra.mxu0 %v3411
      %3543 = vmatprep.subr.mxu0 0.0
      %3544 = vmatpush1.msra.mxu0 %v3412
      %3545 = vmatprep.subr.mxu0 0.0
      %3546 = vmatpush1.msra.mxu0 %v3413
      %3547 = vmatprep.subr.mxu0 0.0
      %3548 = vmatpush1.msra.mxu0 %v3414
      %3549 = vmatprep.subr.mxu0 0.0
      %3550 = vmatpush1.msra.mxu0 %v3415
      %3551 = vmatprep.subr.mxu0 0.0
      %3552 = vmatpush1.msra.mxu0 %v3416
      %3553 = vmatprep.subr.mxu0 0.0
      %3554 = vmatpush1.msra.mxu0 %v3417
      %3555 = vmatprep.subr.mxu0 0.0
      %3556 = vmatpush1.msra.mxu0 %v3418
      %3557 = vmatprep.subr.mxu0 0.0
      %3558 = vmatpush1.msra.mxu0 %v3419
      %3559 = vmatprep.subr.mxu0 0.0
      %3560 = vmatpush1.msra.mxu0 %v3420
      %3561 = vmatprep.subr.mxu0 0.0
      %3562 = vmatpush1.msra.mxu0 %v3421
      %3563 = vmatprep.subr.mxu0 0.0
      %3564 = vmatpush1.msra.mxu0 %v3422
      %3565 = vmatprep.subr.mxu0 0.0
      %3566 = vmatpush1.msra.mxu0 %v3423
      %3567 = vmatprep.subr.mxu0 0.0
      %3568 = vmatpush1.msra.mxu0 %v3424
      %3569 = vmatprep.subr.mxu0 0.0
      %3570 = vmatpush1.msra.mxu0 0.0
      %3571 = vmatprep.subr.mxu0 0.0
      %3572 = vmatpush1.msra.mxu0 0.0
      %3573 = vmatprep.subr.mxu0 0.0
      %3574 = vmatpush1.msra.mxu0 0.0
      %3575 = vmatprep.subr.mxu0 0.0
      %3576 = vmatpush1.msra.mxu0 0.0
      %3577 = vmatprep.subr.mxu0 0.0
      %3578 = vmatpush1.msra.mxu0 0.0
      %3579 = vmatprep.subr.mxu0 0.0
      %3580 = vmatpush1.msra.mxu0 0.0
      %3581 = vmatprep.subr.mxu0 0.0
      %3582 = vmatpush1.msra.mxu0 0.0
      %3583 = vmatprep.subr.mxu0 0.0
      %3584 = vmatpush1.msra.mxu0 0.0
      %3585 = vmatprep.mubr.f32.mxu0 %v3426
      %3586 = vmatmul.mubr.f32.gmra.mrb[0].mxu0 %v3312
      %v3587 = vpop.f32.mrb[0].mxu0
      %v3588 = vadd.f32 0.0, %v3587
      %v3589 = vpop.f32.mrb[0].mxu0
      %3590 = vmatprep.mubr.f32.mxu0 %v3429
      %3591 = vmatmul.mubr.f32.gmra.mrb[0].mxu0 %v3314
      %v3592 = vpop.f32.mrb[0].mxu0
      %v3593 = vadd.f32 0.0, %v3592
      %v3594 = vpop.f32.mrb[0].mxu0
      %3595 = vmatprep.mubr.f32.mxu0 %v3432
      %3596 = vmatmul.mubr.f32.gmra.mrb[0].mxu0 %v3316
      %v3597 = vpop.f32.mrb[0].mxu0
      %v3598 = vadd.f32 0.0, %v3597
      %v3599 = vpop.f32.mrb[0].mxu0
      %3600 = vmatprep.mubr.f32.mxu0 %v3435
      %3601 = vmatmul.mubr.f32.gmra.mrb[0].mxu0 %v3318
      %v3602 = vpop.f32.mrb[0].mxu0
      %v3603 = vadd.f32 0.0, %v3602
      %v3604 = vpop.f32.mrb[0].mxu0
      %3605 = vmatprep.mubr.f32.mxu0 %v3438
      %3606 = vmatmul.mubr.f32.gmra.mrb[0].mxu0 %v3320
      %v3607 = vpop.f32.mrb[0].mxu0
      %v3608 = vadd.f32 0.0, %v3607
      %v3609 = vpop.f32.mrb[0].mxu0
      %3610 = vmatprep.mubr.f32.mxu0 %v3441
      %3611 = vmatmul.mubr.f32.gmra.mrb[0].mxu0 %v3322
      %v3612 = vpop.f32.mrb[0].mxu0
      %v3613 = vadd.f32 0.0, %v3612
      %v3614 = vpop.f32.mrb[0].mxu0
      %3615 = vmatprep.mubr.f32.mxu0 %v3444
      %3616 = vmatmul.mubr.f32.gmra.mrb[0].mxu0 %v3324
      %v3617 = vpop.f32.mrb[0].mxu0
      %v3618 = vadd.f32 0.0, %v3617
      %v3619 = vpop.f32.mrb[0].mxu0
      %3620 = vmatprep.mubr.f32.mxu0 %v3447
      %3621 = vmatmul.mubr.f32.gmra.mrb[0].mxu0 %v3326
      %v3622 = vpop.f32.mrb[0].mxu0
      %v3623 = vadd.f32 0.0, %v3622
      %v3624 = vpop.f32.mrb[0].mxu0
      %3625 = vmatprep.mubr.f32.mxu0 %v3450
      %3626 = vmatmul.mubr.f32.gmra.mrb[0].mxu0 %v3328
      %v3627 = vpop.f32.mrb[0].mxu0
      %v3628 = vadd.f32 0.0, %v3627
      %v3629 = vpop.f32.mrb[0].mxu0
      %3630 = vmatprep.mubr.f32.mxu0 %v3453
      %3631 = vmatmul.mubr.f32.gmra.mrb[0].mxu0 %v3330
      %v3632 = vpop.f32.mrb[0].mxu0
      %v3633 = vadd.f32 0.0, %v3632
      %v3634 = vpop.f32.mrb[0].mxu0
      %3635 = vmatprep.mubr.f32.mxu0 %v3456
      %3636 = vmatmul.mubr.f32.gmra.mrb[0].mxu0 %v3332
      %v3637 = vpop.f32.mrb[0].mxu0
      %v3638 = vadd.f32 0.0, %v3637
      %v3639 = vpop.f32.mrb[0].mxu0
      %3640 = vmatprep.mubr.f32.mxu0 %v3459
      %3641 = vmatmul.mubr.f32.gmra.mrb[0].mxu0 %v3334
      %v3642 = vpop.f32.mrb[0].mxu0
      %v3643 = vadd.f32 0.0, %v3642
      %v3644 = vpop.f32.mrb[0].mxu0
      %3645 = vmatprep.mubr.f32.mxu0 %v3462
      %3646 = vmatmul.mubr.f32.gmra.mrb[0].mxu0 %v3336
      %v3647 = vpop.f32.mrb[0].mxu0
      %v3648 = vadd.f32 0.0, %v3647
      %v3649 = vpop.f32.mrb[0].mxu0
      %3650 = vmatprep.mubr.f32.mxu0 %v3465
      %3651 = vmatmul.mubr.f32.gmra.mrb[0].mxu0 %v3338
      %v3652 = vpop.f32.mrb[0].mxu0
      %v3653 = vadd.f32 0.0, %v3652
      %v3654 = vpop.f32.mrb[0].mxu0
      %3655 = vmatprep.mubr.f32.mxu0 %v3468
      %3656 = vmatmul.mubr.f32.gmra.mrb[0].mxu0 %v3340
      %v3657 = vpop.f32.mrb[0].mxu0
      %v3658 = vadd.f32 0.0, %v3657
      %v3659 = vpop.f32.mrb[0].mxu0
      %3660 = vmatprep.mubr.f32.mxu0 %v3471
      %3661 = vmatmul.mubr.f32.gmra.mrb[0].mxu0 %v3342
      %v3662 = vpop.f32.mrb[0].mxu0
      %v3663 = vadd.f32 0.0, %v3662
      %v3664 = vpop.f32.mrb[0].mxu0
      %3665 = vmatprep.mubr.f32.mxu0 %v3474
      %3666 = vmatmul.mubr.f32.gmra.mrb[0].mxu0 %v3344
      %v3667 = vpop.f32.mrb[0].mxu0
      %v3668 = vadd.f32 0.0, %v3667
      %v3669 = vpop.f32.mrb[0].mxu0
      %3670 = vmatprep.mubr.f32.mxu0 %v3477
      %3671 = vmatmul.mubr.f32.gmra.mrb[0].mxu0 %v3346
      %v3672 = vpop.f32.mrb[0].mxu0
      %v3673 = vadd.f32 0.0, %v3672
      %v3674 = vpop.f32.mrb[0].mxu0
      %3675 = vmatprep.mubr.f32.mxu0 %v3480
      %3676 = vmatmul.mubr.f32.gmra.mrb[0].mxu0 %v3348
      %v3677 = vpop.f32.mrb[0].mxu0
      %v3678 = vadd.f32 0.0, %v3677
      %v3679 = vpop.f32.mrb[0].mxu0
      %3680 = vmatprep.mubr.f32.mxu0 %v3483
      %3681 = vmatmul.mubr.f32.gmra.mrb[0].mxu0 %v3350
      %v3682 = vpop.f32.mrb[0].mxu0
      %v3683 = vadd.f32 0.0, %v3682
      %v3684 = vpop.f32.mrb[0].mxu0
      %3685 = vmatprep.mubr.f32.mxu0 %v3486
      %3686 = vmatmul.mubr.f32.gmra.mrb[0].mxu0 %v3352
      %v3687 = vpop.f32.mrb[0].mxu0
      %v3688 = vadd.f32 0.0, %v3687
      %v3689 = vpop.f32.mrb[0].mxu0
      %3690 = vmatprep.mubr.f32.mxu0 %v3489
      %3691 = vmatmul.mubr.f32.gmra.mrb[0].mxu0 %v3354
      %v3692 = vpop.f32.mrb[0].mxu0
      %v3693 = vadd.f32 0.0, %v3692
      %v3694 = vpop.f32.mrb[0].mxu0
      %3695 = vmatprep.mubr.f32.mxu0 %v3492
      %3696 = vmatmul.mubr.f32.gmra.mrb[0].mxu0 %v3356
      %v3697 = vpop.f32.mrb[0].mxu0
      %v3698 = vadd.f32 0.0, %v3697
      %v3699 = vpop.f32.mrb[0].mxu0
      %3700 = vmatprep.mubr.f32.mxu0 %v3495
      %3701 = vmatmul.mubr.f32.gmra.mrb[0].mxu0 %v3358
      %v3702 = vpop.f32.mrb[0].mxu0
      %v3703 = vadd.f32 0.0, %v3702
      %v3704 = vpop.f32.mrb[0].mxu0
      %3705 = vmatprep.mubr.f32.mxu0 %v3498
      %3706 = vmatmul.mubr.f32.gmra.mrb[0].mxu0 %v3360
      %v3707 = vpop.f32.mrb[0].mxu0
      %v3708 = vadd.f32 0.0, %v3707
      %v3709 = vpop.f32.mrb[0].mxu0
      %3710 = vmatprep.mubr.f32.mxu0 %v3501
      %3711 = vmatmul.mubr.f32.gmra.mrb[0].mxu0 %v3362
      %v3712 = vpop.f32.mrb[0].mxu0
      %v3713 = vadd.f32 0.0, %v3712
      %v3714 = vpop.f32.mrb[0].mxu0
      %3715 = vmatprep.mubr.f32.mxu0 %v3504
      %3716 = vmatmul.mubr.f32.gmra.mrb[0].mxu0 %v3364
      %v3717 = vpop.f32.mrb[0].mxu0
      %v3718 = vadd.f32 0.0, %v3717
      %v3719 = vpop.f32.mrb[0].mxu0
      %3720 = vmatprep.mubr.f32.mxu0 %v3507
      %3721 = vmatmul.mubr.f32.gmra.mrb[0].mxu0 %v3366
      %v3722 = vpop.f32.mrb[0].mxu0
      %v3723 = vadd.f32 0.0, %v3722
      %v3724 = vpop.f32.mrb[0].mxu0
      %3725 = vmatprep.mubr.f32.mxu0 %v3510
      %3726 = vmatmul.mubr.f32.gmra.mrb[0].mxu0 %v3368
      %v3727 = vpop.f32.mrb[0].mxu0
      %v3728 = vadd.f32 0.0, %v3727
      %v3729 = vpop.f32.mrb[0].mxu0
      %3730 = vmatprep.mubr.f32.mxu0 %v3513
      %3731 = vmatmul.mubr.f32.gmra.mrb[0].mxu0 %v3370
      %v3732 = vpop.f32.mrb[0].mxu0
      %v3733 = vadd.f32 0.0, %v3732
      %v3734 = vpop.f32.mrb[0].mxu0
      %3735 = vmatprep.mubr.f32.mxu0 %v3516
      %3736 = vmatmul.mubr.f32.gmra.mrb[0].mxu0 %v3396
      %v3737 = vpop.f32.mrb[0].mxu0
      %v3738 = vadd.f32 0.0, %v3737
      %v3739 = vpop.f32.mrb[0].mxu0
      %3740 = vmatprep.mubr.f32.mxu0 %v3519
      %3741 = vmatmul.mubr.f32.gmra.mrb[0].mxu0 %v3398
      %v3742 = vpop.f32.mrb[0].mxu0
      %v3743 = vadd.f32 0.0, %v3742
      %v3744 = vpop.f32.mrb[0].mxu0
      %3745 = vdwg.mxu0
      %v3747 = vsel %vm653, %v3309, 0
      %v3750 = vsel %vm653, %v3311, 0
      %3752 = vmatprep.subr.mxu0 0.0
      %3753 = vmatpush1.msra.mxu0 %v3372
      %3754 = vmatprep.subr.mxu0 0.0
      %3755 = vmatpush1.msra.mxu0 %v3373
      %3756 = vmatprep.subr.mxu0 0.0
      %3757 = vmatpush1.msra.mxu0 %v3374
      %3758 = vmatprep.subr.mxu0 0.0
      %3759 = vmatpush1.msra.mxu0 %v3375
      %3760 = vmatprep.subr.mxu0 0.0
      %3761 = vmatpush1.msra.mxu0 %v3376
      %3762 = vmatprep.subr.mxu0 0.0
      %3763 = vmatpush1.msra.mxu0 %v3377
      %3764 = vmatprep.subr.mxu0 0.0
      %3765 = vmatpush1.msra.mxu0 %v3378
      %3766 = vmatprep.subr.mxu0 0.0
      %3767 = vmatpush1.msra.mxu0 %v3379
      %3768 = vmatprep.subr.mxu0 0.0
      %3769 = vmatpush1.msra.mxu0 %v3380
      %3770 = vmatprep.subr.mxu0 0.0
      %3771 = vmatpush1.msra.mxu0 %v3381
      %3772 = vmatprep.subr.mxu0 0.0
      %3773 = vmatpush1.msra.mxu0 %v3382
      %3774 = vmatprep.subr.mxu0 0.0
      %3775 = vmatpush1.msra.mxu0 %v3383
      %3776 = vmatprep.subr.mxu0 0.0
      %3777 = vmatpush1.msra.mxu0 %v3384
      %3778 = vmatprep.subr.mxu0 0.0
      %3779 = vmatpush1.msra.mxu0 %v3385
      %3780 = vmatprep.subr.mxu0 0.0
      %3781 = vmatpush1.msra.mxu0 %v3386
      %3782 = vmatprep.subr.mxu0 0.0
      %3783 = vmatpush1.msra.mxu0 %v3387
      %3784 = vmatprep.subr.mxu0 0.0
      %3785 = vmatpush1.msra.mxu0 %v3388
      %3786 = vmatprep.subr.mxu0 0.0
      %3787 = vmatpush1.msra.mxu0 %v3389
      %3788 = vmatprep.subr.mxu0 0.0
      %3789 = vmatpush1.msra.mxu0 %v3390
      %3790 = vmatprep.subr.mxu0 0.0
      %3791 = vmatpush1.msra.mxu0 %v3391
      %3792 = vmatprep.subr.mxu0 0.0
      %3793 = vmatpush1.msra.mxu0 %v3392
      %3794 = vmatprep.subr.mxu0 0.0
      %3795 = vmatpush1.msra.mxu0 %v3393
      %3796 = vmatprep.subr.mxu0 0.0
      %3797 = vmatpush1.msra.mxu0 %v3394
      %3798 = vmatprep.subr.mxu0 0.0
      %3799 = vmatpush1.msra.mxu0 %v3395
      %3800 = vmatprep.subr.mxu0 0.0
      %3801 = vmatpush1.msra.mxu0 0.0
      %3802 = vmatprep.subr.mxu0 0.0
      %3803 = vmatpush1.msra.mxu0 0.0
      %3804 = vmatprep.subr.mxu0 0.0
      %3805 = vmatpush1.msra.mxu0 0.0
      %3806 = vmatprep.subr.mxu0 0.0
      %3807 = vmatpush1.msra.mxu0 0.0
      %3808 = vmatprep.subr.mxu0 0.0
      %3809 = vmatpush1.msra.mxu0 0.0
      %3810 = vmatprep.subr.mxu0 0.0
      %3811 = vmatpush1.msra.mxu0 0.0
      %3812 = vmatprep.subr.mxu0 0.0
      %3813 = vmatpush1.msra.mxu0 0.0
      %3814 = vmatprep.subr.mxu0 0.0
      %3815 = vmatpush1.msra.mxu0 0.0
      %3816 = vmatprep.mubr.f32.mxu0 %v3747
      %3817 = vmatmul.mubr.f32.gmra.mrb[0].mxu0 %v3308
      %v3818 = vpop.f32.mrb[0].mxu0
      %v3819 = vadd.f32 %v3588, %v3818
      %v3820 = vpop.f32.mrb[0].mxu0
      %3821 = vmatprep.mubr.f32.mxu0 %v3750
      %3822 = vmatmul.mubr.f32.gmra.mrb[0].mxu0 %v3310
      %v3823 = vpop.f32.mrb[0].mxu0
      %v3824 = vadd.f32 %v3593, %v3823
      %v3825 = vpop.f32.mrb[0].mxu0
      %3826 = vmatprep.mubr.f32.mxu0 %v3426
      %3827 = vmatmul.mubr.f32.gmra.mrb[0].mxu0 %v3312
      %v3828 = vpop.f32.mrb[0].mxu0
      %v3829 = vadd.f32 %v3598, %v3828
      %v3830 = vpop.f32.mrb[0].mxu0
      %3831 = vmatprep.mubr.f32.mxu0 %v3429
      %3832 = vmatmul.mubr.f32.gmra.mrb[0].mxu0 %v3314
      %v3833 = vpop.f32.mrb[0].mxu0
      %v3834 = vadd.f32 %v3603, %v3833
      %v3835 = vpop.f32.mrb[0].mxu0
      %3836 = vmatprep.mubr.f32.mxu0 %v3432
      %3837 = vmatmul.mubr.f32.gmra.mrb[0].mxu0 %v3316
      %v3838 = vpop.f32.mrb[0].mxu0
      %v3839 = vadd.f32 %v3608, %v3838
      %v3840 = vpop.f32.mrb[0].mxu0
      %3841 = vmatprep.mubr.f32.mxu0 %v3435
      %3842 = vmatmul.mubr.f32.gmra.mrb[0].mxu0 %v3318
      %v3843 = vpop.f32.mrb[0].mxu0
      %v3844 = vadd.f32 %v3613, %v3843
      %v3845 = vpop.f32.mrb[0].mxu0
      %3846 = vmatprep.mubr.f32.mxu0 %v3438
      %3847 = vmatmul.mubr.f32.gmra.mrb[0].mxu0 %v3320
      %v3848 = vpop.f32.mrb[0].mxu0
      %v3849 = vadd.f32 %v3618, %v3848
      %v3850 = vpop.f32.mrb[0].mxu0
      %3851 = vmatprep.mubr.f32.mxu0 %v3441
      %3852 = vmatmul.mubr.f32.gmra.mrb[0].mxu0 %v3322
      %v3853 = vpop.f32.mrb[0].mxu0
      %v3854 = vadd.f32 %v3623, %v3853
      %v3855 = vpop.f32.mrb[0].mxu0
      %3856 = vmatprep.mubr.f32.mxu0 %v3444
      %3857 = vmatmul.mubr.f32.gmra.mrb[0].mxu0 %v3324
      %v3858 = vpop.f32.mrb[0].mxu0
      %v3859 = vadd.f32 %v3628, %v3858
      %v3860 = vpop.f32.mrb[0].mxu0
      %3861 = vmatprep.mubr.f32.mxu0 %v3447
      %3862 = vmatmul.mubr.f32.gmra.mrb[0].mxu0 %v3326
      %v3863 = vpop.f32.mrb[0].mxu0
      %v3864 = vadd.f32 %v3633, %v3863
      %v3865 = vpop.f32.mrb[0].mxu0
      %3866 = vmatprep.mubr.f32.mxu0 %v3450
      %3867 = vmatmul.mubr.f32.gmra.mrb[0].mxu0 %v3328
      %v3868 = vpop.f32.mrb[0].mxu0
      %v3869 = vadd.f32 %v3638, %v3868
      %v3870 = vpop.f32.mrb[0].mxu0
      %3871 = vmatprep.mubr.f32.mxu0 %v3453
      %3872 = vmatmul.mubr.f32.gmra.mrb[0].mxu0 %v3330
      %v3873 = vpop.f32.mrb[0].mxu0
      %v3874 = vadd.f32 %v3643, %v3873
      %v3875 = vpop.f32.mrb[0].mxu0
      %3876 = vmatprep.mubr.f32.mxu0 %v3456
      %3877 = vmatmul.mubr.f32.gmra.mrb[0].mxu0 %v3332
      %v3878 = vpop.f32.mrb[0].mxu0
      %v3879 = vadd.f32 %v3648, %v3878
      %v3880 = vpop.f32.mrb[0].mxu0
      %3881 = vmatprep.mubr.f32.mxu0 %v3459
      %3882 = vmatmul.mubr.f32.gmra.mrb[0].mxu0 %v3334
      %v3883 = vpop.f32.mrb[0].mxu0
      %v3884 = vadd.f32 %v3653, %v3883
      %v3885 = vpop.f32.mrb[0].mxu0
      %3886 = vmatprep.mubr.f32.mxu0 %v3462
      %3887 = vmatmul.mubr.f32.gmra.mrb[0].mxu0 %v3336
      %v3888 = vpop.f32.mrb[0].mxu0
      %v3889 = vadd.f32 %v3658, %v3888
      %v3890 = vpop.f32.mrb[0].mxu0
      %3891 = vmatprep.mubr.f32.mxu0 %v3465
      %3892 = vmatmul.mubr.f32.gmra.mrb[0].mxu0 %v3338
      %v3893 = vpop.f32.mrb[0].mxu0
      %v3894 = vadd.f32 %v3663, %v3893
      %v3895 = vpop.f32.mrb[0].mxu0
      %3896 = vmatprep.mubr.f32.mxu0 %v3468
      %3897 = vmatmul.mubr.f32.gmra.mrb[0].mxu0 %v3340
      %v3898 = vpop.f32.mrb[0].mxu0
      %v3899 = vadd.f32 %v3668, %v3898
      %v3900 = vpop.f32.mrb[0].mxu0
      %3901 = vmatprep.mubr.f32.mxu0 %v3471
      %3902 = vmatmul.mubr.f32.gmra.mrb[0].mxu0 %v3342
      %v3903 = vpop.f32.mrb[0].mxu0
      %v3904 = vadd.f32 %v3673, %v3903
      %v3905 = vpop.f32.mrb[0].mxu0
      %3906 = vmatprep.mubr.f32.mxu0 %v3474
      %3907 = vmatmul.mubr.f32.gmra.mrb[0].mxu0 %v3344
      %v3908 = vpop.f32.mrb[0].mxu0
      %v3909 = vadd.f32 %v3678, %v3908
      %v3910 = vpop.f32.mrb[0].mxu0
      %3911 = vmatprep.mubr.f32.mxu0 %v3477
      %3912 = vmatmul.mubr.f32.gmra.mrb[0].mxu0 %v3346
      %v3913 = vpop.f32.mrb[0].mxu0
      %v3914 = vadd.f32 %v3683, %v3913
      %v3915 = vpop.f32.mrb[0].mxu0
      %3916 = vmatprep.mubr.f32.mxu0 %v3480
      %3917 = vmatmul.mubr.f32.gmra.mrb[0].mxu0 %v3348
      %v3918 = vpop.f32.mrb[0].mxu0
      %v3919 = vadd.f32 %v3688, %v3918
      %v3920 = vpop.f32.mrb[0].mxu0
      %3921 = vmatprep.mubr.f32.mxu0 %v3483
      %3922 = vmatmul.mubr.f32.gmra.mrb[0].mxu0 %v3350
      %v3923 = vpop.f32.mrb[0].mxu0
      %v3924 = vadd.f32 %v3693, %v3923
      %v3925 = vpop.f32.mrb[0].mxu0
      %3926 = vmatprep.mubr.f32.mxu0 %v3486
      %3927 = vmatmul.mubr.f32.gmra.mrb[0].mxu0 %v3352
      %v3928 = vpop.f32.mrb[0].mxu0
      %v3929 = vadd.f32 %v3698, %v3928
      %v3930 = vpop.f32.mrb[0].mxu0
      %3931 = vmatprep.mubr.f32.mxu0 %v3489
      %3932 = vmatmul.mubr.f32.gmra.mrb[0].mxu0 %v3354
      %v3933 = vpop.f32.mrb[0].mxu0
      %v3934 = vadd.f32 %v3703, %v3933
      %v3935 = vpop.f32.mrb[0].mxu0
      %3936 = vmatprep.mubr.f32.mxu0 %v3492
      %3937 = vmatmul.mubr.f32.gmra.mrb[0].mxu0 %v3356
      %v3938 = vpop.f32.mrb[0].mxu0
      %v3939 = vadd.f32 %v3708, %v3938
      %v3940 = vpop.f32.mrb[0].mxu0
      %3941 = vmatprep.mubr.f32.mxu0 %v3495
      %3942 = vmatmul.mubr.f32.gmra.mrb[0].mxu0 %v3358
      %v3943 = vpop.f32.mrb[0].mxu0
      %v3944 = vadd.f32 %v3713, %v3943
      %v3945 = vpop.f32.mrb[0].mxu0
      %3946 = vmatprep.mubr.f32.mxu0 %v3498
      %3947 = vmatmul.mubr.f32.gmra.mrb[0].mxu0 %v3360
      %v3948 = vpop.f32.mrb[0].mxu0
      %v3949 = vadd.f32 %v3718, %v3948
      %v3950 = vpop.f32.mrb[0].mxu0
      %3951 = vmatprep.mubr.f32.mxu0 %v3501
      %3952 = vmatmul.mubr.f32.gmra.mrb[0].mxu0 %v3362
      %v3953 = vpop.f32.mrb[0].mxu0
      %v3954 = vadd.f32 %v3723, %v3953
      %v3955 = vpop.f32.mrb[0].mxu0
      %3956 = vmatprep.mubr.f32.mxu0 %v3504
      %3957 = vmatmul.mubr.f32.gmra.mrb[0].mxu0 %v3364
      %v3958 = vpop.f32.mrb[0].mxu0
      %v3959 = vadd.f32 %v3728, %v3958
      %v3960 = vpop.f32.mrb[0].mxu0
      %3961 = vmatprep.mubr.f32.mxu0 %v3507
      %3962 = vmatmul.mubr.f32.gmra.mrb[0].mxu0 %v3366
      %v3963 = vpop.f32.mrb[0].mxu0
      %v3964 = vadd.f32 %v3733, %v3963
      %v3965 = vpop.f32.mrb[0].mxu0
      %3966 = vmatprep.mubr.f32.mxu0 %v3510
      %3967 = vmatmul.mubr.f32.gmra.mrb[0].mxu0 %v3368
      %v3968 = vpop.f32.mrb[0].mxu0
      %v3969 = vadd.f32 %v3738, %v3968
      %v3970 = vpop.f32.mrb[0].mxu0
      %3971 = vmatprep.mubr.f32.mxu0 %v3513
      %3972 = vmatmul.mubr.f32.gmra.mrb[0].mxu0 %v3370
      %v3973 = vpop.f32.mrb[0].mxu0
      %v3974 = vadd.f32 %v3743, %v3973
      %v3975 = vpop.f32.mrb[0].mxu0
      %3976 = vdwg.mxu0
      %v3977 = vld [vmem:[#allocation2 + $0x40] sm:$0xff]
      %v3978 = vld [vmem:[#allocation2 + $0x48] sm:$0xff]
      %v3979 = vld [vmem:[#allocation2 + $0x50] sm:$0xff]
      %v3980 = vld [vmem:[#allocation2 + $0x58] sm:$0xff]
      %v3981 = vld [vmem:[#allocation2 + $0x60] sm:$0xff]
      %v3982 = vld [vmem:[#allocation2 + $0x68] sm:$0xff]
      %v3983 = vld [vmem:[#allocation2 + $0x70] sm:$0xff]
      %v3984 = vld [vmem:[#allocation2 + $0x78] sm:$0xff]
      %v3985 = vld [vmem:[#allocation2 + $0x80] sm:$0xff]
      %v3986 = vld [vmem:[#allocation2 + $0x88] sm:$0xff]
      %v3987 = vld [vmem:[#allocation2 + $0x90] sm:$0xff]
      %v3988 = vld [vmem:[#allocation2 + $0x98] sm:$0xff]
      %v3989 = vld [vmem:[#allocation2 + $0xa0] sm:$0xff]
      %v3990 = vld [vmem:[#allocation2 + $0xa8] sm:$0xff]
      %v3991 = vld [vmem:[#allocation2 + $0xb0] sm:$0xff]
      %v3992 = vld [vmem:[#allocation2 + $0xb8] sm:$0xff]
      %v3993 = vld [vmem:[#allocation2 + $0xc0] sm:$0xff]
      %v3994 = vld [vmem:[#allocation2 + $0xc8] sm:$0xff]
      %v3995 = vld [vmem:[#allocation2 + $0xd0] sm:$0xff]
      %v3996 = vld [vmem:[#allocation2 + $0xd8] sm:$0xff]
      %v3997 = vld [vmem:[#allocation2 + $0xe0] sm:$0xff]
      %v3998 = vld [vmem:[#allocation2 + $0xe8] sm:$0xff]
      %v3999 = vld [vmem:[#allocation2 + $0xf0] sm:$0xff]
      %v4000 = vld [vmem:[#allocation2 + $0xf8] sm:$0xff]
      %v4001 = vld [vmem:[#allocation2 + $0x100] sm:$0xff]
      %v4002 = vld [vmem:[#allocation2 + $0x108] sm:$0xff]
      %v4003 = vld [vmem:[#allocation2 + $0x110] sm:$0xff]
      %v4004 = vld [vmem:[#allocation2 + $0x118] sm:$0xff]
      %v4005 = vld [vmem:[#allocation2 + $0x120] sm:$0xff]
      %v4006 = vld [vmem:[#allocation2 + $0x128] sm:$0xff]
      %v4007 = vld [vmem:[#allocation2 + $0x130] sm:$0xff]
      %v4008 = vld [vmem:[#allocation2 + $0x138] sm:$0xff]
      %v4009 = vld [vmem:[#allocation2 + $0x140] sm:$0xff]
      %v4010 = vld [vmem:[#allocation2 + $0x148] sm:$0xff]
      %v4011 = vld [vmem:[#allocation2 + $0x150] sm:$0xff]
      %v4012 = vld [vmem:[#allocation2 + $0x158] sm:$0xff]
      %v4013 = vld [vmem:[#allocation2 + $0x160] sm:$0xff]
      %v4014 = vld [vmem:[#allocation2 + $0x168] sm:$0xff]
      %v4015 = vld [vmem:[#allocation2 + $0x170] sm:$0xff]
      %v4016 = vld [vmem:[#allocation2 + $0x178] sm:$0xff]
      %v4017 = vld [vmem:[#allocation2 + $0x180] sm:$0xff]
      %v4018 = vld [vmem:[#allocation2 + $0x188] sm:$0xff]
      %v4019 = vld [vmem:[#allocation2 + $0x190] sm:$0xff]
      %v4020 = vld [vmem:[#allocation2 + $0x198] sm:$0xff]
      %v4021 = vld [vmem:[#allocation2 + $0x1a0] sm:$0xff]
      %v4022 = vld [vmem:[#allocation2 + $0x1a8] sm:$0xff]
      %v4023 = vld [vmem:[#allocation2 + $0x1b0] sm:$0xff]
      %v4024 = vld [vmem:[#allocation2 + $0x1b8] sm:$0xff]
      %v4025 = vld [vmem:[#allocation2 + $0x1c0] sm:$0xff]
      %v4026 = vld [vmem:[#allocation2 + $0x1c8] sm:$0xff]
      %v4027 = vld [vmem:[#allocation2 + $0x1d0] sm:$0xff]
      %v4028 = vld [vmem:[#allocation2 + $0x1d8] sm:$0xff]
      %v4029 = vld [vmem:[#allocation2 + $0x1e0] sm:$0xff]
      %v4030 = vld [vmem:[#allocation2 + $0x1e8] sm:$0xff]
      %v4031 = vld [vmem:[#allocation2 + $0x1f0] sm:$0xff]
      %v4032 = vld [vmem:[#allocation2 + $0x1f8] sm:$0xff]
      %v4033 = vld [vmem:[#allocation2 + $0x200] sm:$0xff]
      %v4034 = vld [vmem:[#allocation2 + $0x208] sm:$0xff]
      %v4035 = vld [vmem:[#allocation2 + $0x210] sm:$0xff]
      %v4036 = vld [vmem:[#allocation2 + $0x218] sm:$0xff]
      %v4037 = vld [vmem:[#allocation2 + $0x220] sm:$0xff]
      %v4038 = vld [vmem:[#allocation2 + $0x228] sm:$0xff]
      %v4039 = vld [vmem:[#allocation2 + $0x230] sm:$0xff]
      %v4040 = vld [vmem:[#allocation2 + $0x238] sm:$0xff]
      %s4041 = scalar_lea.vmem %s2, 384
      %v4042 = vld [vmem:[%s4041] sm:$0xff]
      %v4043 = vld [vmem:[%s4041 + $0x8] sm:$0xff]
      %v4044 = vld [vmem:[%s4041 + $0x10] sm:$0xff]
      %v4045 = vld [vmem:[%s4041 + $0x18] sm:$0xff]
      %v4046 = vld [vmem:[%s4041 + $0x20] sm:$0xff]
      %v4047 = vld [vmem:[%s4041 + $0x28] sm:$0xff]
      %v4048 = vld [vmem:[%s4041 + $0x30] sm:$0xff]
      %v4049 = vld [vmem:[%s4041 + $0x38] sm:$0xff]
      %v4050 = vld [vmem:[%s4041 + $0x40] sm:$0xff]
      %v4051 = vld [vmem:[%s4041 + $0x48] sm:$0xff]
      %v4052 = vld [vmem:[%s4041 + $0x50] sm:$0xff]
      %v4053 = vld [vmem:[%s4041 + $0x58] sm:$0xff]
      %v4054 = vld [vmem:[%s4041 + $0x60] sm:$0xff]
      %v4055 = vld [vmem:[%s4041 + $0x68] sm:$0xff]
      %v4056 = vld [vmem:[%s4041 + $0x70] sm:$0xff]
      %v4057 = vld [vmem:[%s4041 + $0x78] sm:$0xff]
      %v4058 = vld [vmem:[%s4041 + $0x80] sm:$0xff]
      %v4059 = vld [vmem:[%s4041 + $0x88] sm:$0xff]
      %v4060 = vld [vmem:[%s4041 + $0x90] sm:$0xff]
      %v4061 = vld [vmem:[%s4041 + $0x98] sm:$0xff]
      %v4062 = vld [vmem:[%s4041 + $0xa0] sm:$0xff]
      %v4063 = vld [vmem:[%s4041 + $0xa8] sm:$0xff]
      %v4064 = vld [vmem:[%s4041 + $0xb0] sm:$0xff]
      %v4065 = vld [vmem:[%s4041 + $0xb8] sm:$0xff]
      %v4067 = vsel %vm653, %v3978, 0
      %v4070 = vsel %vm653, %v3980, 0
      %v4073 = vsel %vm653, %v3982, 0
      %v4076 = vsel %vm653, %v3984, 0
      %v4079 = vsel %vm653, %v3986, 0
      %v4082 = vsel %vm653, %v3988, 0
      %v4085 = vsel %vm653, %v3990, 0
      %v4088 = vsel %vm653, %v3992, 0
      %v4091 = vsel %vm653, %v3994, 0
      %v4094 = vsel %vm653, %v3996, 0
      %v4097 = vsel %vm653, %v3998, 0
      %v4100 = vsel %vm653, %v4000, 0
      %v4103 = vsel %vm653, %v4002, 0
      %v4106 = vsel %vm653, %v4004, 0
      %v4109 = vsel %vm653, %v4006, 0
      %v4112 = vsel %vm653, %v4008, 0
      %v4115 = vsel %vm653, %v4010, 0
      %v4118 = vsel %vm653, %v4012, 0
      %v4121 = vsel %vm653, %v4014, 0
      %v4124 = vsel %vm653, %v4016, 0
      %v4127 = vsel %vm653, %v4018, 0
      %v4130 = vsel %vm653, %v4020, 0
      %v4133 = vsel %vm653, %v4022, 0
      %v4136 = vsel %vm653, %v4024, 0
      %v4139 = vsel %vm653, %v4026, 0
      %v4142 = vsel %vm653, %v4028, 0
      %v4145 = vsel %vm653, %v4030, 0
      %v4148 = vsel %vm653, %v4032, 0
      %v4151 = vsel %vm653, %v4034, 0
      %v4154 = vsel %vm653, %v4036, 0
      %v4157 = vsel %vm653, %v4038, 0
      %v4160 = vsel %vm653, %v4040, 0
      %4162 = vmatprep.subr.mxu0 0.0
      %4163 = vmatpush1.msra.mxu0 %v4042
      %4164 = vmatprep.subr.mxu0 0.0
      %4165 = vmatpush1.msra.mxu0 %v4043
      %4166 = vmatprep.subr.mxu0 0.0
      %4167 = vmatpush1.msra.mxu0 %v4044
      %4168 = vmatprep.subr.mxu0 0.0
      %4169 = vmatpush1.msra.mxu0 %v4045
      %4170 = vmatprep.subr.mxu0 0.0
      %4171 = vmatpush1.msra.mxu0 %v4046
      %4172 = vmatprep.subr.mxu0 0.0
      %4173 = vmatpush1.msra.mxu0 %v4047
      %4174 = vmatprep.subr.mxu0 0.0
      %4175 = vmatpush1.msra.mxu0 %v4048
      %4176 = vmatprep.subr.mxu0 0.0
      %4177 = vmatpush1.msra.mxu0 %v4049
      %4178 = vmatprep.subr.mxu0 0.0
      %4179 = vmatpush1.msra.mxu0 %v4050
      %4180 = vmatprep.subr.mxu0 0.0
      %4181 = vmatpush1.msra.mxu0 %v4051
      %4182 = vmatprep.subr.mxu0 0.0
      %4183 = vmatpush1.msra.mxu0 %v4052
      %4184 = vmatprep.subr.mxu0 0.0
      %4185 = vmatpush1.msra.mxu0 %v4053
      %4186 = vmatprep.subr.mxu0 0.0
      %4187 = vmatpush1.msra.mxu0 %v4054
      %4188 = vmatprep.subr.mxu0 0.0
      %4189 = vmatpush1.msra.mxu0 %v4055
      %4190 = vmatprep.subr.mxu0 0.0
      %4191 = vmatpush1.msra.mxu0 %v4056
      %4192 = vmatprep.subr.mxu0 0.0
      %4193 = vmatpush1.msra.mxu0 %v4057
      %4194 = vmatprep.subr.mxu0 0.0
      %4195 = vmatpush1.msra.mxu0 %v4058
      %4196 = vmatprep.subr.mxu0 0.0
      %4197 = vmatpush1.msra.mxu0 %v4059
      %4198 = vmatprep.subr.mxu0 0.0
      %4199 = vmatpush1.msra.mxu0 %v4060
      %4200 = vmatprep.subr.mxu0 0.0
      %4201 = vmatpush1.msra.mxu0 %v4061
      %4202 = vmatprep.subr.mxu0 0.0
      %4203 = vmatpush1.msra.mxu0 %v4062
      %4204 = vmatprep.subr.mxu0 0.0
      %4205 = vmatpush1.msra.mxu0 %v4063
      %4206 = vmatprep.subr.mxu0 0.0
      %4207 = vmatpush1.msra.mxu0 %v4064
      %4208 = vmatprep.subr.mxu0 0.0
      %4209 = vmatpush1.msra.mxu0 %v4065
      %4210 = vmatprep.subr.mxu0 0.0
      %4211 = vmatpush1.msra.mxu0 0.0
      %4212 = vmatprep.subr.mxu0 0.0
      %4213 = vmatpush1.msra.mxu0 0.0
      %4214 = vmatprep.subr.mxu0 0.0
      %4215 = vmatpush1.msra.mxu0 0.0
      %4216 = vmatprep.subr.mxu0 0.0
      %4217 = vmatpush1.msra.mxu0 0.0
      %4218 = vmatprep.subr.mxu0 0.0
      %4219 = vmatpush1.msra.mxu0 0.0
      %4220 = vmatprep.subr.mxu0 0.0
      %4221 = vmatpush1.msra.mxu0 0.0
      %4222 = vmatprep.subr.mxu0 0.0
      %4223 = vmatpush1.msra.mxu0 0.0
      %4224 = vmatprep.subr.mxu0 0.0
      %4225 = vmatpush1.msra.mxu0 0.0
      %4226 = vmatprep.mubr.f32.mxu0 %v4067
      %4227 = vmatmul.mubr.f32.gmra.mrb[0].mxu0 %v3977
      %v4228 = vpop.f32.mrb[0].mxu0
      %v4229 = vadd.f32 0.0, %v4228
      %v4230 = vpop.f32.mrb[0].mxu0
      %4231 = vmatprep.mubr.f32.mxu0 %v4070
      %4232 = vmatmul.mubr.f32.gmra.mrb[0].mxu0 %v3979
      %v4233 = vpop.f32.mrb[0].mxu0
      %v4234 = vadd.f32 0.0, %v4233
      %v4235 = vpop.f32.mrb[0].mxu0
      %4236 = vmatprep.mubr.f32.mxu0 %v4073
      %4237 = vmatmul.mubr.f32.gmra.mrb[0].mxu0 %v3981
      %v4238 = vpop.f32.mrb[0].mxu0
      %v4239 = vadd.f32 0.0, %v4238
      %v4240 = vpop.f32.mrb[0].mxu0
      %4241 = vmatprep.mubr.f32.mxu0 %v4076
      %4242 = vmatmul.mubr.f32.gmra.mrb[0].mxu0 %v3983
      %v4243 = vpop.f32.mrb[0].mxu0
      %v4244 = vadd.f32 0.0, %v4243
      %v4245 = vpop.f32.mrb[0].mxu0
      %4246 = vmatprep.mubr.f32.mxu0 %v4079
      %4247 = vmatmul.mubr.f32.gmra.mrb[0].mxu0 %v3985
      %v4248 = vpop.f32.mrb[0].mxu0
      %v4249 = vadd.f32 0.0, %v4248
      %v4250 = vpop.f32.mrb[0].mxu0
      %4251 = vmatprep.mubr.f32.mxu0 %v4082
      %4252 = vmatmul.mubr.f32.gmra.mrb[0].mxu0 %v3987
      %v4253 = vpop.f32.mrb[0].mxu0
      %v4254 = vadd.f32 0.0, %v4253
      %v4255 = vpop.f32.mrb[0].mxu0
      %4256 = vmatprep.mubr.f32.mxu0 %v4085
      %4257 = vmatmul.mubr.f32.gmra.mrb[0].mxu0 %v3989
      %v4258 = vpop.f32.mrb[0].mxu0
      %v4259 = vadd.f32 0.0, %v4258
      %v4260 = vpop.f32.mrb[0].mxu0
      %4261 = vmatprep.mubr.f32.mxu0 %v4088
      %4262 = vmatmul.mubr.f32.gmra.mrb[0].mxu0 %v3991
      %v4263 = vpop.f32.mrb[0].mxu0
      %v4264 = vadd.f32 0.0, %v4263
      %v4265 = vpop.f32.mrb[0].mxu0
      %4266 = vmatprep.mubr.f32.mxu0 %v4091
      %4267 = vmatmul.mubr.f32.gmra.mrb[0].mxu0 %v3993
      %v4268 = vpop.f32.mrb[0].mxu0
      %v4269 = vadd.f32 0.0, %v4268
      %v4270 = vpop.f32.mrb[0].mxu0
      %4271 = vmatprep.mubr.f32.mxu0 %v4094
      %4272 = vmatmul.mubr.f32.gmra.mrb[0].mxu0 %v3995
      %v4273 = vpop.f32.mrb[0].mxu0
      %v4274 = vadd.f32 0.0, %v4273
      %v4275 = vpop.f32.mrb[0].mxu0
      %4276 = vmatprep.mubr.f32.mxu0 %v4097
      %4277 = vmatmul.mubr.f32.gmra.mrb[0].mxu0 %v3997
      %v4278 = vpop.f32.mrb[0].mxu0
      %v4279 = vadd.f32 0.0, %v4278
      %v4280 = vpop.f32.mrb[0].mxu0
      %4281 = vmatprep.mubr.f32.mxu0 %v4100
      %4282 = vmatmul.mubr.f32.gmra.mrb[0].mxu0 %v3999
      %v4283 = vpop.f32.mrb[0].mxu0
      %v4284 = vadd.f32 0.0, %v4283
      %v4285 = vpop.f32.mrb[0].mxu0
      %4286 = vmatprep.mubr.f32.mxu0 %v4103
      %4287 = vmatmul.mubr.f32.gmra.mrb[0].mxu0 %v4001
      %v4288 = vpop.f32.mrb[0].mxu0
      %v4289 = vadd.f32 0.0, %v4288
      %v4290 = vpop.f32.mrb[0].mxu0
      %4291 = vmatprep.mubr.f32.mxu0 %v4106
      %4292 = vmatmul.mubr.f32.gmra.mrb[0].mxu0 %v4003
      %v4293 = vpop.f32.mrb[0].mxu0
      %v4294 = vadd.f32 0.0, %v4293
      %v4295 = vpop.f32.mrb[0].mxu0
      %4296 = vmatprep.mubr.f32.mxu0 %v4109
      %4297 = vmatmul.mubr.f32.gmra.mrb[0].mxu0 %v4005
      %v4298 = vpop.f32.mrb[0].mxu0
      %v4299 = vadd.f32 0.0, %v4298
      %v4300 = vpop.f32.mrb[0].mxu0
      %4301 = vmatprep.mubr.f32.mxu0 %v4112
      %4302 = vmatmul.mubr.f32.gmra.mrb[0].mxu0 %v4007
      %v4303 = vpop.f32.mrb[0].mxu0
      %v4304 = vadd.f32 0.0, %v4303
      %v4305 = vpop.f32.mrb[0].mxu0
      %4306 = vmatprep.mubr.f32.mxu0 %v4115
      %4307 = vmatmul.mubr.f32.gmra.mrb[0].mxu0 %v4009
      %v4308 = vpop.f32.mrb[0].mxu0
      %v4309 = vadd.f32 0.0, %v4308
      %v4310 = vpop.f32.mrb[0].mxu0
      %4311 = vmatprep.mubr.f32.mxu0 %v4118
      %4312 = vmatmul.mubr.f32.gmra.mrb[0].mxu0 %v4011
      %v4313 = vpop.f32.mrb[0].mxu0
      %v4314 = vadd.f32 0.0, %v4313
      %v4315 = vpop.f32.mrb[0].mxu0
      %4316 = vmatprep.mubr.f32.mxu0 %v4121
      %4317 = vmatmul.mubr.f32.gmra.mrb[0].mxu0 %v4013
      %v4318 = vpop.f32.mrb[0].mxu0
      %v4319 = vadd.f32 0.0, %v4318
      %v4320 = vpop.f32.mrb[0].mxu0
      %4321 = vmatprep.mubr.f32.mxu0 %v4124
      %4322 = vmatmul.mubr.f32.gmra.mrb[0].mxu0 %v4015
      %v4323 = vpop.f32.mrb[0].mxu0
      %v4324 = vadd.f32 0.0, %v4323
      %v4325 = vpop.f32.mrb[0].mxu0
      %4326 = vmatprep.mubr.f32.mxu0 %v4127
      %4327 = vmatmul.mubr.f32.gmra.mrb[0].mxu0 %v4017
      %v4328 = vpop.f32.mrb[0].mxu0
      %v4329 = vadd.f32 0.0, %v4328
      %v4330 = vpop.f32.mrb[0].mxu0
      %4331 = vmatprep.mubr.f32.mxu0 %v4130
      %4332 = vmatmul.mubr.f32.gmra.mrb[0].mxu0 %v4019
      %v4333 = vpop.f32.mrb[0].mxu0
      %v4334 = vadd.f32 0.0, %v4333
      %v4335 = vpop.f32.mrb[0].mxu0
      %4336 = vmatprep.mubr.f32.mxu0 %v4133
      %4337 = vmatmul.mubr.f32.gmra.mrb[0].mxu0 %v4021
      %v4338 = vpop.f32.mrb[0].mxu0
      %v4339 = vadd.f32 0.0, %v4338
      %v4340 = vpop.f32.mrb[0].mxu0
      %4341 = vmatprep.mubr.f32.mxu0 %v4136
      %4342 = vmatmul.mubr.f32.gmra.mrb[0].mxu0 %v4023
      %v4343 = vpop.f32.mrb[0].mxu0
      %v4344 = vadd.f32 0.0, %v4343
      %v4345 = vpop.f32.mrb[0].mxu0
      %4346 = vmatprep.mubr.f32.mxu0 %v4139
      %4347 = vmatmul.mubr.f32.gmra.mrb[0].mxu0 %v4025
      %v4348 = vpop.f32.mrb[0].mxu0
      %v4349 = vadd.f32 0.0, %v4348
      %v4350 = vpop.f32.mrb[0].mxu0
      %4351 = vmatprep.mubr.f32.mxu0 %v4142
      %4352 = vmatmul.mubr.f32.gmra.mrb[0].mxu0 %v4027
      %v4353 = vpop.f32.mrb[0].mxu0
      %v4354 = vadd.f32 0.0, %v4353
      %v4355 = vpop.f32.mrb[0].mxu0
      %4356 = vmatprep.mubr.f32.mxu0 %v4145
      %4357 = vmatmul.mubr.f32.gmra.mrb[0].mxu0 %v4029
      %v4358 = vpop.f32.mrb[0].mxu0
      %v4359 = vadd.f32 0.0, %v4358
      %v4360 = vpop.f32.mrb[0].mxu0
      %4361 = vmatprep.mubr.f32.mxu0 %v4148
      %4362 = vmatmul.mubr.f32.gmra.mrb[0].mxu0 %v4031
      %v4363 = vpop.f32.mrb[0].mxu0
      %v4364 = vadd.f32 0.0, %v4363
      %v4365 = vpop.f32.mrb[0].mxu0
      %4366 = vmatprep.mubr.f32.mxu0 %v4151
      %4367 = vmatmul.mubr.f32.gmra.mrb[0].mxu0 %v4033
      %v4368 = vpop.f32.mrb[0].mxu0
      %v4369 = vadd.f32 0.0, %v4368
      %v4370 = vpop.f32.mrb[0].mxu0
      %4371 = vmatprep.mubr.f32.mxu0 %v4154
      %4372 = vmatmul.mubr.f32.gmra.mrb[0].mxu0 %v4035
      %v4373 = vpop.f32.mrb[0].mxu0
      %v4374 = vadd.f32 0.0, %v4373
      %v4375 = vpop.f32.mrb[0].mxu0
      %4376 = vmatprep.mubr.f32.mxu0 %v4157
      %4377 = vmatmul.mubr.f32.gmra.mrb[0].mxu0 %v4037
      %v4378 = vpop.f32.mrb[0].mxu0
      %v4379 = vadd.f32 0.0, %v4378
      %v4380 = vpop.f32.mrb[0].mxu0
      %4381 = vmatprep.mubr.f32.mxu0 %v4160
      %4382 = vmatmul.mubr.f32.gmra.mrb[0].mxu0 %v4039
      %v4383 = vpop.f32.mrb[0].mxu0
      %v4384 = vadd.f32 0.0, %v4383
      %v4385 = vpop.f32.mrb[0].mxu0
      %4386 = vdwg.mxu0
      %v4387 = vadd.f32 %v3819, %v4229
      %v4388 = vadd.f32 %v3824, %v4234
      %v4389 = vadd.f32 %v3829, %v4239
      %v4390 = vadd.f32 %v3834, %v4244
      %v4391 = vadd.f32 %v3839, %v4249
      %v4392 = vadd.f32 %v3844, %v4254
      %v4393 = vadd.f32 %v3849, %v4259
      %v4394 = vadd.f32 %v3854, %v4264
      %v4395 = vadd.f32 %v3859, %v4269
      %v4396 = vadd.f32 %v3864, %v4274
      %v4397 = vadd.f32 %v3869, %v4279
      %v4398 = vadd.f32 %v3874, %v4284
      %v4399 = vadd.f32 %v3879, %v4289
      %v4400 = vadd.f32 %v3884, %v4294
      %v4401 = vadd.f32 %v3889, %v4299
      %v4402 = vadd.f32 %v3894, %v4304
      %v4403 = vadd.f32 %v3899, %v4309
      %v4404 = vadd.f32 %v3904, %v4314
      %v4405 = vadd.f32 %v3909, %v4319
      %v4406 = vadd.f32 %v3914, %v4324
      %v4407 = vadd.f32 %v3919, %v4329
      %v4408 = vadd.f32 %v3924, %v4334
      %v4409 = vadd.f32 %v3929, %v4339
      %v4410 = vadd.f32 %v3934, %v4344
      %v4411 = vadd.f32 %v3939, %v4349
      %v4412 = vadd.f32 %v3944, %v4354
      %v4413 = vadd.f32 %v3949, %v4359
      %v4414 = vadd.f32 %v3954, %v4364
      %v4415 = vadd.f32 %v3959, %v4369
      %v4416 = vadd.f32 %v3964, %v4374
      %v4417 = vadd.f32 %v3969, %v4379
      %v4418 = vadd.f32 %v3974, %v4384
      %v4419 = vsel %vm653, %v4387, 0.0
      %v4420 = vsel %vm653, %v4388, 0.0
      %v4421 = vadd.f32 %v4419, %v4420
      %v4422 = vsel %vm653, %v4389, 0.0
      %v4423 = vadd.f32 %v4421, %v4422
      %v4424 = vsel %vm653, %v4390, 0.0
      %v4425 = vadd.f32 %v4423, %v4424
      %v4426 = vsel %vm653, %v4391, 0.0
      %v4427 = vadd.f32 %v4425, %v4426
      %v4428 = vsel %vm653, %v4392, 0.0
      %v4429 = vadd.f32 %v4427, %v4428
      %v4430 = vsel %vm653, %v4393, 0.0
      %v4431 = vadd.f32 %v4429, %v4430
      %v4432 = vsel %vm653, %v4394, 0.0
      %v4433 = vadd.f32 %v4431, %v4432
      %v4434 = vsel %vm653, %v4395, 0.0
      %v4435 = vadd.f32 %v4433, %v4434
      %v4436 = vsel %vm653, %v4396, 0.0
      %v4437 = vadd.f32 %v4435, %v4436
      %v4438 = vsel %vm653, %v4397, 0.0
      %v4439 = vadd.f32 %v4437, %v4438
      %v4440 = vsel %vm653, %v4398, 0.0
      %v4441 = vadd.f32 %v4439, %v4440
      %v4442 = vsel %vm653, %v4399, 0.0
      %v4443 = vadd.f32 %v4441, %v4442
      %v4444 = vsel %vm653, %v4400, 0.0
      %v4445 = vadd.f32 %v4443, %v4444
      %v4446 = vsel %vm653, %v4401, 0.0
      %v4447 = vadd.f32 %v4445, %v4446
      %v4448 = vsel %vm653, %v4402, 0.0
      %v4449 = vadd.f32 %v4447, %v4448
      %v4450 = vsel %vm653, %v4403, 0.0
      %v4451 = vadd.f32 %v4449, %v4450
      %v4452 = vsel %vm653, %v4404, 0.0
      %v4453 = vadd.f32 %v4451, %v4452
      %v4454 = vsel %vm653, %v4405, 0.0
      %v4455 = vadd.f32 %v4453, %v4454
      %v4456 = vsel %vm653, %v4406, 0.0
      %v4457 = vadd.f32 %v4455, %v4456
      %v4458 = vsel %vm653, %v4407, 0.0
      %v4459 = vadd.f32 %v4457, %v4458
      %v4460 = vsel %vm653, %v4408, 0.0
      %v4461 = vadd.f32 %v4459, %v4460
      %v4462 = vsel %vm653, %v4409, 0.0
      %v4463 = vadd.f32 %v4461, %v4462
      %v4464 = vsel %vm653, %v4410, 0.0
      %v4465 = vadd.f32 %v4463, %v4464
      %v4466 = vsel %vm653, %v4411, 0.0
      %v4467 = vadd.f32 %v4465, %v4466
      %v4468 = vsel %vm653, %v4412, 0.0
      %v4469 = vadd.f32 %v4467, %v4468
      %v4470 = vsel %vm653, %v4413, 0.0
      %v4471 = vadd.f32 %v4469, %v4470
      %v4472 = vsel %vm653, %v4414, 0.0
      %v4473 = vadd.f32 %v4471, %v4472
      %v4474 = vsel %vm653, %v4415, 0.0
      %v4475 = vadd.f32 %v4473, %v4474
      %v4476 = vsel %vm653, %v4416, 0.0
      %v4477 = vadd.f32 %v4475, %v4476
      %v4478 = vsel %vm653, %v4417, 0.0
      %v4479 = vadd.f32 %v4477, %v4478
      %v4480 = vsel %vm653, %v4418, 0.0
      %v4481 = vadd.f32 %v4479, %v4480
      %v4482 = vrot.slane %v4481, 4
      %v4483 = vadd.f32 %v4481, %v4482
      %v4484 = vrot.slane %v4483, 2
      %v4485 = vadd.f32 %v4483, %v4484
      %v4486 = vrot.slane %v4485, 1
      %v4487 = vadd.f32 %v4485, %v4486
      %v4488 = vmul.f32 %v4387, %v4387
      %v4489 = vmul.f32 %v4388, %v4388
      %v4490 = vmul.f32 %v4389, %v4389
      %v4491 = vmul.f32 %v4390, %v4390
      %v4492 = vmul.f32 %v4391, %v4391
      %v4493 = vmul.f32 %v4392, %v4392
      %v4494 = vmul.f32 %v4393, %v4393
      %v4495 = vmul.f32 %v4394, %v4394
      %v4496 = vmul.f32 %v4395, %v4395
      %v4497 = vmul.f32 %v4396, %v4396
      %v4498 = vmul.f32 %v4397, %v4397
      %v4499 = vmul.f32 %v4398, %v4398
      %v4500 = vmul.f32 %v4399, %v4399
      %v4501 = vmul.f32 %v4400, %v4400
      %v4502 = vmul.f32 %v4401, %v4401
      %v4503 = vmul.f32 %v4402, %v4402
      %v4504 = vmul.f32 %v4403, %v4403
      %v4505 = vmul.f32 %v4404, %v4404
      %v4506 = vmul.f32 %v4405, %v4405
      %v4507 = vmul.f32 %v4406, %v4406
      %v4508 = vmul.f32 %v4407, %v4407
      %v4509 = vmul.f32 %v4408, %v4408
      %v4510 = vmul.f32 %v4409, %v4409
      %v4511 = vmul.f32 %v4410, %v4410
      %v4512 = vmul.f32 %v4411, %v4411
      %v4513 = vmul.f32 %v4412, %v4412
      %v4514 = vmul.f32 %v4413, %v4413
      %v4515 = vmul.f32 %v4414, %v4414
      %v4516 = vmul.f32 %v4415, %v4415
      %v4517 = vmul.f32 %v4416, %v4416
      %v4518 = vmul.f32 %v4417, %v4417
      %v4519 = vmul.f32 %v4418, %v4418
      %v4520 = vsel %vm653, %v4488, 0.0
      %v4521 = vsel %vm653, %v4489, 0.0
      %v4522 = vadd.f32 %v4520, %v4521
      %v4523 = vsel %vm653, %v4490, 0.0
      %v4524 = vadd.f32 %v4522, %v4523
      %v4525 = vsel %vm653, %v4491, 0.0
      %v4526 = vadd.f32 %v4524, %v4525
      %v4527 = vsel %vm653, %v4492, 0.0
      %v4528 = vadd.f32 %v4526, %v4527
      %v4529 = vsel %vm653, %v4493, 0.0
      %v4530 = vadd.f32 %v4528, %v4529
      %v4531 = vsel %vm653, %v4494, 0.0
      %v4532 = vadd.f32 %v4530, %v4531
      %v4533 = vsel %vm653, %v4495, 0.0
      %v4534 = vadd.f32 %v4532, %v4533
      %v4535 = vsel %vm653, %v4496, 0.0
      %v4536 = vadd.f32 %v4534, %v4535
      %v4537 = vsel %vm653, %v4497, 0.0
      %v4538 = vadd.f32 %v4536, %v4537
      %v4539 = vsel %vm653, %v4498, 0.0
      %v4540 = vadd.f32 %v4538, %v4539
      %v4541 = vsel %vm653, %v4499, 0.0
      %v4542 = vadd.f32 %v4540, %v4541
      %v4543 = vsel %vm653, %v4500, 0.0
      %v4544 = vadd.f32 %v4542, %v4543
      %v4545 = vsel %vm653, %v4501, 0.0
      %v4546 = vadd.f32 %v4544, %v4545
      %v4547 = vsel %vm653, %v4502, 0.0
      %v4548 = vadd.f32 %v4546, %v4547
      %v4549 = vsel %vm653, %v4503, 0.0
      %v4550 = vadd.f32 %v4548, %v4549
      %v4551 = vsel %vm653, %v4504, 0.0
      %v4552 = vadd.f32 %v4550, %v4551
      %v4553 = vsel %vm653, %v4505, 0.0
      %v4554 = vadd.f32 %v4552, %v4553
      %v4555 = vsel %vm653, %v4506, 0.0
      %v4556 = vadd.f32 %v4554, %v4555
      %v4557 = vsel %vm653, %v4507, 0.0
      %v4558 = vadd.f32 %v4556, %v4557
      %v4559 = vsel %vm653, %v4508, 0.0
      %v4560 = vadd.f32 %v4558, %v4559
      %v4561 = vsel %vm653, %v4509, 0.0
      %v4562 = vadd.f32 %v4560, %v4561
      %v4563 = vsel %vm653, %v4510, 0.0
      %v4564 = vadd.f32 %v4562, %v4563
      %v4565 = vsel %vm653, %v4511, 0.0
      %v4566 = vadd.f32 %v4564, %v4565
      %v4567 = vsel %vm653, %v4512, 0.0
      %v4568 = vadd.f32 %v4566, %v4567
      %v4569 = vsel %vm653, %v4513, 0.0
      %v4570 = vadd.f32 %v4568, %v4569
      %v4571 = vsel %vm653, %v4514, 0.0
      %v4572 = vadd.f32 %v4570, %v4571
      %v4573 = vsel %vm653, %v4515, 0.0
      %v4574 = vadd.f32 %v4572, %v4573
      %v4575 = vsel %vm653, %v4516, 0.0
      %v4576 = vadd.f32 %v4574, %v4575
      %v4577 = vsel %vm653, %v4517, 0.0
      %v4578 = vadd.f32 %v4576, %v4577
      %v4579 = vsel %vm653, %v4518, 0.0
      %v4580 = vadd.f32 %v4578, %v4579
      %v4581 = vsel %vm653, %v4519, 0.0
      %v4582 = vadd.f32 %v4580, %v4581
      %v4583 = vrot.slane %v4582, 4
      %v4584 = vadd.f32 %v4582, %v4583
      %v4585 = vrot.slane %v4584, 2
      %v4586 = vadd.f32 %v4584, %v4585
      %v4587 = vrot.slane %v4586, 1
      %v4588 = vadd.f32 %v4586, %v4587
      %v4589 = vmul.f32 %v4487, 0.00390625
      %v4590 = vmul.f32 %v4588, 0.00390625
      %v4591 = vmul.f32 %v4589, %v4589
      %v4592 = vsub.f32 %v4590, %v4591
      %v4593 = vmax.f32 %v4592, 0.0
      %v4594 = vsub.f32 %v4387, %v4589
      %v4595 = vsub.f32 %v4388, %v4589
      %v4596 = vsub.f32 %v4389, %v4589
      %v4597 = vsub.f32 %v4390, %v4589
      %v4598 = vsub.f32 %v4391, %v4589
      %v4599 = vsub.f32 %v4392, %v4589
      %v4600 = vsub.f32 %v4393, %v4589
      %v4601 = vsub.f32 %v4394, %v4589
      %v4602 = vsub.f32 %v4395, %v4589
      %v4603 = vsub.f32 %v4396, %v4589
      %v4604 = vsub.f32 %v4397, %v4589
      %v4605 = vsub.f32 %v4398, %v4589
      %v4606 = vsub.f32 %v4399, %v4589
      %v4607 = vsub.f32 %v4400, %v4589
      %v4608 = vsub.f32 %v4401, %v4589
      %v4609 = vsub.f32 %v4402, %v4589
      %v4610 = vsub.f32 %v4403, %v4589
      %v4611 = vsub.f32 %v4404, %v4589
      %v4612 = vsub.f32 %v4405, %v4589
      %v4613 = vsub.f32 %v4406, %v4589
      %v4614 = vsub.f32 %v4407, %v4589
      %v4615 = vsub.f32 %v4408, %v4589
      %v4616 = vsub.f32 %v4409, %v4589
      %v4617 = vsub.f32 %v4410, %v4589
      %v4618 = vsub.f32 %v4411, %v4589
      %v4619 = vsub.f32 %v4412, %v4589
      %v4620 = vsub.f32 %v4413, %v4589
      %v4621 = vsub.f32 %v4414, %v4589
      %v4622 = vsub.f32 %v4415, %v4589
      %v4623 = vsub.f32 %v4416, %v4589
      %v4624 = vsub.f32 %v4417, %v4589
      %v4625 = vsub.f32 %v4418, %v4589
      %v4626 = vadd.f32 %v4593, 1e-05
      %v4627 = vrsqrt.pop %v4626
      %v4628 = vmul.f32 %v4594, %v4627
      %v4629 = vmul.f32 %v4595, %v4627
      %v4630 = vmul.f32 %v4596, %v4627
      %v4631 = vmul.f32 %v4597, %v4627
      %v4632 = vmul.f32 %v4598, %v4627
      %v4633 = vmul.f32 %v4599, %v4627
      %v4634 = vmul.f32 %v4600, %v4627
      %v4635 = vmul.f32 %v4601, %v4627
      %v4636 = vmul.f32 %v4602, %v4627
      %v4637 = vmul.f32 %v4603, %v4627
      %v4638 = vmul.f32 %v4604, %v4627
      %v4639 = vmul.f32 %v4605, %v4627
      %v4640 = vmul.f32 %v4606, %v4627
      %v4641 = vmul.f32 %v4607, %v4627
      %v4642 = vmul.f32 %v4608, %v4627
      %v4643 = vmul.f32 %v4609, %v4627
      %v4644 = vmul.f32 %v4610, %v4627
      %v4645 = vmul.f32 %v4611, %v4627
      %v4646 = vmul.f32 %v4612, %v4627
      %v4647 = vmul.f32 %v4613, %v4627
      %v4648 = vmul.f32 %v4614, %v4627
      %v4649 = vmul.f32 %v4615, %v4627
      %v4650 = vmul.f32 %v4616, %v4627
      %v4651 = vmul.f32 %v4617, %v4627
      %v4652 = vmul.f32 %v4618, %v4627
      %v4653 = vmul.f32 %v4619, %v4627
      %v4654 = vmul.f32 %v4620, %v4627
      %v4655 = vmul.f32 %v4621, %v4627
      %v4656 = vmul.f32 %v4622, %v4627
      %v4657 = vmul.f32 %v4623, %v4627
      %v4658 = vmul.f32 %v4624, %v4627
      %v4659 = vmul.f32 %v4625, %v4627
      %v4660 = vmax.f32 %v4628, 0.0
      %v4661 = vmax.f32 %v4629, 0.0
      %v4662 = vmax.f32 %v4630, 0.0
      %v4663 = vmax.f32 %v4631, 0.0
      %v4664 = vmax.f32 %v4632, 0.0
      %v4665 = vmax.f32 %v4633, 0.0
      %v4666 = vmax.f32 %v4634, 0.0
      %v4667 = vmax.f32 %v4635, 0.0
      %v4668 = vmax.f32 %v4636, 0.0
      %v4669 = vmax.f32 %v4637, 0.0
      %v4670 = vmax.f32 %v4638, 0.0
      %v4671 = vmax.f32 %v4639, 0.0
      %v4672 = vmax.f32 %v4640, 0.0
      %v4673 = vmax.f32 %v4641, 0.0
      %v4674 = vmax.f32 %v4642, 0.0
      %v4675 = vmax.f32 %v4643, 0.0
      %v4676 = vmax.f32 %v4644, 0.0
      %v4677 = vmax.f32 %v4645, 0.0
      %v4678 = vmax.f32 %v4646, 0.0
      %v4679 = vmax.f32 %v4647, 0.0
      %v4680 = vmax.f32 %v4648, 0.0
      %v4681 = vmax.f32 %v4649, 0.0
      %v4682 = vmax.f32 %v4650, 0.0
      %v4683 = vmax.f32 %v4651, 0.0
      %v4684 = vmax.f32 %v4652, 0.0
      %v4685 = vmax.f32 %v4653, 0.0
      %v4686 = vmax.f32 %v4654, 0.0
      %v4687 = vmax.f32 %v4655, 0.0
      %v4688 = vmax.f32 %v4656, 0.0
      %v4689 = vmax.f32 %v4657, 0.0
      %v4690 = vmax.f32 %v4658, 0.0
      %v4691 = vmax.f32 %v4659, 0.0
      %v4692 = vadd.f32 %v667, %v4660
      %v4693 = vadd.f32 %v668, %v4661
      %v4694 = vadd.f32 %v669, %v4662
      %v4695 = vadd.f32 %v670, %v4663
      %v4696 = vadd.f32 %v671, %v4664
      %v4697 = vadd.f32 %v672, %v4665
      %v4698 = vadd.f32 %v673, %v4666
      %v4699 = vadd.f32 %v674, %v4667
      %v4700 = vadd.f32 %v675, %v4668
      %v4701 = vadd.f32 %v676, %v4669
      %v4702 = vadd.f32 %v677, %v4670
      %v4703 = vadd.f32 %v678, %v4671
      %v4704 = vadd.f32 %v679, %v4672
      %v4705 = vadd.f32 %v680, %v4673
      %v4706 = vadd.f32 %v681, %v4674
      %v4707 = vadd.f32 %v682, %v4675
      %v4708 = vadd.f32 %v683, %v4676
      %v4709 = vadd.f32 %v684, %v4677
      %v4710 = vadd.f32 %v685, %v4678
      %v4711 = vadd.f32 %v686, %v4679
      %v4712 = vadd.f32 %v687, %v4680
      %v4713 = vadd.f32 %v688, %v4681
      %v4714 = vadd.f32 %v689, %v4682
      %v4715 = vadd.f32 %v690, %v4683
      %v4716 = vadd.f32 %v691, %v4684
      %v4717 = vadd.f32 %v692, %v4685
      %v4718 = vadd.f32 %v693, %v4686
      %v4719 = vadd.f32 %v694, %v4687
      %v4720 = vadd.f32 %v695, %v4688
      %v4721 = vadd.f32 %v696, %v4689
      %v4722 = vadd.f32 %v697, %v4690
      %v4723 = vadd.f32 %v698, %v4691
      %4724 = vst.msk [vmem:[%s170] sm:$0xff] %vm653, %v4692
      %4725 = vst.msk [vmem:[%s170 + $0x8] sm:$0xff] %vm653, %v4693
      %4726 = vst.msk [vmem:[%s170 + $0x10] sm:$0xff] %vm653, %v4694
      %4727 = vst.msk [vmem:[%s170 + $0x18] sm:$0xff] %vm653, %v4695
      %4728 = vst.msk [vmem:[%s170 + $0x20] sm:$0xff] %vm653, %v4696
      %4729 = vst.msk [vmem:[%s170 + $0x28] sm:$0xff] %vm653, %v4697
      %4730 = vst.msk [vmem:[%s170 + $0x30] sm:$0xff] %vm653, %v4698
      %4731 = vst.msk [vmem:[%s170 + $0x38] sm:$0xff] %vm653, %v4699
      %4732 = vst.msk [vmem:[%s170 + $0x40] sm:$0xff] %vm653, %v4700
      %4733 = vst.msk [vmem:[%s170 + $0x48] sm:$0xff] %vm653, %v4701
      %4734 = vst.msk [vmem:[%s170 + $0x50] sm:$0xff] %vm653, %v4702
      %4735 = vst.msk [vmem:[%s170 + $0x58] sm:$0xff] %vm653, %v4703
      %4736 = vst.msk [vmem:[%s170 + $0x60] sm:$0xff] %vm653, %v4704
      %4737 = vst.msk [vmem:[%s170 + $0x68] sm:$0xff] %vm653, %v4705
      %4738 = vst.msk [vmem:[%s170 + $0x70] sm:$0xff] %vm653, %v4706
      %4739 = vst.msk [vmem:[%s170 + $0x78] sm:$0xff] %vm653, %v4707
      %4740 = vst.msk [vmem:[%s170 + $0x80] sm:$0xff] %vm653, %v4708
      %4741 = vst.msk [vmem:[%s170 + $0x88] sm:$0xff] %vm653, %v4709
      %4742 = vst.msk [vmem:[%s170 + $0x90] sm:$0xff] %vm653, %v4710
      %4743 = vst.msk [vmem:[%s170 + $0x98] sm:$0xff] %vm653, %v4711
      %4744 = vst.msk [vmem:[%s170 + $0xa0] sm:$0xff] %vm653, %v4712
      %4745 = vst.msk [vmem:[%s170 + $0xa8] sm:$0xff] %vm653, %v4713
      %4746 = vst.msk [vmem:[%s170 + $0xb0] sm:$0xff] %vm653, %v4714
      %4747 = vst.msk [vmem:[%s170 + $0xb8] sm:$0xff] %vm653, %v4715
      %4748 = vst.msk [vmem:[%s170 + $0xc0] sm:$0xff] %vm653, %v4716
      %4749 = vst.msk [vmem:[%s170 + $0xc8] sm:$0xff] %vm653, %v4717
      %4750 = vst.msk [vmem:[%s170 + $0xd0] sm:$0xff] %vm653, %v4718
      %4751 = vst.msk [vmem:[%s170 + $0xd8] sm:$0xff] %vm653, %v4719
      %4752 = vst.msk [vmem:[%s170 + $0xe0] sm:$0xff] %vm653, %v4720
      %4753 = vst.msk [vmem:[%s170 + $0xe8] sm:$0xff] %vm653, %v4721
      %4754 = vst.msk [vmem:[%s170 + $0xf0] sm:$0xff] %vm653, %v4722
      %4755 = vst.msk [vmem:[%s170 + $0xf8] sm:$0xff] %vm653, %v4723
      %p4756 = scmp.lt.s32.totalorder %s14, 1
      %s4757 = scalar_select %p4756, %s14, 1
      %s4758 = smul.addr %s4757, 32
      %s4759 = smul.addr %s4758, 8
      %s4760 = scalar_lea.vmem %s3, %s4759
      // Predicated region
      $region33: #{tpu_custom_call.1} parent=31 // pred_check
        %p4761 = pneg %p100
      $region34: #{tpu_custom_call.1} parent=31 // pred_check_branch
        %4763 = sbr.rel (%p4761) target = $region36
      $region35: #{tpu_custom_call.1} parent=31 // pred_region
        _
      $region36: #{tpu_custom_call.1} parent=31 // pred_fallthru
        _
    $region32: #{tpu_custom_call.1} parent=5 // pred_fallthru
      _
    %p4764 = scmp.le.s32.totalorder 2, %s9
    // Predicated region
    $region37: #{tpu_custom_call.1} parent=5 // pred_check
      %p4765 = pneg %p4764
    $region38: #{tpu_custom_call.1} parent=5 // pred_check_branch
      %4767 = sbr.rel (%p4765) target = $region40
    $region39: #{tpu_custom_call.1} parent=5 // pred_region
      %s4768 = ssub.s32 %s9, 2
      // Predicated region
      $region41: #{tpu_custom_call.1} parent=39 // pred_check
        %p4769 = pneg %p106
      $region42: #{tpu_custom_call.1} parent=39 // pred_check_branch
        %4771 = sbr.rel (%p4769) target = $region44
      $region43: #{tpu_custom_call.1} parent=39 // pred_region
        %p4772 = scmp.lt.s32.totalorder %s15, 1
        %s4773 = scalar_select %p4772, %s15, 1
        %s4774 = smul.addr %s4773, 32
        %s4775 = smul.addr %s4774, 8
        %s4776 = scalar_lea.vmem %s3, %s4775
      $region44: #{tpu_custom_call.1} parent=39 // pred_fallthru
        _
    $region40: #{tpu_custom_call.1} parent=5 // pred_fallthru
      _
  $region6: #{tpu_custom_call.1} parent=0 // loop_footer
    %s13 = sadd.s32 1, %s9
  $region7: #{tpu_custom_call.1} parent=0 // loop_footer_branch
    %8 = sbr.rel target = $region3
  $region8: #{tpu_custom_call.1} parent=0 // loop_exit
    _

</llo_original>
